<compile_context>
chip_gen: v5e
topology: v5e:2x2
jax: 0.10.0
libtpu: 0.0.40
codegen_flags: <defaults>
</compile_context>

<pallas_src>
import functools

import jax
import jax.numpy as jnp
from jax.experimental import pallas as pl
from jax.experimental.pallas import tpu as pltpu

HIDDEN = 64
CA_DIM = 64
N_HEADS = 4
N_CLASSES = 2
TPP_LEVELS = (1, 2, 4)
BN_EPS = 1e-5

_VMEM_LIMIT = 32 * 1024 * 1024


# --------------------------- Pallas kernels ---------------------------------

def _conv_stats_kernel(x_ref, w_ref, b_ref, y_ref, sum_ref, sq_ref, *, dilation):
    """Causal dilated conv (+bias) for one batch element; accumulate global
    per-channel sum / sum-of-squares for train-mode BatchNorm1d."""
    @pl.when(pl.program_id(0) == 0)
    def _init():
        sum_ref[...] = jnp.zeros_like(sum_ref)
        sq_ref[...] = jnp.zeros_like(sq_ref)

    x = x_ref[0]                                   # (T + pad, Cin), left-padded
    taps, cin, cout = w_ref.shape
    t_out = y_ref.shape[1]
    acc = jnp.zeros((t_out, cout), jnp.float32)
    if cin == 1:
        # Degenerate 1-channel contraction: VPU broadcast-multiply (keep f32).
        for k in range(taps):
            acc = acc + x[k * dilation:k * dilation + t_out, :] * w_ref[k]
    else:
        xb = x.astype(jnp.bfloat16)
        wb = w_ref[...].astype(jnp.bfloat16)
        for k in range(taps):
            acc = acc + jnp.dot(xb[k * dilation:k * dilation + t_out, :], wb[k],
                                preferred_element_type=jnp.float32)
    acc = acc + b_ref[...]
    y_ref[0] = acc
    sum_ref[...] += jnp.sum(acc, axis=0, keepdims=True)
    sq_ref[...] += jnp.sum(acc * acc, axis=0, keepdims=True)


def conv_stats_pallas(hp, wk, b, *, dilation):
    """hp: (B, T+pad, Cin) causally left-padded input; wk: (K, Cin, Cout)."""
    B, Tp, Cin = hp.shape
    K, _, Cout = wk.shape
    T = Tp - (K - 1) * dilation
    return pl.pallas_call(
        functools.partial(_conv_stats_kernel, dilation=dilation),
        out_shape=(jax.ShapeDtypeStruct((B, T, Cout), jnp.float32),
                   jax.ShapeDtypeStruct((1, Cout), jnp.float32),
                   jax.ShapeDtypeStruct((1, Cout), jnp.float32)),
        grid=(B,),
        in_specs=[pl.BlockSpec((1, Tp, Cin), lambda i: (i, 0, 0)),
                  pl.BlockSpec((K, Cin, Cout), lambda i: (0, 0, 0)),
                  pl.BlockSpec((1, Cout), lambda i: (0, 0))],
        out_specs=(pl.BlockSpec((1, T, Cout), lambda i: (i, 0, 0)),
                   pl.BlockSpec((1, Cout), lambda i: (0, 0)),    # resident acc
                   pl.BlockSpec((1, Cout), lambda i: (0, 0))),   # resident acc
        compiler_params=pltpu.CompilerParams(
            dimension_semantics=("arbitrary",),        # stats reduction over B
            vmem_limit_bytes=_VMEM_LIMIT),
    )(hp, wk, b.reshape(1, Cout))


def _bn_relu_kernel(y_ref, sum_ref, sq_ref, g_ref, beta_ref, o_ref, *,
                    count, pad_next, pooled):
    """Train-mode BatchNorm1d (global stats) + ReLU, fused with either the next
    layer's causal zero-padding or the variational time-pool (last layer)."""
    inv_n = 1.0 / count
    mean = sum_ref[...] * inv_n                         # (1, C)
    var = sq_ref[...] * inv_n - mean * mean             # biased var (training)
    scale = jax.lax.rsqrt(var + BN_EPS) * g_ref[...]
    shift = beta_ref[...] - mean * scale
    h = jnp.maximum(y_ref[0] * scale + shift, 0.0)      # (T, C)
    if pooled:
        o_ref[0] = jnp.mean(h, axis=0, keepdims=True)   # adaptive_avg_pool1d(.,1)
    elif pad_next > 0:
        o_ref[0] = jnp.concatenate(
            [jnp.zeros((pad_next, h.shape[1]), h.dtype), h], axis=0)
    else:
        o_ref[0] = h


def bn_relu_pallas(y, s, sq, gamma, beta, *, count, pad_next, pooled):
    B, T, C = y.shape
    if pooled:
        out_shape = jax.ShapeDtypeStruct((B, 1, C), jnp.float32)
        out_spec = pl.BlockSpec((1, 1, C), lambda i: (i, 0, 0))
    else:
        out_shape = jax.ShapeDtypeStruct((B, T + pad_next, C), jnp.float32)
        out_spec = pl.BlockSpec((1, T + pad_next, C), lambda i: (i, 0, 0))
    return pl.pallas_call(
        functools.partial(_bn_relu_kernel, count=float(count),
                          pad_next=pad_next, pooled=pooled),
        out_shape=out_shape,
        grid=(B,),
        in_specs=[pl.BlockSpec((1, T, C), lambda i: (i, 0, 0)),
                  pl.BlockSpec((1, C), lambda i: (0, 0)),
                  pl.BlockSpec((1, C), lambda i: (0, 0)),
                  pl.BlockSpec((1, C), lambda i: (0, 0)),
                  pl.BlockSpec((1, C), lambda i: (0, 0))],
        out_specs=out_spec,
        compiler_params=pltpu.CompilerParams(
            dimension_semantics=("parallel",), vmem_limit_bytes=_VMEM_LIMIT),
    )(y, s, sq, gamma.reshape(1, C), beta.reshape(1, C))


def _var_proj_kernel(p_ref, wml_ref, bml_ref, eps_ref, wp_ref, bp_ref,
                     proj_ref, kl_ref):
    """Variational layer (fused mu|logvar matmul) + reparameterised sample +
    KL reduction + the z -> CA_DIM projection, all on the pooled (B, H) feats."""
    H = p_ref.shape[1]
    pooled = p_ref[...].astype(jnp.bfloat16)
    ml = jnp.dot(pooled, wml_ref[...].astype(jnp.bfloat16),
                 preferred_element_type=jnp.float32) + bml_ref[...]     # (B, 2H)
    mu = ml[:, :H]
    logvar = ml[:, H:]
    std = jnp.exp(0.5 * logvar)
    z = mu + eps_ref[...] * std
    kl = -0.5 * jnp.sum(1.0 + logvar - mu * mu - jnp.exp(logvar),
                        axis=-1, keepdims=True)                         # (B, 1)
    kl_ref[...] = jnp.mean(kl, axis=0, keepdims=True)                   # (1, 1)
    proj_ref[...] = jnp.dot(z.astype(jnp.bfloat16),
                            wp_ref[...].astype(jnp.bfloat16),
                            preferred_element_type=jnp.float32) + bp_ref[...]


def var_proj_pallas(pooled, wml, bml, eps, wproj, bproj):
    B, H = pooled.shape
    D2 = wml.shape[1]
    Dp = wproj.shape[1]
    proj, kl = pl.pallas_call(
        _var_proj_kernel,
        out_shape=(jax.ShapeDtypeStruct((B, Dp), jnp.float32),
                   jax.ShapeDtypeStruct((1, 1), jnp.float32)),
        grid=(1,),
        in_specs=[pl.BlockSpec((B, H), lambda i: (0, 0)),
                  pl.BlockSpec((H, D2), lambda i: (0, 0)),
                  pl.BlockSpec((1, D2), lambda i: (0, 0)),
                  pl.BlockSpec((B, H), lambda i: (0, 0)),
                  pl.BlockSpec((H, Dp), lambda i: (0, 0)),
                  pl.BlockSpec((1, Dp), lambda i: (0, 0))],
        out_specs=(pl.BlockSpec((B, Dp), lambda i: (0, 0)),
                   pl.BlockSpec((1, 1), lambda i: (0, 0))),
    )(pooled, wml, bml.reshape(1, D2), eps, wproj, bproj.reshape(1, Dp))
    return proj, kl[0, 0]


def _mha_kernel(x_ref, wqkv_ref, bqkv_ref, wo_ref, bo_ref, o_ref, *, n_heads):
    """Self-attention for one batch element. Input is the time-constant
    projected z (1, D); it is broadcast over T inside VMEM."""
    T = o_ref.shape[1]
    d = x_ref.shape[2]
    hd = d // n_heads
    scale = 1.0 / float(hd) ** 0.5

    x = jnp.broadcast_to(x_ref[0], (T, d)).astype(jnp.bfloat16)
    qkv = jnp.dot(x, wqkv_ref[...].astype(jnp.bfloat16),
                  preferred_element_type=jnp.float32) + bqkv_ref[...]   # (T, 3D)
    wo = wo_ref[...].astype(jnp.bfloat16)

    acc = jnp.zeros((T, d), jnp.float32)
    for h in range(n_heads):                           # static unrolled heads
        q = qkv[:, h * hd:(h + 1) * hd].astype(jnp.bfloat16)
        k = qkv[:, d + h * hd:d + (h + 1) * hd].astype(jnp.bfloat16)
        v = qkv[:, 2 * d + h * hd:2 * d + (h + 1) * hd].astype(jnp.bfloat16)
        s = jnp.einsum('qe,ke->qk', q, k,
                       preferred_element_type=jnp.float32) * scale
        s = s - jnp.max(s, axis=-1, keepdims=True)
        p = jnp.exp(s)
        p = p * pl.reciprocal(jnp.sum(p, axis=-1, keepdims=True), approx=True)
        o_h = jnp.dot(p.astype(jnp.bfloat16), v,
                      preferred_element_type=jnp.float32)               # (T, hd)
        # Fold the head output straight into W_o rows (no lane-granularity
        # concat of head outputs).
        acc = acc + jnp.dot(o_h.astype(jnp.bfloat16),
                            wo[h * hd:(h + 1) * hd, :],
                            preferred_element_type=jnp.float32)
    o_ref[0] = acc + bo_ref[...]


def mha_pallas(x_b1d, T, wqkv, bqkv, wo, bo, *, n_heads):
    B, _, D = x_b1d.shape
    return pl.pallas_call(
        functools.partial(_mha_kernel, n_heads=n_heads),
        out_shape=jax.ShapeDtypeStruct((B, T, D), jnp.float32),
        grid=(B,),
        in_specs=[pl.BlockSpec((1, 1, D), lambda b: (b, 0, 0)),
                  pl.BlockSpec((D, 3 * D), lambda b: (0, 0)),
                  pl.BlockSpec((1, 3 * D), lambda b: (0, 0)),
                  pl.BlockSpec((D, D), lambda b: (0, 0)),
                  pl.BlockSpec((1, D), lambda b: (0, 0))],
        out_specs=pl.BlockSpec((1, T, D), lambda b: (b, 0, 0)),
        compiler_params=pltpu.CompilerParams(
            dimension_semantics=("parallel",), vmem_limit_bytes=_VMEM_LIMIT),
    )(x_b1d, wqkv, bqkv.reshape(1, 3 * D), wo, bo.reshape(1, D))


def _linear_kernel(x_ref, w_ref, b_ref, o_ref):
    y = jnp.dot(x_ref[...].astype(jnp.bfloat16), w_ref[...].astype(jnp.bfloat16),
                preferred_element_type=jnp.float32)
    o_ref[...] = y + b_ref[...]


def linear_pallas(x, w, b):
    # Only used for the tiny (B, 448) @ (448, 2) classifier head.
    M, K = x.shape
    _, N = w.shape
    return pl.pallas_call(
        _linear_kernel,
        out_shape=jax.ShapeDtypeStruct((M, N), jnp.float32),
        grid=(1,),
        in_specs=[pl.BlockSpec((M, K), lambda i: (0, 0)),
                  pl.BlockSpec((K, N), lambda i: (0, 0)),
                  pl.BlockSpec((1, N), lambda i: (0, 0))],
        out_specs=pl.BlockSpec((M, N), lambda i: (0, 0)),
    )(x, w, b.reshape(1, N))


# --------------------------- parameters & forward ---------------------------

def init_params(key):
    keys = iter(jax.random.split(key, 40))

    def nrm(shape, scale=0.1):
        return scale * jax.random.normal(next(keys), shape, dtype=jnp.float32)

    params = {}
    convs = []
    in_ch = 1
    for _ in range(3):
        convs.append(dict(
            w=nrm((HIDDEN, in_ch, 3)),        # torch Conv1d weight (Cout, Cin, K)
            b=nrm((HIDDEN,), 0.05),
            gamma=1.0 + nrm((HIDDEN,), 0.05),
            beta=nrm((HIDDEN,), 0.05)))
        in_ch = HIDDEN
    params["convs"] = convs
    params["wmu"], params["bmu"] = nrm((HIDDEN, HIDDEN)), nrm((HIDDEN,), 0.05)
    params["wlv"], params["blv"] = nrm((HIDDEN, HIDDEN)), nrm((HIDDEN,), 0.05)
    params["wproj"], params["bproj"] = nrm((HIDDEN, CA_DIM)), nrm((CA_DIM,), 0.05)
    for name in ("wq", "wk", "wv", "wo"):
        params[name] = nrm((CA_DIM, CA_DIM))
    for name in ("bq", "bk", "bv", "bo"):
        params[name] = nrm((CA_DIM,), 0.05)
    tpp_dim = HIDDEN * sum(TPP_LEVELS)
    params["wfc"], params["bfc"] = nrm((tpp_dim, N_CLASSES)), nrm((N_CLASSES,), 0.05)
    return params


def stems_forward(params, x_ncl, eps):
    """x_ncl: (B, 1, T) like PyTorch Conv1d input; eps: (B, HIDDEN) noise."""
    B, _, T = x_ncl.shape
    h = jnp.transpose(x_ncl, (0, 2, 1)).astype(jnp.float32)      # (B, T, 1)

    # ---- causal dilated conv stack (conv+stats / BN+ReLU Pallas kernels) ----
    n_blocks = len(params["convs"])
    dilations = [2 ** i for i in range(n_blocks)]
    K0 = params["convs"][0]["w"].shape[-1]
    h = jnp.pad(h, ((0, 0), ((K0 - 1) * dilations[0], 0), (0, 0)))  # layer-0 pad
    for i, blk in enumerate(params["convs"]):
        d = dilations[i]
        K = blk["w"].shape[-1]
        wk = jnp.transpose(blk["w"], (2, 1, 0))                  # (K, Cin, Cout)
        y, s, sq = conv_stats_pallas(h, wk, blk["b"], dilation=d)
        last = i == n_blocks - 1
        pad_next = 0 if last else (K - 1) * dilations[i + 1]
        h = bn_relu_pallas(y, s, sq, blk["gamma"], blk["beta"],
                           count=B * T, pad_next=pad_next, pooled=last)
    pooled = h.reshape(B, HIDDEN)        # time-mean of last block (B, HIDDEN)

    # ---- variational layer + cross-attention projection (fused) ----
    wml = jnp.concatenate([params["wmu"], params["wlv"]], axis=1)   # (H, 2H)
    bml = jnp.concatenate([params["bmu"], params["blv"]])
    proj_z, kl = var_proj_pallas(pooled, wml, bml, eps,
                                 params["wproj"], params["bproj"])  # (B, CA_DIM)

    # ---- temporal (self) cross-attention over time-broadcast z ----
    wqkv = jnp.concatenate([params["wq"], params["wk"], params["wv"]], axis=1)
    bqkv = jnp.concatenate([params["bq"], params["bk"], params["bv"]])
    ca = mha_pallas(proj_z.reshape(B, 1, CA_DIM), T, wqkv, bqkv,
                    params["wo"], params["bo"], n_heads=N_HEADS)    # (B, T, D)

    # ---- temporal pyramid pooling (glue means) + classifier head ----
    feats = []
    for lvl in TPP_LEVELS:
        p = ca.reshape(B, lvl, T // lvl, CA_DIM).mean(axis=2)       # (B, lvl, D)
        feats.append(jnp.transpose(p, (0, 2, 1)).reshape(B, CA_DIM * lvl))
    tpp = jnp.concatenate(feats, axis=-1)                           # (B, D*sum)
    logits = linear_pallas(tpp, params["wfc"], params["bfc"])       # (B, 2)
    return logits, kl


if __name__ == "__main__":
    key = jax.random.PRNGKey(0)
    kp, kx, ke = jax.random.split(key, 3)
    params = init_params(kp)

    B, T = 2, 16
    x = jax.random.normal(kx, (B, 1, T), dtype=jnp.float32)      # NCL, 1 channel
    eps = jax.random.normal(ke, (B, HIDDEN), dtype=jnp.float32)  # reparam noise

    fwd = jax.jit(stems_forward)
    logits, kl = fwd(params, x, eps)
    jax.block_until_ready((logits, kl))
    assert logits.shape == (B, N_CLASSES)
    assert kl.shape == ()
    print("KERNEL_OK")
</pallas_src>

<mosaic_0001>
module attributes {stable_mosaic.version = 11 : i64} {
  func.func @_conv_stats_kernel(%arg0: i32, %arg1: memref<1x18x1xf32, #tpu.memory_space<vmem>>, %arg2: memref<3x1x64xf32, #tpu.memory_space<vmem>>, %arg3: memref<1x64xf32, #tpu.memory_space<vmem>>, %arg4: memref<1x16x64xf32, #tpu.memory_space<vmem>>, %arg5: memref<1x64xf32, #tpu.memory_space<vmem>>, %arg6: memref<1x64xf32, #tpu.memory_space<vmem>>) attributes {dimension_semantics = [#tpu.dimension_semantics<arbitrary>], iteration_bounds = array<i64: 2>, scalar_prefetch = 0 : i64, scratch_operands = 0 : i64, tpu.core_type = #tpu.core_type<tc>, window_params = [{transform_indices = @transform_0, window_bounds = array<i64: 1, 18, 1>}, {pipeline_mode = #tpu.pipeline_mode<synchronous>, transform_indices = @transform_1, window_bounds = array<i64: 3, 1, 64>}, {pipeline_mode = #tpu.pipeline_mode<synchronous>, transform_indices = @transform_2, window_bounds = array<i64: 1, 64>}, {transform_indices = @transform_3, window_bounds = array<i64: 1, 16, 64>}, {pipeline_mode = #tpu.pipeline_mode<synchronous>, transform_indices = @transform_4, window_bounds = array<i64: 1, 64>}, {pipeline_mode = #tpu.pipeline_mode<synchronous>, transform_indices = @transform_5, window_bounds = array<i64: 1, 64>}]} {
    %c0_i32 = arith.constant 0 : i32
    %0 = arith.cmpi eq, %arg0, %c0_i32 : i32
    %1 = arith.extui %0 : i1 to i32
    %c0_i32_0 = arith.constant 0 : i32
    %2 = arith.cmpi ne, %1, %c0_i32_0 : i32
    scf.if %2 {
      %cst_25 = arith.constant 0.000000e+00 : f32
      %44 = vector.broadcast %cst_25 : f32 to vector<1x64xf32>
      %c0_26 = arith.constant 0 : index
      %c0_27 = arith.constant 0 : index
      %45 = vector.load %arg5[%c0_26, %c0_27] : memref<1x64xf32, #tpu.memory_space<vmem>>, vector<1x64xf32>
      tpu.vector_store %arg5[%c0_26, %c0_27], %44 {strides = array<i32>} : memref<1x64xf32, #tpu.memory_space<vmem>>, vector<1x64xf32>,
      %cst_28 = arith.constant 0.000000e+00 : f32
      %46 = vector.broadcast %cst_28 : f32 to vector<1x64xf32>
      %c0_29 = arith.constant 0 : index
      %c0_30 = arith.constant 0 : index
      %47 = vector.load %arg6[%c0_29, %c0_30] : memref<1x64xf32, #tpu.memory_space<vmem>>, vector<1x64xf32>
      tpu.vector_store %arg6[%c0_29, %c0_30], %46 {strides = array<i32>} : memref<1x64xf32, #tpu.memory_space<vmem>>, vector<1x64xf32>,
    } else {
    }
    %c0 = arith.constant 0 : index
    %c0_1 = arith.constant 0 : index
    %c0_2 = arith.constant 0 : index
    %3 = vector.load %arg1[%c0, %c0_1, %c0_2] : memref<1x18x1xf32, #tpu.memory_space<vmem>>, vector<1x18x1xf32>
    %4 = vector.shape_cast %3 : vector<1x18x1xf32> to vector<18x1xf32>
    %cst = arith.constant 0.000000e+00 : f32
    %5 = vector.broadcast %cst : f32 to vector<16x64xf32>
    %6 = vector.extract_strided_slice %4 {offsets = [0, 0], sizes = [16, 1], strides = [1, 1]} : vector<18x1xf32> to vector<16x1xf32>
    %c0_3 = arith.constant 0 : index
    %c0_4 = arith.constant 0 : index
    %c0_5 = arith.constant 0 : index
    %7 = vector.load %arg2[%c0_3, %c0_4, %c0_5] : memref<3x1x64xf32, #tpu.memory_space<vmem>>, vector<1x1x64xf32>
    %8 = vector.shape_cast %7 : vector<1x1x64xf32> to vector<1x64xf32>
    %9 = vector.broadcast %6 : vector<16x1xf32> to vector<16x64xf32>
    %10 = vector.broadcast %8 : vector<1x64xf32> to vector<16x64xf32>
    %11 = arith.mulf %9, %10 : vector<16x64xf32>
    %12 = arith.addf %5, %11 : vector<16x64xf32>
    %13 = vector.extract_strided_slice %4 {offsets = [1, 0], sizes = [16, 1], strides = [1, 1]} : vector<18x1xf32> to vector<16x1xf32>
    %c1 = arith.constant 1 : index
    %c0_6 = arith.constant 0 : index
    %c0_7 = arith.constant 0 : index
    %14 = vector.load %arg2[%c1, %c0_6, %c0_7] : memref<3x1x64xf32, #tpu.memory_space<vmem>>, vector<1x1x64xf32>
    %15 = vector.shape_cast %14 : vector<1x1x64xf32> to vector<1x64xf32>
    %16 = vector.broadcast %13 : vector<16x1xf32> to vector<16x64xf32>
    %17 = vector.broadcast %15 : vector<1x64xf32> to vector<16x64xf32>
    %18 = arith.mulf %16, %17 : vector<16x64xf32>
    %19 = arith.addf %12, %18 : vector<16x64xf32>
    %20 = vector.extract_strided_slice %4 {offsets = [2, 0], sizes = [16, 1], strides = [1, 1]} : vector<18x1xf32> to vector<16x1xf32>
    %c2 = arith.constant 2 : index
    %c0_8 = arith.constant 0 : index
    %c0_9 = arith.constant 0 : index
    %21 = vector.load %arg2[%c2, %c0_8, %c0_9] : memref<3x1x64xf32, #tpu.memory_space<vmem>>, vector<1x1x64xf32>
    %22 = vector.shape_cast %21 : vector<1x1x64xf32> to vector<1x64xf32>
    %23 = vector.broadcast %20 : vector<16x1xf32> to vector<16x64xf32>
    %24 = vector.broadcast %22 : vector<1x64xf32> to vector<16x64xf32>
    %25 = arith.mulf %23, %24 : vector<16x64xf32>
    %26 = arith.addf %19, %25 : vector<16x64xf32>
    %c0_10 = arith.constant 0 : index
    %c0_11 = arith.constant 0 : index
    %27 = vector.load %arg3[%c0_10, %c0_11] : memref<1x64xf32, #tpu.memory_space<vmem>>, vector<1x64xf32>
    %28 = vector.broadcast %27 : vector<1x64xf32> to vector<16x64xf32>
    %29 = arith.addf %26, %28 : vector<16x64xf32>
    %c0_12 = arith.constant 0 : index
    %c0_13 = arith.constant 0 : index
    %c0_14 = arith.constant 0 : index
    %30 = vector.load %arg4[%c0_12, %c0_13, %c0_14] : memref<1x16x64xf32, #tpu.memory_space<vmem>>, vector<1x16x64xf32>
    %31 = vector.shape_cast %30 : vector<1x16x64xf32> to vector<16x64xf32>
    %32 = vector.shape_cast %29 : vector<16x64xf32> to vector<1x16x64xf32>
    tpu.vector_store %arg4[%c0_12, %c0_13, %c0_14], %32 {strides = array<i32>} : memref<1x16x64xf32, #tpu.memory_space<vmem>>, vector<1x16x64xf32>,
    %c0_15 = arith.constant 0 : index
    %c0_16 = arith.constant 0 : index
    %33 = vector.load %arg5[%c0_15, %c0_16] : memref<1x64xf32, #tpu.memory_space<vmem>>, vector<1x64xf32>
    %cst_17 = arith.constant dense<0.000000e+00> : vector<64xf32>
    %34 = vector.multi_reduction <add>, %29, %cst_17 [0] : vector<16x64xf32> to vector<64xf32>
    %35 = vector.shape_cast %34 : vector<64xf32> to vector<1x64xf32>
    %36 = arith.addf %33, %35 : vector<1x64xf32>
    %c0_18 = arith.constant 0 : index
    %c0_19 = arith.constant 0 : index
    %37 = vector.load %arg5[%c0_18, %c0_19] : memref<1x64xf32, #tpu.memory_space<vmem>>, vector<1x64xf32>
    tpu.vector_store %arg5[%c0_18, %c0_19], %36 {strides = array<i32>} : memref<1x64xf32, #tpu.memory_space<vmem>>, vector<1x64xf32>,
    %c0_20 = arith.constant 0 : index
    %c0_21 = arith.constant 0 : index
    %38 = vector.load %arg6[%c0_20, %c0_21] : memref<1x64xf32, #tpu.memory_space<vmem>>, vector<1x64xf32>
    %39 = arith.mulf %29, %29 : vector<16x64xf32>
    %cst_22 = arith.constant dense<0.000000e+00> : vector<64xf32>
    %40 = vector.multi_reduction <add>, %39, %cst_22 [0] : vector<16x64xf32> to vector<64xf32>
    %41 = vector.shape_cast %40 : vector<64xf32> to vector<1x64xf32>
    %42 = arith.addf %38, %41 : vector<1x64xf32>
    %c0_23 = arith.constant 0 : index
    %c0_24 = arith.constant 0 : index
    %43 = vector.load %arg6[%c0_23, %c0_24] : memref<1x64xf32, #tpu.memory_space<vmem>>, vector<1x64xf32>
    tpu.vector_store %arg6[%c0_23, %c0_24], %42 {strides = array<i32>} : memref<1x64xf32, #tpu.memory_space<vmem>>, vector<1x64xf32>,
    return
  }
  func.func @transform_0(%arg0: i32) -> (i32, i32, i32) {
    %c0_i32 = arith.constant 0 : i32
    %c0_i32_0 = arith.constant 0 : i32
    %c0_i32_1 = arith.constant 0 : i32
    return %arg0, %c0_i32, %c0_i32_0 : i32, i32, i32
  }
  func.func @transform_1(%arg0: i32) -> (i32, i32, i32) {
    %c0_i32 = arith.constant 0 : i32
    %c0_i32_0 = arith.constant 0 : i32
    %c0_i32_1 = arith.constant 0 : i32
    %c0_i32_2 = arith.constant 0 : i32
    return %c0_i32, %c0_i32_0, %c0_i32_1 : i32, i32, i32
  }
  func.func @transform_2(%arg0: i32) -> (i32, i32) {
    %c0_i32 = arith.constant 0 : i32
    %c0_i32_0 = arith.constant 0 : i32
    %c0_i32_1 = arith.constant 0 : i32
    return %c0_i32, %c0_i32_0 : i32, i32
  }
  func.func @transform_3(%arg0: i32) -> (i32, i32, i32) {
    %c0_i32 = arith.constant 0 : i32
    %c0_i32_0 = arith.constant 0 : i32
    %c0_i32_1 = arith.constant 0 : i32
    return %arg0, %c0_i32, %c0_i32_0 : i32, i32, i32
  }
  func.func @transform_4(%arg0: i32) -> (i32, i32) {
    %c0_i32 = arith.constant 0 : i32
    %c0_i32_0 = arith.constant 0 : i32
    %c0_i32_1 = arith.constant 0 : i32
    return %c0_i32, %c0_i32_0 : i32, i32
  }
  func.func @transform_5(%arg0: i32) -> (i32, i32) {
    %c0_i32 = arith.constant 0 : i32
    %c0_i32_0 = arith.constant 0 : i32
    %c0_i32_1 = arith.constant 0 : i32
    return %c0_i32, %c0_i32_0 : i32, i32
  }
}

module attributes {stable_mosaic.version = 11 : i64} {
  func.func @_bn_relu_kernel(%arg0: i32, %arg1: memref<1x16x64xf32, #tpu.memory_space<vmem>>, %arg2: memref<1x64xf32, #tpu.memory_space<vmem>>, %arg3: memref<1x64xf32, #tpu.memory_space<vmem>>, %arg4: memref<1x64xf32, #tpu.memory_space<vmem>>, %arg5: memref<1x64xf32, #tpu.memory_space<vmem>>, %arg6: memref<1x20x64xf32, #tpu.memory_space<vmem>>) attributes {dimension_semantics = [#tpu.dimension_semantics<parallel>], iteration_bounds = array<i64: 2>, scalar_prefetch = 0 : i64, scratch_operands = 0 : i64, tpu.core_type = #tpu.core_type<tc>, window_params = [{transform_indices = @transform_0, window_bounds = array<i64: 1, 16, 64>}, {pipeline_mode = #tpu.pipeline_mode<synchronous>, transform_indices = @transform_1, window_bounds = array<i64: 1, 64>}, {pipeline_mode = #tpu.pipeline_mode<synchronous>, transform_indices = @transform_2, window_bounds = array<i64: 1, 64>}, {pipeline_mode = #tpu.pipeline_mode<synchronous>, transform_indices = @transform_3, window_bounds = array<i64: 1, 64>}, {pipeline_mode = #tpu.pipeline_mode<synchronous>, transform_indices = @transform_4, window_bounds = array<i64: 1, 64>}, {transform_indices = @transform_5, window_bounds = array<i64: 1, 20, 64>}]} {
    %c0 = arith.constant 0 : index
    %c0_0 = arith.constant 0 : index
    %0 = vector.load %arg2[%c0, %c0_0] : memref<1x64xf32, #tpu.memory_space<vmem>>, vector<1x64xf32>
    %cst = arith.constant 3.125000e-02 : f32
    %1 = vector.broadcast %cst : f32 to vector<1x64xf32>
    %2 = arith.mulf %0, %1 : vector<1x64xf32>
    %c0_1 = arith.constant 0 : index
    %c0_2 = arith.constant 0 : index
    %3 = vector.load %arg3[%c0_1, %c0_2] : memref<1x64xf32, #tpu.memory_space<vmem>>, vector<1x64xf32>
    %cst_3 = arith.constant 3.125000e-02 : f32
    %4 = vector.broadcast %cst_3 : f32 to vector<1x64xf32>
    %5 = arith.mulf %3, %4 : vector<1x64xf32>
    %6 = arith.mulf %2, %2 : vector<1x64xf32>
    %7 = arith.subf %5, %6 : vector<1x64xf32>
    %cst_4 = arith.constant 9.99999974E-6 : f32
    %8 = vector.broadcast %cst_4 : f32 to vector<1x64xf32>
    %9 = arith.addf %7, %8 : vector<1x64xf32>
    %10 = math.rsqrt %9 : vector<1x64xf32>
    %c0_5 = arith.constant 0 : index
    %c0_6 = arith.constant 0 : index
    %11 = vector.load %arg4[%c0_5, %c0_6] : memref<1x64xf32, #tpu.memory_space<vmem>>, vector<1x64xf32>
    %12 = arith.mulf %10, %11 : vector<1x64xf32>
    %c0_7 = arith.constant 0 : index
    %c0_8 = arith.constant 0 : index
    %13 = vector.load %arg5[%c0_7, %c0_8] : memref<1x64xf32, #tpu.memory_space<vmem>>, vector<1x64xf32>
    %14 = arith.mulf %2, %12 : vector<1x64xf32>
    %15 = arith.subf %13, %14 : vector<1x64xf32>
    %c0_9 = arith.constant 0 : index
    %c0_10 = arith.constant 0 : index
    %c0_11 = arith.constant 0 : index
    %16 = vector.load %arg1[%c0_9, %c0_10, %c0_11] : memref<1x16x64xf32, #tpu.memory_space<vmem>>, vector<1x16x64xf32>
    %17 = vector.shape_cast %16 : vector<1x16x64xf32> to vector<16x64xf32>
    %18 = vector.broadcast %12 : vector<1x64xf32> to vector<16x64xf32>
    %19 = arith.mulf %17, %18 : vector<16x64xf32>
    %20 = vector.broadcast %15 : vector<1x64xf32> to vector<16x64xf32>
    %21 = arith.addf %19, %20 : vector<16x64xf32>
    %cst_12 = arith.constant 0.000000e+00 : f32
    %22 = vector.broadcast %cst_12 : f32 to vector<16x64xf32>
    %23 = arith.maximumf %21, %22 : vector<16x64xf32>
    %cst_13 = arith.constant 0.000000e+00 : f32
    %24 = vector.broadcast %cst_13 : f32 to vector<4x64xf32>
    %25 = tpu.concatenate %24, %23 in 0 : vector<4x64xf32>, vector<16x64xf32> -> vector<20x64xf32>
    %c0_14 = arith.constant 0 : index
    %c0_15 = arith.constant 0 : index
    %c0_16 = arith.constant 0 : index
    %26 = vector.load %arg6[%c0_14, %c0_15, %c0_16] : memref<1x20x64xf32, #tpu.memory_space<vmem>>, vector<1x20x64xf32>
    %27 = vector.shape_cast %26 : vector<1x20x64xf32> to vector<20x64xf32>
    %28 = vector.shape_cast %25 : vector<20x64xf32> to vector<1x20x64xf32>
    tpu.vector_store %arg6[%c0_14, %c0_15, %c0_16], %28 {strides = array<i32>} : memref<1x20x64xf32, #tpu.memory_space<vmem>>, vector<1x20x64xf32>,
    return
  }
  func.func @transform_0(%arg0: i32) -> (i32, i32, i32) {
    %c0_i32 = arith.constant 0 : i32
    %c0_i32_0 = arith.constant 0 : i32
    %c0_i32_1 = arith.constant 0 : i32
    return %arg0, %c0_i32, %c0_i32_0 : i32, i32, i32
  }
  func.func @transform_1(%arg0: i32) -> (i32, i32) {
    %c0_i32 = arith.constant 0 : i32
    %c0_i32_0 = arith.constant 0 : i32
    %c0_i32_1 = arith.constant 0 : i32
    return %c0_i32, %c0_i32_0 : i32, i32
  }
  func.func @transform_2(%arg0: i32) -> (i32, i32) {
    %c0_i32 = arith.constant 0 : i32
    %c0_i32_0 = arith.constant 0 : i32
    %c0_i32_1 = arith.constant 0 : i32
    return %c0_i32, %c0_i32_0 : i32, i32
  }
  func.func @transform_3(%arg0: i32) -> (i32, i32) {
    %c0_i32 = arith.constant 0 : i32
    %c0_i32_0 = arith.constant 0 : i32
    %c0_i32_1 = arith.constant 0 : i32
    return %c0_i32, %c0_i32_0 : i32, i32
  }
  func.func @transform_4(%arg0: i32) -> (i32, i32) {
    %c0_i32 = arith.constant 0 : i32
    %c0_i32_0 = arith.constant 0 : i32
    %c0_i32_1 = arith.constant 0 : i32
    return %c0_i32, %c0_i32_0 : i32, i32
  }
  func.func @transform_5(%arg0: i32) -> (i32, i32, i32) {
    %c0_i32 = arith.constant 0 : i32
    %c0_i32_0 = arith.constant 0 : i32
    %c0_i32_1 = arith.constant 0 : i32
    return %arg0, %c0_i32, %c0_i32_0 : i32, i32, i32
  }
}

module attributes {stable_mosaic.version = 11 : i64} {
  func.func @_conv_stats_kernel(%arg0: i32, %arg1: memref<1x20x64xf32, #tpu.memory_space<vmem>>, %arg2: memref<3x64x64xf32, #tpu.memory_space<vmem>>, %arg3: memref<1x64xf32, #tpu.memory_space<vmem>>, %arg4: memref<1x16x64xf32, #tpu.memory_space<vmem>>, %arg5: memref<1x64xf32, #tpu.memory_space<vmem>>, %arg6: memref<1x64xf32, #tpu.memory_space<vmem>>) attributes {dimension_semantics = [#tpu.dimension_semantics<arbitrary>], iteration_bounds = array<i64: 2>, scalar_prefetch = 0 : i64, scratch_operands = 0 : i64, tpu.core_type = #tpu.core_type<tc>, window_params = [{transform_indices = @transform_0, window_bounds = array<i64: 1, 20, 64>}, {pipeline_mode = #tpu.pipeline_mode<synchronous>, transform_indices = @transform_1, window_bounds = array<i64: 3, 64, 64>}, {pipeline_mode = #tpu.pipeline_mode<synchronous>, transform_indices = @transform_2, window_bounds = array<i64: 1, 64>}, {transform_indices = @transform_3, window_bounds = array<i64: 1, 16, 64>}, {pipeline_mode = #tpu.pipeline_mode<synchronous>, transform_indices = @transform_4, window_bounds = array<i64: 1, 64>}, {pipeline_mode = #tpu.pipeline_mode<synchronous>, transform_indices = @transform_5, window_bounds = array<i64: 1, 64>}]} {
    %c0_i32 = arith.constant 0 : i32
    %0 = arith.cmpi eq, %arg0, %c0_i32 : i32
    %1 = arith.extui %0 : i1 to i32
    %c0_i32_0 = arith.constant 0 : i32
    %2 = arith.cmpi ne, %1, %c0_i32_0 : i32
    scf.if %2 {
      %cst_24 = arith.constant 0.000000e+00 : f32
      %41 = vector.broadcast %cst_24 : f32 to vector<1x64xf32>
      %c0_25 = arith.constant 0 : index
      %c0_26 = arith.constant 0 : index
      %42 = vector.load %arg5[%c0_25, %c0_26] : memref<1x64xf32, #tpu.memory_space<vmem>>, vector<1x64xf32>
      tpu.vector_store %arg5[%c0_25, %c0_26], %41 {strides = array<i32>} : memref<1x64xf32, #tpu.memory_space<vmem>>, vector<1x64xf32>,
      %cst_27 = arith.constant 0.000000e+00 : f32
      %43 = vector.broadcast %cst_27 : f32 to vector<1x64xf32>
      %c0_28 = arith.constant 0 : index
      %c0_29 = arith.constant 0 : index
      %44 = vector.load %arg6[%c0_28, %c0_29] : memref<1x64xf32, #tpu.memory_space<vmem>>, vector<1x64xf32>
      tpu.vector_store %arg6[%c0_28, %c0_29], %43 {strides = array<i32>} : memref<1x64xf32, #tpu.memory_space<vmem>>, vector<1x64xf32>,
    } else {
    }
    %c0 = arith.constant 0 : index
    %c0_1 = arith.constant 0 : index
    %c0_2 = arith.constant 0 : index
    %3 = vector.load %arg1[%c0, %c0_1, %c0_2] : memref<1x20x64xf32, #tpu.memory_space<vmem>>, vector<1x20x64xf32>
    %4 = vector.shape_cast %3 : vector<1x20x64xf32> to vector<20x64xf32>
    %cst = arith.constant 0.000000e+00 : f32
    %5 = vector.broadcast %cst : f32 to vector<16x64xf32>
    %6 = arith.truncf %4 : vector<20x64xf32> to vector<20x64xbf16>
    %c0_3 = arith.constant 0 : index
    %c0_4 = arith.constant 0 : index
    %c0_5 = arith.constant 0 : index
    %7 = vector.load %arg2[%c0_3, %c0_4, %c0_5] : memref<3x64x64xf32, #tpu.memory_space<vmem>>, vector<3x64x64xf32>
    %8 = arith.truncf %7 : vector<3x64x64xf32> to vector<3x64x64xbf16>
    %9 = vector.extract_strided_slice %6 {offsets = [0, 0], sizes = [16, 64], strides = [1, 1]} : vector<20x64xbf16> to vector<16x64xbf16>
    %10 = vector.extract_strided_slice %8 {offsets = [0, 0, 0], sizes = [1, 64, 64], strides = [1, 1, 1]} : vector<3x64x64xbf16> to vector<1x64x64xbf16>
    %11 = vector.shape_cast %10 : vector<1x64x64xbf16> to vector<64x64xbf16>
    %cst_6 = arith.constant dense<0.000000e+00> : vector<16x64xf32>
    %12 = tpu.matmul %9, %11, %cst_6 {dimension_numbers = #tpu.dot_dimension_numbers<[1], [0], [0], [1], [0, 0, 1, 1], [], []>} : vector<16x64xbf16>, vector<64x64xbf16>, vector<16x64xf32> -> vector<16x64xf32>
    %13 = arith.addf %5, %12 : vector<16x64xf32>
    %14 = vector.extract_strided_slice %6 {offsets = [2, 0], sizes = [16, 64], strides = [1, 1]} : vector<20x64xbf16> to vector<16x64xbf16>
    %15 = vector.extract_strided_slice %8 {offsets = [1, 0, 0], sizes = [1, 64, 64], strides = [1, 1, 1]} : vector<3x64x64xbf16> to vector<1x64x64xbf16>
    %16 = vector.shape_cast %15 : vector<1x64x64xbf16> to vector<64x64xbf16>
    %cst_7 = arith.constant dense<0.000000e+00> : vector<16x64xf32>
    %17 = tpu.matmul %14, %16, %cst_7 {dimension_numbers = #tpu.dot_dimension_numbers<[1], [0], [0], [1], [0, 0, 1, 1], [], []>} : vector<16x64xbf16>, vector<64x64xbf16>, vector<16x64xf32> -> vector<16x64xf32>
    %18 = arith.addf %13, %17 : vector<16x64xf32>
    %19 = vector.extract_strided_slice %6 {offsets = [4, 0], sizes = [16, 64], strides = [1, 1]} : vector<20x64xbf16> to vector<16x64xbf16>
    %20 = vector.extract_strided_slice %8 {offsets = [2, 0, 0], sizes = [1, 64, 64], strides = [1, 1, 1]} : vector<3x64x64xbf16> to vector<1x64x64xbf16>
    %21 = vector.shape_cast %20 : vector<1x64x64xbf16> to vector<64x64xbf16>
    %cst_8 = arith.constant dense<0.000000e+00> : vector<16x64xf32>
    %22 = tpu.matmul %19, %21, %cst_8 {dimension_numbers = #tpu.dot_dimension_numbers<[1], [0], [0], [1], [0, 0, 1, 1], [], []>} : vector<16x64xbf16>, vector<64x64xbf16>, vector<16x64xf32> -> vector<16x64xf32>
    %23 = arith.addf %18, %22 : vector<16x64xf32>
    %c0_9 = arith.constant 0 : index
    %c0_10 = arith.constant 0 : index
    %24 = vector.load %arg3[%c0_9, %c0_10] : memref<1x64xf32, #tpu.memory_space<vmem>>, vector<1x64xf32>
    %25 = vector.broadcast %24 : vector<1x64xf32> to vector<16x64xf32>
    %26 = arith.addf %23, %25 : vector<16x64xf32>
    %c0_11 = arith.constant 0 : index
    %c0_12 = arith.constant 0 : index
    %c0_13 = arith.constant 0 : index
    %27 = vector.load %arg4[%c0_11, %c0_12, %c0_13] : memref<1x16x64xf32, #tpu.memory_space<vmem>>, vector<1x16x64xf32>
    %28 = vector.shape_cast %27 : vector<1x16x64xf32> to vector<16x64xf32>
    %29 = vector.shape_cast %26 : vector<16x64xf32> to vector<1x16x64xf32>
    tpu.vector_store %arg4[%c0_11, %c0_12, %c0_13], %29 {strides = array<i32>} : memref<1x16x64xf32, #tpu.memory_space<vmem>>, vector<1x16x64xf32>,
    %c0_14 = arith.constant 0 : index
    %c0_15 = arith.constant 0 : index
    %30 = vector.load %arg5[%c0_14, %c0_15] : memref<1x64xf32, #tpu.memory_space<vmem>>, vector<1x64xf32>
    %cst_16 = arith.constant dense<0.000000e+00> : vector<64xf32>
    %31 = vector.multi_reduction <add>, %26, %cst_16 [0] : vector<16x64xf32> to vector<64xf32>
    %32 = vector.shape_cast %31 : vector<64xf32> to vector<1x64xf32>
    %33 = arith.addf %30, %32 : vector<1x64xf32>
    %c0_17 = arith.constant 0 : index
    %c0_18 = arith.constant 0 : index
    %34 = vector.load %arg5[%c0_17, %c0_18] : memref<1x64xf32, #tpu.memory_space<vmem>>, vector<1x64xf32>
    tpu.vector_store %arg5[%c0_17, %c0_18], %33 {strides = array<i32>} : memref<1x64xf32, #tpu.memory_space<vmem>>, vector<1x64xf32>,
    %c0_19 = arith.constant 0 : index
    %c0_20 = arith.constant 0 : index
    %35 = vector.load %arg6[%c0_19, %c0_20] : memref<1x64xf32, #tpu.memory_space<vmem>>, vector<1x64xf32>
    %36 = arith.mulf %26, %26 : vector<16x64xf32>
    %cst_21 = arith.constant dense<0.000000e+00> : vector<64xf32>
    %37 = vector.multi_reduction <add>, %36, %cst_21 [0] : vector<16x64xf32> to vector<64xf32>
    %38 = vector.shape_cast %37 : vector<64xf32> to vector<1x64xf32>
    %39 = arith.addf %35, %38 : vector<1x64xf32>
    %c0_22 = arith.constant 0 : index
    %c0_23 = arith.constant 0 : index
    %40 = vector.load %arg6[%c0_22, %c0_23] : memref<1x64xf32, #tpu.memory_space<vmem>>, vector<1x64xf32>
    tpu.vector_store %arg6[%c0_22, %c0_23], %39 {strides = array<i32>} : memref<1x64xf32, #tpu.memory_space<vmem>>, vector<1x64xf32>,
    return
  }
  func.func @transform_0(%arg0: i32) -> (i32, i32, i32) {
    %c0_i32 = arith.constant 0 : i32
    %c0_i32_0 = arith.constant 0 : i32
    %c0_i32_1 = arith.constant 0 : i32
    return %arg0, %c0_i32, %c0_i32_0 : i32, i32, i32
  }
  func.func @transform_1(%arg0: i32) -> (i32, i32, i32) {
    %c0_i32 = arith.constant 0 : i32
    %c0_i32_0 = arith.constant 0 : i32
    %c0_i32_1 = arith.constant 0 : i32
    %c0_i32_2 = arith.constant 0 : i32
    return %c0_i32, %c0_i32_0, %c0_i32_1 : i32, i32, i32
  }
  func.func @transform_2(%arg0: i32) -> (i32, i32) {
    %c0_i32 = arith.constant 0 : i32
    %c0_i32_0 = arith.constant 0 : i32
    %c0_i32_1 = arith.constant 0 : i32
    return %c0_i32, %c0_i32_0 : i32, i32
  }
  func.func @transform_3(%arg0: i32) -> (i32, i32, i32) {
    %c0_i32 = arith.constant 0 : i32
    %c0_i32_0 = arith.constant 0 : i32
    %c0_i32_1 = arith.constant 0 : i32
    return %arg0, %c0_i32, %c0_i32_0 : i32, i32, i32
  }
  func.func @transform_4(%arg0: i32) -> (i32, i32) {
    %c0_i32 = arith.constant 0 : i32
    %c0_i32_0 = arith.constant 0 : i32
    %c0_i32_1 = arith.constant 0 : i32
    return %c0_i32, %c0_i32_0 : i32, i32
  }
  func.func @transform_5(%arg0: i32) -> (i32, i32) {
    %c0_i32 = arith.constant 0 : i32
    %c0_i32_0 = arith.constant 0 : i32
    %c0_i32_1 = arith.constant 0 : i32
    return %c0_i32, %c0_i32_0 : i32, i32
  }
}

module attributes {stable_mosaic.version = 11 : i64} {
  func.func @_bn_relu_kernel(%arg0: i32, %arg1: memref<1x16x64xf32, #tpu.memory_space<vmem>>, %arg2: memref<1x64xf32, #tpu.memory_space<vmem>>, %arg3: memref<1x64xf32, #tpu.memory_space<vmem>>, %arg4: memref<1x64xf32, #tpu.memory_space<vmem>>, %arg5: memref<1x64xf32, #tpu.memory_space<vmem>>, %arg6: memref<1x24x64xf32, #tpu.memory_space<vmem>>) attributes {dimension_semantics = [#tpu.dimension_semantics<parallel>], iteration_bounds = array<i64: 2>, scalar_prefetch = 0 : i64, scratch_operands = 0 : i64, tpu.core_type = #tpu.core_type<tc>, window_params = [{transform_indices = @transform_0, window_bounds = array<i64: 1, 16, 64>}, {pipeline_mode = #tpu.pipeline_mode<synchronous>, transform_indices = @transform_1, window_bounds = array<i64: 1, 64>}, {pipeline_mode = #tpu.pipeline_mode<synchronous>, transform_indices = @transform_2, window_bounds = array<i64: 1, 64>}, {pipeline_mode = #tpu.pipeline_mode<synchronous>, transform_indices = @transform_3, window_bounds = array<i64: 1, 64>}, {pipeline_mode = #tpu.pipeline_mode<synchronous>, transform_indices = @transform_4, window_bounds = array<i64: 1, 64>}, {transform_indices = @transform_5, window_bounds = array<i64: 1, 24, 64>}]} {
    %c0 = arith.constant 0 : index
    %c0_0 = arith.constant 0 : index
    %0 = vector.load %arg2[%c0, %c0_0] : memref<1x64xf32, #tpu.memory_space<vmem>>, vector<1x64xf32>
    %cst = arith.constant 3.125000e-02 : f32
    %1 = vector.broadcast %cst : f32 to vector<1x64xf32>
    %2 = arith.mulf %0, %1 : vector<1x64xf32>
    %c0_1 = arith.constant 0 : index
    %c0_2 = arith.constant 0 : index
    %3 = vector.load %arg3[%c0_1, %c0_2] : memref<1x64xf32, #tpu.memory_space<vmem>>, vector<1x64xf32>
    %cst_3 = arith.constant 3.125000e-02 : f32
    %4 = vector.broadcast %cst_3 : f32 to vector<1x64xf32>
    %5 = arith.mulf %3, %4 : vector<1x64xf32>
    %6 = arith.mulf %2, %2 : vector<1x64xf32>
    %7 = arith.subf %5, %6 : vector<1x64xf32>
    %cst_4 = arith.constant 9.99999974E-6 : f32
    %8 = vector.broadcast %cst_4 : f32 to vector<1x64xf32>
    %9 = arith.addf %7, %8 : vector<1x64xf32>
    %10 = math.rsqrt %9 : vector<1x64xf32>
    %c0_5 = arith.constant 0 : index
    %c0_6 = arith.constant 0 : index
    %11 = vector.load %arg4[%c0_5, %c0_6] : memref<1x64xf32, #tpu.memory_space<vmem>>, vector<1x64xf32>
    %12 = arith.mulf %10, %11 : vector<1x64xf32>
    %c0_7 = arith.constant 0 : index
    %c0_8 = arith.constant 0 : index
    %13 = vector.load %arg5[%c0_7, %c0_8] : memref<1x64xf32, #tpu.memory_space<vmem>>, vector<1x64xf32>
    %14 = arith.mulf %2, %12 : vector<1x64xf32>
    %15 = arith.subf %13, %14 : vector<1x64xf32>
    %c0_9 = arith.constant 0 : index
    %c0_10 = arith.constant 0 : index
    %c0_11 = arith.constant 0 : index
    %16 = vector.load %arg1[%c0_9, %c0_10, %c0_11] : memref<1x16x64xf32, #tpu.memory_space<vmem>>, vector<1x16x64xf32>
    %17 = vector.shape_cast %16 : vector<1x16x64xf32> to vector<16x64xf32>
    %18 = vector.broadcast %12 : vector<1x64xf32> to vector<16x64xf32>
    %19 = arith.mulf %17, %18 : vector<16x64xf32>
    %20 = vector.broadcast %15 : vector<1x64xf32> to vector<16x64xf32>
    %21 = arith.addf %19, %20 : vector<16x64xf32>
    %cst_12 = arith.constant 0.000000e+00 : f32
    %22 = vector.broadcast %cst_12 : f32 to vector<16x64xf32>
    %23 = arith.maximumf %21, %22 : vector<16x64xf32>
    %cst_13 = arith.constant 0.000000e+00 : f32
    %24 = vector.broadcast %cst_13 : f32 to vector<8x64xf32>
    %25 = tpu.concatenate %24, %23 in 0 : vector<8x64xf32>, vector<16x64xf32> -> vector<24x64xf32>
    %c0_14 = arith.constant 0 : index
    %c0_15 = arith.constant 0 : index
    %c0_16 = arith.constant 0 : index
    %26 = vector.load %arg6[%c0_14, %c0_15, %c0_16] : memref<1x24x64xf32, #tpu.memory_space<vmem>>, vector<1x24x64xf32>
    %27 = vector.shape_cast %26 : vector<1x24x64xf32> to vector<24x64xf32>
    %28 = vector.shape_cast %25 : vector<24x64xf32> to vector<1x24x64xf32>
    tpu.vector_store %arg6[%c0_14, %c0_15, %c0_16], %28 {strides = array<i32>} : memref<1x24x64xf32, #tpu.memory_space<vmem>>, vector<1x24x64xf32>,
    return
  }
  func.func @transform_0(%arg0: i32) -> (i32, i32, i32) {
    %c0_i32 = arith.constant 0 : i32
    %c0_i32_0 = arith.constant 0 : i32
    %c0_i32_1 = arith.constant 0 : i32
    return %arg0, %c0_i32, %c0_i32_0 : i32, i32, i32
  }
  func.func @transform_1(%arg0: i32) -> (i32, i32) {
    %c0_i32 = arith.constant 0 : i32
    %c0_i32_0 = arith.constant 0 : i32
    %c0_i32_1 = arith.constant 0 : i32
    return %c0_i32, %c0_i32_0 : i32, i32
  }
  func.func @transform_2(%arg0: i32) -> (i32, i32) {
    %c0_i32 = arith.constant 0 : i32
    %c0_i32_0 = arith.constant 0 : i32
    %c0_i32_1 = arith.constant 0 : i32
    return %c0_i32, %c0_i32_0 : i32, i32
  }
  func.func @transform_3(%arg0: i32) -> (i32, i32) {
    %c0_i32 = arith.constant 0 : i32
    %c0_i32_0 = arith.constant 0 : i32
    %c0_i32_1 = arith.constant 0 : i32
    return %c0_i32, %c0_i32_0 : i32, i32
  }
  func.func @transform_4(%arg0: i32) -> (i32, i32) {
    %c0_i32 = arith.constant 0 : i32
    %c0_i32_0 = arith.constant 0 : i32
    %c0_i32_1 = arith.constant 0 : i32
    return %c0_i32, %c0_i32_0 : i32, i32
  }
  func.func @transform_5(%arg0: i32) -> (i32, i32, i32) {
    %c0_i32 = arith.constant 0 : i32
    %c0_i32_0 = arith.constant 0 : i32
    %c0_i32_1 = arith.constant 0 : i32
    return %arg0, %c0_i32, %c0_i32_0 : i32, i32, i32
  }
}

module attributes {stable_mosaic.version = 11 : i64} {
  func.func @_conv_stats_kernel(%arg0: i32, %arg1: memref<1x24x64xf32, #tpu.memory_space<vmem>>, %arg2: memref<3x64x64xf32, #tpu.memory_space<vmem>>, %arg3: memref<1x64xf32, #tpu.memory_space<vmem>>, %arg4: memref<1x16x64xf32, #tpu.memory_space<vmem>>, %arg5: memref<1x64xf32, #tpu.memory_space<vmem>>, %arg6: memref<1x64xf32, #tpu.memory_space<vmem>>) attributes {dimension_semantics = [#tpu.dimension_semantics<arbitrary>], iteration_bounds = array<i64: 2>, scalar_prefetch = 0 : i64, scratch_operands = 0 : i64, tpu.core_type = #tpu.core_type<tc>, window_params = [{transform_indices = @transform_0, window_bounds = array<i64: 1, 24, 64>}, {pipeline_mode = #tpu.pipeline_mode<synchronous>, transform_indices = @transform_1, window_bounds = array<i64: 3, 64, 64>}, {pipeline_mode = #tpu.pipeline_mode<synchronous>, transform_indices = @transform_2, window_bounds = array<i64: 1, 64>}, {transform_indices = @transform_3, window_bounds = array<i64: 1, 16, 64>}, {pipeline_mode = #tpu.pipeline_mode<synchronous>, transform_indices = @transform_4, window_bounds = array<i64: 1, 64>}, {pipeline_mode = #tpu.pipeline_mode<synchronous>, transform_indices = @transform_5, window_bounds = array<i64: 1, 64>}]} {
    %c0_i32 = arith.constant 0 : i32
    %0 = arith.cmpi eq, %arg0, %c0_i32 : i32
    %1 = arith.extui %0 : i1 to i32
    %c0_i32_0 = arith.constant 0 : i32
    %2 = arith.cmpi ne, %1, %c0_i32_0 : i32
    scf.if %2 {
      %cst_24 = arith.constant 0.000000e+00 : f32
      %41 = vector.broadcast %cst_24 : f32 to vector<1x64xf32>
      %c0_25 = arith.constant 0 : index
      %c0_26 = arith.constant 0 : index
      %42 = vector.load %arg5[%c0_25, %c0_26] : memref<1x64xf32, #tpu.memory_space<vmem>>, vector<1x64xf32>
      tpu.vector_store %arg5[%c0_25, %c0_26], %41 {strides = array<i32>} : memref<1x64xf32, #tpu.memory_space<vmem>>, vector<1x64xf32>,
      %cst_27 = arith.constant 0.000000e+00 : f32
      %43 = vector.broadcast %cst_27 : f32 to vector<1x64xf32>
      %c0_28 = arith.constant 0 : index
      %c0_29 = arith.constant 0 : index
      %44 = vector.load %arg6[%c0_28, %c0_29] : memref<1x64xf32, #tpu.memory_space<vmem>>, vector<1x64xf32>
      tpu.vector_store %arg6[%c0_28, %c0_29], %43 {strides = array<i32>} : memref<1x64xf32, #tpu.memory_space<vmem>>, vector<1x64xf32>,
    } else {
    }
    %c0 = arith.constant 0 : index
    %c0_1 = arith.constant 0 : index
    %c0_2 = arith.constant 0 : index
    %3 = vector.load %arg1[%c0, %c0_1, %c0_2] : memref<1x24x64xf32, #tpu.memory_space<vmem>>, vector<1x24x64xf32>
    %4 = vector.shape_cast %3 : vector<1x24x64xf32> to vector<24x64xf32>
    %cst = arith.constant 0.000000e+00 : f32
    %5 = vector.broadcast %cst : f32 to vector<16x64xf32>
    %6 = arith.truncf %4 : vector<24x64xf32> to vector<24x64xbf16>
    %c0_3 = arith.constant 0 : index
    %c0_4 = arith.constant 0 : index
    %c0_5 = arith.constant 0 : index
    %7 = vector.load %arg2[%c0_3, %c0_4, %c0_5] : memref<3x64x64xf32, #tpu.memory_space<vmem>>, vector<3x64x64xf32>
    %8 = arith.truncf %7 : vector<3x64x64xf32> to vector<3x64x64xbf16>
    %9 = vector.extract_strided_slice %6 {offsets = [0, 0], sizes = [16, 64], strides = [1, 1]} : vector<24x64xbf16> to vector<16x64xbf16>
    %10 = vector.extract_strided_slice %8 {offsets = [0, 0, 0], sizes = [1, 64, 64], strides = [1, 1, 1]} : vector<3x64x64xbf16> to vector<1x64x64xbf16>
    %11 = vector.shape_cast %10 : vector<1x64x64xbf16> to vector<64x64xbf16>
    %cst_6 = arith.constant dense<0.000000e+00> : vector<16x64xf32>
    %12 = tpu.matmul %9, %11, %cst_6 {dimension_numbers = #tpu.dot_dimension_numbers<[1], [0], [0], [1], [0, 0, 1, 1], [], []>} : vector<16x64xbf16>, vector<64x64xbf16>, vector<16x64xf32> -> vector<16x64xf32>
    %13 = arith.addf %5, %12 : vector<16x64xf32>
    %14 = vector.extract_strided_slice %6 {offsets = [4, 0], sizes = [16, 64], strides = [1, 1]} : vector<24x64xbf16> to vector<16x64xbf16>
    %15 = vector.extract_strided_slice %8 {offsets = [1, 0, 0], sizes = [1, 64, 64], strides = [1, 1, 1]} : vector<3x64x64xbf16> to vector<1x64x64xbf16>
    %16 = vector.shape_cast %15 : vector<1x64x64xbf16> to vector<64x64xbf16>
    %cst_7 = arith.constant dense<0.000000e+00> : vector<16x64xf32>
    %17 = tpu.matmul %14, %16, %cst_7 {dimension_numbers = #tpu.dot_dimension_numbers<[1], [0], [0], [1], [0, 0, 1, 1], [], []>} : vector<16x64xbf16>, vector<64x64xbf16>, vector<16x64xf32> -> vector<16x64xf32>
    %18 = arith.addf %13, %17 : vector<16x64xf32>
    %19 = vector.extract_strided_slice %6 {offsets = [8, 0], sizes = [16, 64], strides = [1, 1]} : vector<24x64xbf16> to vector<16x64xbf16>
    %20 = vector.extract_strided_slice %8 {offsets = [2, 0, 0], sizes = [1, 64, 64], strides = [1, 1, 1]} : vector<3x64x64xbf16> to vector<1x64x64xbf16>
    %21 = vector.shape_cast %20 : vector<1x64x64xbf16> to vector<64x64xbf16>
    %cst_8 = arith.constant dense<0.000000e+00> : vector<16x64xf32>
    %22 = tpu.matmul %19, %21, %cst_8 {dimension_numbers = #tpu.dot_dimension_numbers<[1], [0], [0], [1], [0, 0, 1, 1], [], []>} : vector<16x64xbf16>, vector<64x64xbf16>, vector<16x64xf32> -> vector<16x64xf32>
    %23 = arith.addf %18, %22 : vector<16x64xf32>
    %c0_9 = arith.constant 0 : index
    %c0_10 = arith.constant 0 : index
    %24 = vector.load %arg3[%c0_9, %c0_10] : memref<1x64xf32, #tpu.memory_space<vmem>>, vector<1x64xf32>
    %25 = vector.broadcast %24 : vector<1x64xf32> to vector<16x64xf32>
    %26 = arith.addf %23, %25 : vector<16x64xf32>
    %c0_11 = arith.constant 0 : index
    %c0_12 = arith.constant 0 : index
    %c0_13 = arith.constant 0 : index
    %27 = vector.load %arg4[%c0_11, %c0_12, %c0_13] : memref<1x16x64xf32, #tpu.memory_space<vmem>>, vector<1x16x64xf32>
    %28 = vector.shape_cast %27 : vector<1x16x64xf32> to vector<16x64xf32>
    %29 = vector.shape_cast %26 : vector<16x64xf32> to vector<1x16x64xf32>
    tpu.vector_store %arg4[%c0_11, %c0_12, %c0_13], %29 {strides = array<i32>} : memref<1x16x64xf32, #tpu.memory_space<vmem>>, vector<1x16x64xf32>,
    %c0_14 = arith.constant 0 : index
    %c0_15 = arith.constant 0 : index
    %30 = vector.load %arg5[%c0_14, %c0_15] : memref<1x64xf32, #tpu.memory_space<vmem>>, vector<1x64xf32>
    %cst_16 = arith.constant dense<0.000000e+00> : vector<64xf32>
    %31 = vector.multi_reduction <add>, %26, %cst_16 [0] : vector<16x64xf32> to vector<64xf32>
    %32 = vector.shape_cast %31 : vector<64xf32> to vector<1x64xf32>
    %33 = arith.addf %30, %32 : vector<1x64xf32>
    %c0_17 = arith.constant 0 : index
    %c0_18 = arith.constant 0 : index
    %34 = vector.load %arg5[%c0_17, %c0_18] : memref<1x64xf32, #tpu.memory_space<vmem>>, vector<1x64xf32>
    tpu.vector_store %arg5[%c0_17, %c0_18], %33 {strides = array<i32>} : memref<1x64xf32, #tpu.memory_space<vmem>>, vector<1x64xf32>,
    %c0_19 = arith.constant 0 : index
    %c0_20 = arith.constant 0 : index
    %35 = vector.load %arg6[%c0_19, %c0_20] : memref<1x64xf32, #tpu.memory_space<vmem>>, vector<1x64xf32>
    %36 = arith.mulf %26, %26 : vector<16x64xf32>
    %cst_21 = arith.constant dense<0.000000e+00> : vector<64xf32>
    %37 = vector.multi_reduction <add>, %36, %cst_21 [0] : vector<16x64xf32> to vector<64xf32>
    %38 = vector.shape_cast %37 : vector<64xf32> to vector<1x64xf32>
    %39 = arith.addf %35, %38 : vector<1x64xf32>
    %c0_22 = arith.constant 0 : index
    %c0_23 = arith.constant 0 : index
    %40 = vector.load %arg6[%c0_22, %c0_23] : memref<1x64xf32, #tpu.memory_space<vmem>>, vector<1x64xf32>
    tpu.vector_store %arg6[%c0_22, %c0_23], %39 {strides = array<i32>} : memref<1x64xf32, #tpu.memory_space<vmem>>, vector<1x64xf32>,
    return
  }
  func.func @transform_0(%arg0: i32) -> (i32, i32, i32) {
    %c0_i32 = arith.constant 0 : i32
    %c0_i32_0 = arith.constant 0 : i32
    %c0_i32_1 = arith.constant 0 : i32
    return %arg0, %c0_i32, %c0_i32_0 : i32, i32, i32
  }
  func.func @transform_1(%arg0: i32) -> (i32, i32, i32) {
    %c0_i32 = arith.constant 0 : i32
    %c0_i32_0 = arith.constant 0 : i32
    %c0_i32_1 = arith.constant 0 : i32
    %c0_i32_2 = arith.constant 0 : i32
    return %c0_i32, %c0_i32_0, %c0_i32_1 : i32, i32, i32
  }
  func.func @transform_2(%arg0: i32) -> (i32, i32) {
    %c0_i32 = arith.constant 0 : i32
    %c0_i32_0 = arith.constant 0 : i32
    %c0_i32_1 = arith.constant 0 : i32
    return %c0_i32, %c0_i32_0 : i32, i32
  }
  func.func @transform_3(%arg0: i32) -> (i32, i32, i32) {
    %c0_i32 = arith.constant 0 : i32
    %c0_i32_0 = arith.constant 0 : i32
    %c0_i32_1 = arith.constant 0 : i32
    return %arg0, %c0_i32, %c0_i32_0 : i32, i32, i32
  }
  func.func @transform_4(%arg0: i32) -> (i32, i32) {
    %c0_i32 = arith.constant 0 : i32
    %c0_i32_0 = arith.constant 0 : i32
    %c0_i32_1 = arith.constant 0 : i32
    return %c0_i32, %c0_i32_0 : i32, i32
  }
  func.func @transform_5(%arg0: i32) -> (i32, i32) {
    %c0_i32 = arith.constant 0 : i32
    %c0_i32_0 = arith.constant 0 : i32
    %c0_i32_1 = arith.constant 0 : i32
    return %c0_i32, %c0_i32_0 : i32, i32
  }
}

module attributes {stable_mosaic.version = 11 : i64} {
  func.func @_bn_relu_kernel(%arg0: i32, %arg1: memref<1x16x64xf32, #tpu.memory_space<vmem>>, %arg2: memref<1x64xf32, #tpu.memory_space<vmem>>, %arg3: memref<1x64xf32, #tpu.memory_space<vmem>>, %arg4: memref<1x64xf32, #tpu.memory_space<vmem>>, %arg5: memref<1x64xf32, #tpu.memory_space<vmem>>, %arg6: memref<1x1x64xf32, #tpu.memory_space<vmem>>) attributes {dimension_semantics = [#tpu.dimension_semantics<parallel>], iteration_bounds = array<i64: 2>, scalar_prefetch = 0 : i64, scratch_operands = 0 : i64, tpu.core_type = #tpu.core_type<tc>, window_params = [{transform_indices = @transform_0, window_bounds = array<i64: 1, 16, 64>}, {pipeline_mode = #tpu.pipeline_mode<synchronous>, transform_indices = @transform_1, window_bounds = array<i64: 1, 64>}, {pipeline_mode = #tpu.pipeline_mode<synchronous>, transform_indices = @transform_2, window_bounds = array<i64: 1, 64>}, {pipeline_mode = #tpu.pipeline_mode<synchronous>, transform_indices = @transform_3, window_bounds = array<i64: 1, 64>}, {pipeline_mode = #tpu.pipeline_mode<synchronous>, transform_indices = @transform_4, window_bounds = array<i64: 1, 64>}, {transform_indices = @transform_5, window_bounds = array<i64: 1, 1, 64>}]} {
    %c0 = arith.constant 0 : index
    %c0_0 = arith.constant 0 : index
    %0 = vector.load %arg2[%c0, %c0_0] : memref<1x64xf32, #tpu.memory_space<vmem>>, vector<1x64xf32>
    %cst = arith.constant 3.125000e-02 : f32
    %1 = vector.broadcast %cst : f32 to vector<1x64xf32>
    %2 = arith.mulf %0, %1 : vector<1x64xf32>
    %c0_1 = arith.constant 0 : index
    %c0_2 = arith.constant 0 : index
    %3 = vector.load %arg3[%c0_1, %c0_2] : memref<1x64xf32, #tpu.memory_space<vmem>>, vector<1x64xf32>
    %cst_3 = arith.constant 3.125000e-02 : f32
    %4 = vector.broadcast %cst_3 : f32 to vector<1x64xf32>
    %5 = arith.mulf %3, %4 : vector<1x64xf32>
    %6 = arith.mulf %2, %2 : vector<1x64xf32>
    %7 = arith.subf %5, %6 : vector<1x64xf32>
    %cst_4 = arith.constant 9.99999974E-6 : f32
    %8 = vector.broadcast %cst_4 : f32 to vector<1x64xf32>
    %9 = arith.addf %7, %8 : vector<1x64xf32>
    %10 = math.rsqrt %9 : vector<1x64xf32>
    %c0_5 = arith.constant 0 : index
    %c0_6 = arith.constant 0 : index
    %11 = vector.load %arg4[%c0_5, %c0_6] : memref<1x64xf32, #tpu.memory_space<vmem>>, vector<1x64xf32>
    %12 = arith.mulf %10, %11 : vector<1x64xf32>
    %c0_7 = arith.constant 0 : index
    %c0_8 = arith.constant 0 : index
    %13 = vector.load %arg5[%c0_7, %c0_8] : memref<1x64xf32, #tpu.memory_space<vmem>>, vector<1x64xf32>
    %14 = arith.mulf %2, %12 : vector<1x64xf32>
    %15 = arith.subf %13, %14 : vector<1x64xf32>
    %c0_9 = arith.constant 0 : index
    %c0_10 = arith.constant 0 : index
    %c0_11 = arith.constant 0 : index
    %16 = vector.load %arg1[%c0_9, %c0_10, %c0_11] : memref<1x16x64xf32, #tpu.memory_space<vmem>>, vector<1x16x64xf32>
    %17 = vector.shape_cast %16 : vector<1x16x64xf32> to vector<16x64xf32>
    %18 = vector.broadcast %12 : vector<1x64xf32> to vector<16x64xf32>
    %19 = arith.mulf %17, %18 : vector<16x64xf32>
    %20 = vector.broadcast %15 : vector<1x64xf32> to vector<16x64xf32>
    %21 = arith.addf %19, %20 : vector<16x64xf32>
    %cst_12 = arith.constant 0.000000e+00 : f32
    %22 = vector.broadcast %cst_12 : f32 to vector<16x64xf32>
    %23 = arith.maximumf %21, %22 : vector<16x64xf32>
    %cst_13 = arith.constant dense<0.000000e+00> : vector<64xf32>
    %24 = vector.multi_reduction <add>, %23, %cst_13 [0] : vector<16x64xf32> to vector<64xf32>
    %25 = vector.shape_cast %24 : vector<64xf32> to vector<1x64xf32>
    %cst_14 = arith.constant 1.600000e+01 : f32
    %26 = vector.broadcast %cst_14 : f32 to vector<1x64xf32>
    %27 = arith.divf %25, %26 : vector<1x64xf32>
    %c0_15 = arith.constant 0 : index
    %c0_16 = arith.constant 0 : index
    %c0_17 = arith.constant 0 : index
    %28 = vector.load %arg6[%c0_15, %c0_16, %c0_17] : memref<1x1x64xf32, #tpu.memory_space<vmem>>, vector<1x1x64xf32>
    %29 = vector.shape_cast %28 : vector<1x1x64xf32> to vector<1x64xf32>
    %30 = vector.shape_cast %27 : vector<1x64xf32> to vector<1x1x64xf32>
    tpu.vector_store %arg6[%c0_15, %c0_16, %c0_17], %30 {strides = array<i32>} : memref<1x1x64xf32, #tpu.memory_space<vmem>>, vector<1x1x64xf32>,
    return
  }
  func.func @transform_0(%arg0: i32) -> (i32, i32, i32) {
    %c0_i32 = arith.constant 0 : i32
    %c0_i32_0 = arith.constant 0 : i32
    %c0_i32_1 = arith.constant 0 : i32
    return %arg0, %c0_i32, %c0_i32_0 : i32, i32, i32
  }
  func.func @transform_1(%arg0: i32) -> (i32, i32) {
    %c0_i32 = arith.constant 0 : i32
    %c0_i32_0 = arith.constant 0 : i32
    %c0_i32_1 = arith.constant 0 : i32
    return %c0_i32, %c0_i32_0 : i32, i32
  }
  func.func @transform_2(%arg0: i32) -> (i32, i32) {
    %c0_i32 = arith.constant 0 : i32
    %c0_i32_0 = arith.constant 0 : i32
    %c0_i32_1 = arith.constant 0 : i32
    return %c0_i32, %c0_i32_0 : i32, i32
  }
  func.func @transform_3(%arg0: i32) -> (i32, i32) {
    %c0_i32 = arith.constant 0 : i32
    %c0_i32_0 = arith.constant 0 : i32
    %c0_i32_1 = arith.constant 0 : i32
    return %c0_i32, %c0_i32_0 : i32, i32
  }
  func.func @transform_4(%arg0: i32) -> (i32, i32) {
    %c0_i32 = arith.constant 0 : i32
    %c0_i32_0 = arith.constant 0 : i32
    %c0_i32_1 = arith.constant 0 : i32
    return %c0_i32, %c0_i32_0 : i32, i32
  }
  func.func @transform_5(%arg0: i32) -> (i32, i32, i32) {
    %c0_i32 = arith.constant 0 : i32
    %c0_i32_0 = arith.constant 0 : i32
    %c0_i32_1 = arith.constant 0 : i32
    return %arg0, %c0_i32, %c0_i32_0 : i32, i32, i32
  }
}

module attributes {stable_mosaic.version = 11 : i64} {
  func.func @_var_proj_kernel(%arg0: i32, %arg1: memref<2x64xf32, #tpu.memory_space<vmem>>, %arg2: memref<64x128xf32, #tpu.memory_space<vmem>>, %arg3: memref<1x128xf32, #tpu.memory_space<vmem>>, %arg4: memref<2x64xf32, #tpu.memory_space<vmem>>, %arg5: memref<64x64xf32, #tpu.memory_space<vmem>>, %arg6: memref<1x64xf32, #tpu.memory_space<vmem>>, %arg7: memref<2x64xf32, #tpu.memory_space<vmem>>, %arg8: memref<1x1xf32, #tpu.memory_space<vmem>>) attributes {dimension_semantics = [#tpu.dimension_semantics<arbitrary>], iteration_bounds = array<i64: 1>, scalar_prefetch = 0 : i64, scratch_operands = 0 : i64, tpu.core_type = #tpu.core_type<tc>, window_params = [{pipeline_mode = #tpu.pipeline_mode<synchronous>, transform_indices = @transform_0, window_bounds = array<i64: 2, 64>}, {pipeline_mode = #tpu.pipeline_mode<synchronous>, transform_indices = @transform_1, window_bounds = array<i64: 64, 128>}, {pipeline_mode = #tpu.pipeline_mode<synchronous>, transform_indices = @transform_2, window_bounds = array<i64: 1, 128>}, {pipeline_mode = #tpu.pipeline_mode<synchronous>, transform_indices = @transform_3, window_bounds = array<i64: 2, 64>}, {pipeline_mode = #tpu.pipeline_mode<synchronous>, transform_indices = @transform_4, window_bounds = array<i64: 64, 64>}, {pipeline_mode = #tpu.pipeline_mode<synchronous>, transform_indices = @transform_5, window_bounds = array<i64: 1, 64>}, {pipeline_mode = #tpu.pipeline_mode<synchronous>, transform_indices = @transform_6, window_bounds = array<i64: 2, 64>}, {pipeline_mode = #tpu.pipeline_mode<synchronous>, transform_indices = @transform_7, window_bounds = array<i64: 1, 1>}]} {
    %c0 = arith.constant 0 : index
    %c0_0 = arith.constant 0 : index
    %0 = vector.load %arg1[%c0, %c0_0] : memref<2x64xf32, #tpu.memory_space<vmem>>, vector<2x64xf32>
    %1 = arith.truncf %0 : vector<2x64xf32> to vector<2x64xbf16>
    %c0_1 = arith.constant 0 : index
    %c0_2 = arith.constant 0 : index
    %2 = vector.load %arg2[%c0_1, %c0_2] : memref<64x128xf32, #tpu.memory_space<vmem>>, vector<64x128xf32>
    %3 = arith.truncf %2 : vector<64x128xf32> to vector<64x128xbf16>
    %cst = arith.constant dense<0.000000e+00> : vector<2x128xf32>
    %4 = tpu.matmul %1, %3, %cst {dimension_numbers = #tpu.dot_dimension_numbers<[1], [0], [0], [1], [0, 0, 1, 1], [], []>} : vector<2x64xbf16>, vector<64x128xbf16>, vector<2x128xf32> -> vector<2x128xf32>
    %c0_3 = arith.constant 0 : index
    %c0_4 = arith.constant 0 : index
    %5 = vector.load %arg3[%c0_3, %c0_4] : memref<1x128xf32, #tpu.memory_space<vmem>>, vector<1x128xf32>
    %6 = vector.broadcast %5 : vector<1x128xf32> to vector<2x128xf32>
    %7 = arith.addf %4, %6 : vector<2x128xf32>
    %8 = vector.extract_strided_slice %7 {offsets = [0, 0], sizes = [2, 64], strides = [1, 1]} : vector<2x128xf32> to vector<2x64xf32>
    %9 = vector.extract_strided_slice %7 {offsets = [0, 64], sizes = [2, 64], strides = [1, 1]} : vector<2x128xf32> to vector<2x64xf32>
    %cst_5 = arith.constant 5.000000e-01 : f32
    %10 = vector.broadcast %cst_5 : f32 to vector<2x64xf32>
    %11 = arith.mulf %10, %9 : vector<2x64xf32>
    %12 = math.exp %11 : vector<2x64xf32>
    %c0_6 = arith.constant 0 : index
    %c0_7 = arith.constant 0 : index
    %13 = vector.load %arg4[%c0_6, %c0_7] : memref<2x64xf32, #tpu.memory_space<vmem>>, vector<2x64xf32>
    %14 = arith.mulf %13, %12 : vector<2x64xf32>
    %15 = arith.addf %8, %14 : vector<2x64xf32>
    %cst_8 = arith.constant 1.000000e+00 : f32
    %16 = vector.broadcast %cst_8 : f32 to vector<2x64xf32>
    %17 = arith.addf %16, %9 : vector<2x64xf32>
    %18 = arith.mulf %8, %8 : vector<2x64xf32>
    %19 = arith.subf %17, %18 : vector<2x64xf32>
    %20 = math.exp %9 : vector<2x64xf32>
    %21 = arith.subf %19, %20 : vector<2x64xf32>
    %cst_9 = arith.constant dense<0.000000e+00> : vector<2xf32>
    %22 = vector.multi_reduction <add>, %21, %cst_9 [1] : vector<2x64xf32> to vector<2xf32>
    %23 = vector.shape_cast %22 : vector<2xf32> to vector<2x1xf32>
    %cst_10 = arith.constant -5.000000e-01 : f32
    %24 = vector.broadcast %cst_10 : f32 to vector<2x1xf32>
    %25 = arith.mulf %24, %23 : vector<2x1xf32>
    %cst_11 = arith.constant dense<0.000000e+00> : vector<1xf32>
    %26 = vector.multi_reduction <add>, %25, %cst_11 [0] : vector<2x1xf32> to vector<1xf32>
    %27 = vector.shape_cast %26 : vector<1xf32> to vector<1x1xf32>
    %cst_12 = arith.constant 2.000000e+00 : f32
    %28 = vector.broadcast %cst_12 : f32 to vector<1x1xf32>
    %29 = arith.divf %27, %28 : vector<1x1xf32>
    %c0_13 = arith.constant 0 : index
    %c0_14 = arith.constant 0 : index
    %30 = vector.load %arg8[%c0_13, %c0_14] : memref<1x1xf32, #tpu.memory_space<vmem>>, vector<1x1xf32>
    tpu.vector_store %arg8[%c0_13, %c0_14], %29 {strides = array<i32>} : memref<1x1xf32, #tpu.memory_space<vmem>>, vector<1x1xf32>,
    %31 = arith.truncf %15 : vector<2x64xf32> to vector<2x64xbf16>
    %c0_15 = arith.constant 0 : index
    %c0_16 = arith.constant 0 : index
    %32 = vector.load %arg5[%c0_15, %c0_16] : memref<64x64xf32, #tpu.memory_space<vmem>>, vector<64x64xf32>
    %33 = arith.truncf %32 : vector<64x64xf32> to vector<64x64xbf16>
    %cst_17 = arith.constant dense<0.000000e+00> : vector<2x64xf32>
    %34 = tpu.matmul %31, %33, %cst_17 {dimension_numbers = #tpu.dot_dimension_numbers<[1], [0], [0], [1], [0, 0, 1, 1], [], []>} : vector<2x64xbf16>, vector<64x64xbf16>, vector<2x64xf32> -> vector<2x64xf32>
    %c0_18 = arith.constant 0 : index
    %c0_19 = arith.constant 0 : index
    %35 = vector.load %arg6[%c0_18, %c0_19] : memref<1x64xf32, #tpu.memory_space<vmem>>, vector<1x64xf32>
    %36 = vector.broadcast %35 : vector<1x64xf32> to vector<2x64xf32>
    %37 = arith.addf %34, %36 : vector<2x64xf32>
    %c0_20 = arith.constant 0 : index
    %c0_21 = arith.constant 0 : index
    %38 = vector.load %arg7[%c0_20, %c0_21] : memref<2x64xf32, #tpu.memory_space<vmem>>, vector<2x64xf32>
    tpu.vector_store %arg7[%c0_20, %c0_21], %37 {strides = array<i32>} : memref<2x64xf32, #tpu.memory_space<vmem>>, vector<2x64xf32>,
    return
  }
  func.func @transform_0(%arg0: i32) -> (i32, i32) {
    %c0_i32 = arith.constant 0 : i32
    %c0_i32_0 = arith.constant 0 : i32
    %c0_i32_1 = arith.constant 0 : i32
    return %c0_i32, %c0_i32_0 : i32, i32
  }
  func.func @transform_1(%arg0: i32) -> (i32, i32) {
    %c0_i32 = arith.constant 0 : i32
    %c0_i32_0 = arith.constant 0 : i32
    %c0_i32_1 = arith.constant 0 : i32
    return %c0_i32, %c0_i32_0 : i32, i32
  }
  func.func @transform_2(%arg0: i32) -> (i32, i32) {
    %c0_i32 = arith.constant 0 : i32
    %c0_i32_0 = arith.constant 0 : i32
    %c0_i32_1 = arith.constant 0 : i32
    return %c0_i32, %c0_i32_0 : i32, i32
  }
  func.func @transform_3(%arg0: i32) -> (i32, i32) {
    %c0_i32 = arith.constant 0 : i32
    %c0_i32_0 = arith.constant 0 : i32
    %c0_i32_1 = arith.constant 0 : i32
    return %c0_i32, %c0_i32_0 : i32, i32
  }
  func.func @transform_4(%arg0: i32) -> (i32, i32) {
    %c0_i32 = arith.constant 0 : i32
    %c0_i32_0 = arith.constant 0 : i32
    %c0_i32_1 = arith.constant 0 : i32
    return %c0_i32, %c0_i32_0 : i32, i32
  }
  func.func @transform_5(%arg0: i32) -> (i32, i32) {
    %c0_i32 = arith.constant 0 : i32
    %c0_i32_0 = arith.constant 0 : i32
    %c0_i32_1 = arith.constant 0 : i32
    return %c0_i32, %c0_i32_0 : i32, i32
  }
  func.func @transform_6(%arg0: i32) -> (i32, i32) {
    %c0_i32 = arith.constant 0 : i32
    %c0_i32_0 = arith.constant 0 : i32
    %c0_i32_1 = arith.constant 0 : i32
    return %c0_i32, %c0_i32_0 : i32, i32
  }
  func.func @transform_7(%arg0: i32) -> (i32, i32) {
    %c0_i32 = arith.constant 0 : i32
    %c0_i32_0 = arith.constant 0 : i32
    %c0_i32_1 = arith.constant 0 : i32
    return %c0_i32, %c0_i32_0 : i32, i32
  }
}

module attributes {stable_mosaic.version = 11 : i64} {
  func.func @_mha_kernel(%arg0: i32, %arg1: memref<1x1x64xf32, #tpu.memory_space<vmem>>, %arg2: memref<64x192xf32, #tpu.memory_space<vmem>>, %arg3: memref<1x192xf32, #tpu.memory_space<vmem>>, %arg4: memref<64x64xf32, #tpu.memory_space<vmem>>, %arg5: memref<1x64xf32, #tpu.memory_space<vmem>>, %arg6: memref<1x16x64xf32, #tpu.memory_space<vmem>>) attributes {dimension_semantics = [#tpu.dimension_semantics<parallel>], iteration_bounds = array<i64: 2>, scalar_prefetch = 0 : i64, scratch_operands = 0 : i64, tpu.core_type = #tpu.core_type<tc>, window_params = [{transform_indices = @transform_0, window_bounds = array<i64: 1, 1, 64>}, {pipeline_mode = #tpu.pipeline_mode<synchronous>, transform_indices = @transform_1, window_bounds = array<i64: 64, 192>}, {pipeline_mode = #tpu.pipeline_mode<synchronous>, transform_indices = @transform_2, window_bounds = array<i64: 1, 192>}, {pipeline_mode = #tpu.pipeline_mode<synchronous>, transform_indices = @transform_3, window_bounds = array<i64: 64, 64>}, {pipeline_mode = #tpu.pipeline_mode<synchronous>, transform_indices = @transform_4, window_bounds = array<i64: 1, 64>}, {transform_indices = @transform_5, window_bounds = array<i64: 1, 16, 64>}]} {
    %c0 = arith.constant 0 : index
    %c0_0 = arith.constant 0 : index
    %c0_1 = arith.constant 0 : index
    %0 = vector.load %arg1[%c0, %c0_0, %c0_1] : memref<1x1x64xf32, #tpu.memory_space<vmem>>, vector<1x1x64xf32>
    %1 = vector.shape_cast %0 : vector<1x1x64xf32> to vector<1x64xf32>
    %2 = vector.shape_cast %1 : vector<1x64xf32> to vector<1x64xf32>
    %3 = vector.broadcast %2 : vector<1x64xf32> to vector<16x64xf32>
    %4 = arith.truncf %3 : vector<16x64xf32> to vector<16x64xbf16>
    %c0_2 = arith.constant 0 : index
    %c0_3 = arith.constant 0 : index
    %5 = vector.load %arg2[%c0_2, %c0_3] : memref<64x192xf32, #tpu.memory_space<vmem>>, vector<64x192xf32>
    %6 = arith.truncf %5 : vector<64x192xf32> to vector<64x192xbf16>
    %cst = arith.constant dense<0.000000e+00> : vector<16x192xf32>
    %7 = tpu.matmul %4, %6, %cst {dimension_numbers = #tpu.dot_dimension_numbers<[1], [0], [0], [1], [0, 0, 1, 1], [], []>} : vector<16x64xbf16>, vector<64x192xbf16>, vector<16x192xf32> -> vector<16x192xf32>
    %c0_4 = arith.constant 0 : index
    %c0_5 = arith.constant 0 : index
    %8 = vector.load %arg3[%c0_4, %c0_5] : memref<1x192xf32, #tpu.memory_space<vmem>>, vector<1x192xf32>
    %9 = vector.broadcast %8 : vector<1x192xf32> to vector<16x192xf32>
    %10 = arith.addf %7, %9 : vector<16x192xf32>
    %c0_6 = arith.constant 0 : index
    %c0_7 = arith.constant 0 : index
    %11 = vector.load %arg4[%c0_6, %c0_7] : memref<64x64xf32, #tpu.memory_space<vmem>>, vector<64x64xf32>
    %12 = arith.truncf %11 : vector<64x64xf32> to vector<64x64xbf16>
    %cst_8 = arith.constant 0.000000e+00 : f32
    %13 = vector.broadcast %cst_8 : f32 to vector<16x64xf32>
    %14 = vector.extract_strided_slice %10 {offsets = [0, 0], sizes = [16, 16], strides = [1, 1]} : vector<16x192xf32> to vector<16x16xf32>
    %15 = arith.truncf %14 : vector<16x16xf32> to vector<16x16xbf16>
    %16 = vector.extract_strided_slice %10 {offsets = [0, 64], sizes = [16, 16], strides = [1, 1]} : vector<16x192xf32> to vector<16x16xf32>
    %17 = arith.truncf %16 : vector<16x16xf32> to vector<16x16xbf16>
    %18 = vector.extract_strided_slice %10 {offsets = [0, 128], sizes = [16, 16], strides = [1, 1]} : vector<16x192xf32> to vector<16x16xf32>
    %19 = arith.truncf %18 : vector<16x16xf32> to vector<16x16xbf16>
    "tpu.trace_start"() <{level = 10 : i32, message = "qe,ke->qk"}> : () -> ()
    %cst_9 = arith.constant dense<0.000000e+00> : vector<16x16xf32>
    %20 = tpu.matmul %15, %17, %cst_9 {dimension_numbers = #tpu.dot_dimension_numbers<[1], [1], [0], [0], [0, 0, 1, 0], [], []>} : vector<16x16xbf16>, vector<16x16xbf16>, vector<16x16xf32> -> vector<16x16xf32>
    "tpu.trace_stop"() : () -> ()
    %cst_10 = arith.constant 2.500000e-01 : f32
    %21 = vector.broadcast %cst_10 : f32 to vector<16x16xf32>
    %22 = arith.mulf %20, %21 : vector<16x16xf32>
    %cst_11 = arith.constant dense<0xFF800000> : vector<16xf32>
    %23 = vector.multi_reduction <maximumf>, %22, %cst_11 [1] : vector<16x16xf32> to vector<16xf32>
    %24 = vector.shape_cast %23 : vector<16xf32> to vector<16x1xf32>
    %25 = vector.broadcast %24 : vector<16x1xf32> to vector<16x16xf32>
    %26 = arith.subf %22, %25 : vector<16x16xf32>
    %27 = math.exp %26 : vector<16x16xf32>
    %cst_12 = arith.constant dense<0.000000e+00> : vector<16xf32>
    %28 = vector.multi_reduction <add>, %27, %cst_12 [1] : vector<16x16xf32> to vector<16xf32>
    %29 = vector.shape_cast %28 : vector<16xf32> to vector<16x1xf32>
    %30 = tpu.reciprocal %29 {approx = true} : vector<16x1xf32> -> vector<16x1xf32>
    %31 = vector.broadcast %30 : vector<16x1xf32> to vector<16x16xf32>
    %32 = arith.mulf %27, %31 : vector<16x16xf32>
    %33 = arith.truncf %32 : vector<16x16xf32> to vector<16x16xbf16>
    %cst_13 = arith.constant dense<0.000000e+00> : vector<16x16xf32>
    %34 = tpu.matmul %33, %19, %cst_13 {dimension_numbers = #tpu.dot_dimension_numbers<[1], [0], [0], [1], [0, 0, 1, 1], [], []>} : vector<16x16xbf16>, vector<16x16xbf16>, vector<16x16xf32> -> vector<16x16xf32>
    %35 = arith.truncf %34 : vector<16x16xf32> to vector<16x16xbf16>
    %36 = vector.extract_strided_slice %12 {offsets = [0, 0], sizes = [16, 64], strides = [1, 1]} : vector<64x64xbf16> to vector<16x64xbf16>
    %cst_14 = arith.constant dense<0.000000e+00> : vector<16x64xf32>
    %37 = tpu.matmul %35, %36, %cst_14 {dimension_numbers = #tpu.dot_dimension_numbers<[1], [0], [0], [1], [0, 0, 1, 1], [], []>} : vector<16x16xbf16>, vector<16x64xbf16>, vector<16x64xf32> -> vector<16x64xf32>
    %38 = arith.addf %13, %37 : vector<16x64xf32>
    %39 = vector.extract_strided_slice %10 {offsets = [0, 16], sizes = [16, 16], strides = [1, 1]} : vector<16x192xf32> to vector<16x16xf32>
    %40 = arith.truncf %39 : vector<16x16xf32> to vector<16x16xbf16>
    %41 = vector.extract_strided_slice %10 {offsets = [0, 80], sizes = [16, 16], strides = [1, 1]} : vector<16x192xf32> to vector<16x16xf32>
    %42 = arith.truncf %41 : vector<16x16xf32> to vector<16x16xbf16>
    %43 = vector.extract_strided_slice %10 {offsets = [0, 144], sizes = [16, 16], strides = [1, 1]} : vector<16x192xf32> to vector<16x16xf32>
    %44 = arith.truncf %43 : vector<16x16xf32> to vector<16x16xbf16>
    "tpu.trace_start"() <{level = 10 : i32, message = "qe,ke->qk"}> : () -> ()
    %cst_15 = arith.constant dense<0.000000e+00> : vector<16x16xf32>
    %45 = tpu.matmul %40, %42, %cst_15 {dimension_numbers = #tpu.dot_dimension_numbers<[1], [1], [0], [0], [0, 0, 1, 0], [], []>} : vector<16x16xbf16>, vector<16x16xbf16>, vector<16x16xf32> -> vector<16x16xf32>
    "tpu.trace_stop"() : () -> ()
    %cst_16 = arith.constant 2.500000e-01 : f32
    %46 = vector.broadcast %cst_16 : f32 to vector<16x16xf32>
    %47 = arith.mulf %45, %46 : vector<16x16xf32>
    %cst_17 = arith.constant dense<0xFF800000> : vector<16xf32>
    %48 = vector.multi_reduction <maximumf>, %47, %cst_17 [1] : vector<16x16xf32> to vector<16xf32>
    %49 = vector.shape_cast %48 : vector<16xf32> to vector<16x1xf32>
    %50 = vector.broadcast %49 : vector<16x1xf32> to vector<16x16xf32>
    %51 = arith.subf %47, %50 : vector<16x16xf32>
    %52 = math.exp %51 : vector<16x16xf32>
    %cst_18 = arith.constant dense<0.000000e+00> : vector<16xf32>
    %53 = vector.multi_reduction <add>, %52, %cst_18 [1] : vector<16x16xf32> to vector<16xf32>
    %54 = vector.shape_cast %53 : vector<16xf32> to vector<16x1xf32>
    %55 = tpu.reciprocal %54 {approx = true} : vector<16x1xf32> -> vector<16x1xf32>
    %56 = vector.broadcast %55 : vector<16x1xf32> to vector<16x16xf32>
    %57 = arith.mulf %52, %56 : vector<16x16xf32>
    %58 = arith.truncf %57 : vector<16x16xf32> to vector<16x16xbf16>
    %cst_19 = arith.constant dense<0.000000e+00> : vector<16x16xf32>
    %59 = tpu.matmul %58, %44, %cst_19 {dimension_numbers = #tpu.dot_dimension_numbers<[1], [0], [0], [1], [0, 0, 1, 1], [], []>} : vector<16x16xbf16>, vector<16x16xbf16>, vector<16x16xf32> -> vector<16x16xf32>
    %60 = arith.truncf %59 : vector<16x16xf32> to vector<16x16xbf16>
    %61 = vector.extract_strided_slice %12 {offsets = [16, 0], sizes = [16, 64], strides = [1, 1]} : vector<64x64xbf16> to vector<16x64xbf16>
    %cst_20 = arith.constant dense<0.000000e+00> : vector<16x64xf32>
    %62 = tpu.matmul %60, %61, %cst_20 {dimension_numbers = #tpu.dot_dimension_numbers<[1], [0], [0], [1], [0, 0, 1, 1], [], []>} : vector<16x16xbf16>, vector<16x64xbf16>, vector<16x64xf32> -> vector<16x64xf32>
    %63 = arith.addf %38, %62 : vector<16x64xf32>
    %64 = vector.extract_strided_slice %10 {offsets = [0, 32], sizes = [16, 16], strides = [1, 1]} : vector<16x192xf32> to vector<16x16xf32>
    %65 = arith.truncf %64 : vector<16x16xf32> to vector<16x16xbf16>
    %66 = vector.extract_strided_slice %10 {offsets = [0, 96], sizes = [16, 16], strides = [1, 1]} : vector<16x192xf32> to vector<16x16xf32>
    %67 = arith.truncf %66 : vector<16x16xf32> to vector<16x16xbf16>
    %68 = vector.extract_strided_slice %10 {offsets = [0, 160], sizes = [16, 16], strides = [1, 1]} : vector<16x192xf32> to vector<16x16xf32>
    %69 = arith.truncf %68 : vector<16x16xf32> to vector<16x16xbf16>
    "tpu.trace_start"() <{level = 10 : i32, message = "qe,ke->qk"}> : () -> ()
    %cst_21 = arith.constant dense<0.000000e+00> : vector<16x16xf32>
    %70 = tpu.matmul %65, %67, %cst_21 {dimension_numbers = #tpu.dot_dimension_numbers<[1], [1], [0], [0], [0, 0, 1, 0], [], []>} : vector<16x16xbf16>, vector<16x16xbf16>, vector<16x16xf32> -> vector<16x16xf32>
    "tpu.trace_stop"() : () -> ()
    %cst_22 = arith.constant 2.500000e-01 : f32
    %71 = vector.broadcast %cst_22 : f32 to vector<16x16xf32>
    %72 = arith.mulf %70, %71 : vector<16x16xf32>
    %cst_23 = arith.constant dense<0xFF800000> : vector<16xf32>
    %73 = vector.multi_reduction <maximumf>, %72, %cst_23 [1] : vector<16x16xf32> to vector<16xf32>
    %74 = vector.shape_cast %73 : vector<16xf32> to vector<16x1xf32>
    %75 = vector.broadcast %74 : vector<16x1xf32> to vector<16x16xf32>
    %76 = arith.subf %72, %75 : vector<16x16xf32>
    %77 = math.exp %76 : vector<16x16xf32>
    %cst_24 = arith.constant dense<0.000000e+00> : vector<16xf32>
    %78 = vector.multi_reduction <add>, %77, %cst_24 [1] : vector<16x16xf32> to vector<16xf32>
    %79 = vector.shape_cast %78 : vector<16xf32> to vector<16x1xf32>
    %80 = tpu.reciprocal %79 {approx = true} : vector<16x1xf32> -> vector<16x1xf32>
    %81 = vector.broadcast %80 : vector<16x1xf32> to vector<16x16xf32>
    %82 = arith.mulf %77, %81 : vector<16x16xf32>
    %83 = arith.truncf %82 : vector<16x16xf32> to vector<16x16xbf16>
    %cst_25 = arith.constant dense<0.000000e+00> : vector<16x16xf32>
    %84 = tpu.matmul %83, %69, %cst_25 {dimension_numbers = #tpu.dot_dimension_numbers<[1], [0], [0], [1], [0, 0, 1, 1], [], []>} : vector<16x16xbf16>, vector<16x16xbf16>, vector<16x16xf32> -> vector<16x16xf32>
    %85 = arith.truncf %84 : vector<16x16xf32> to vector<16x16xbf16>
    %86 = vector.extract_strided_slice %12 {offsets = [32, 0], sizes = [16, 64], strides = [1, 1]} : vector<64x64xbf16> to vector<16x64xbf16>
    %cst_26 = arith.constant dense<0.000000e+00> : vector<16x64xf32>
    %87 = tpu.matmul %85, %86, %cst_26 {dimension_numbers = #tpu.dot_dimension_numbers<[1], [0], [0], [1], [0, 0, 1, 1], [], []>} : vector<16x16xbf16>, vector<16x64xbf16>, vector<16x64xf32> -> vector<16x64xf32>
    %88 = arith.addf %63, %87 : vector<16x64xf32>
    %89 = vector.extract_strided_slice %10 {offsets = [0, 48], sizes = [16, 16], strides = [1, 1]} : vector<16x192xf32> to vector<16x16xf32>
    %90 = arith.truncf %89 : vector<16x16xf32> to vector<16x16xbf16>
    %91 = vector.extract_strided_slice %10 {offsets = [0, 112], sizes = [16, 16], strides = [1, 1]} : vector<16x192xf32> to vector<16x16xf32>
    %92 = arith.truncf %91 : vector<16x16xf32> to vector<16x16xbf16>
    %93 = vector.extract_strided_slice %10 {offsets = [0, 176], sizes = [16, 16], strides = [1, 1]} : vector<16x192xf32> to vector<16x16xf32>
    %94 = arith.truncf %93 : vector<16x16xf32> to vector<16x16xbf16>
    "tpu.trace_start"() <{level = 10 : i32, message = "qe,ke->qk"}> : () -> ()
    %cst_27 = arith.constant dense<0.000000e+00> : vector<16x16xf32>
    %95 = tpu.matmul %90, %92, %cst_27 {dimension_numbers = #tpu.dot_dimension_numbers<[1], [1], [0], [0], [0, 0, 1, 0], [], []>} : vector<16x16xbf16>, vector<16x16xbf16>, vector<16x16xf32> -> vector<16x16xf32>
    "tpu.trace_stop"() : () -> ()
    %cst_28 = arith.constant 2.500000e-01 : f32
    %96 = vector.broadcast %cst_28 : f32 to vector<16x16xf32>
    %97 = arith.mulf %95, %96 : vector<16x16xf32>
    %cst_29 = arith.constant dense<0xFF800000> : vector<16xf32>
    %98 = vector.multi_reduction <maximumf>, %97, %cst_29 [1] : vector<16x16xf32> to vector<16xf32>
    %99 = vector.shape_cast %98 : vector<16xf32> to vector<16x1xf32>
    %100 = vector.broadcast %99 : vector<16x1xf32> to vector<16x16xf32>
    %101 = arith.subf %97, %100 : vector<16x16xf32>
    %102 = math.exp %101 : vector<16x16xf32>
    %cst_30 = arith.constant dense<0.000000e+00> : vector<16xf32>
    %103 = vector.multi_reduction <add>, %102, %cst_30 [1] : vector<16x16xf32> to vector<16xf32>
    %104 = vector.shape_cast %103 : vector<16xf32> to vector<16x1xf32>
    %105 = tpu.reciprocal %104 {approx = true} : vector<16x1xf32> -> vector<16x1xf32>
    %106 = vector.broadcast %105 : vector<16x1xf32> to vector<16x16xf32>
    %107 = arith.mulf %102, %106 : vector<16x16xf32>
    %108 = arith.truncf %107 : vector<16x16xf32> to vector<16x16xbf16>
    %cst_31 = arith.constant dense<0.000000e+00> : vector<16x16xf32>
    %109 = tpu.matmul %108, %94, %cst_31 {dimension_numbers = #tpu.dot_dimension_numbers<[1], [0], [0], [1], [0, 0, 1, 1], [], []>} : vector<16x16xbf16>, vector<16x16xbf16>, vector<16x16xf32> -> vector<16x16xf32>
    %110 = arith.truncf %109 : vector<16x16xf32> to vector<16x16xbf16>
    %111 = vector.extract_strided_slice %12 {offsets = [48, 0], sizes = [16, 64], strides = [1, 1]} : vector<64x64xbf16> to vector<16x64xbf16>
    %cst_32 = arith.constant dense<0.000000e+00> : vector<16x64xf32>
    %112 = tpu.matmul %110, %111, %cst_32 {dimension_numbers = #tpu.dot_dimension_numbers<[1], [0], [0], [1], [0, 0, 1, 1], [], []>} : vector<16x16xbf16>, vector<16x64xbf16>, vector<16x64xf32> -> vector<16x64xf32>
    %113 = arith.addf %88, %112 : vector<16x64xf32>
    %c0_33 = arith.constant 0 : index
    %c0_34 = arith.constant 0 : index
    %114 = vector.load %arg5[%c0_33, %c0_34] : memref<1x64xf32, #tpu.memory_space<vmem>>, vector<1x64xf32>
    %115 = vector.broadcast %114 : vector<1x64xf32> to vector<16x64xf32>
    %116 = arith.addf %113, %115 : vector<16x64xf32>
    %c0_35 = arith.constant 0 : index
    %c0_36 = arith.constant 0 : index
    %c0_37 = arith.constant 0 : index
    %117 = vector.load %arg6[%c0_35, %c0_36, %c0_37] : memref<1x16x64xf32, #tpu.memory_space<vmem>>, vector<1x16x64xf32>
    %118 = vector.shape_cast %117 : vector<1x16x64xf32> to vector<16x64xf32>
    %119 = vector.shape_cast %116 : vector<16x64xf32> to vector<1x16x64xf32>
    tpu.vector_store %arg6[%c0_35, %c0_36, %c0_37], %119 {strides = array<i32>} : memref<1x16x64xf32, #tpu.memory_space<vmem>>, vector<1x16x64xf32>,
    return
  }
  func.func @transform_0(%arg0: i32) -> (i32, i32, i32) {
    %c0_i32 = arith.constant 0 : i32
    %c0_i32_0 = arith.constant 0 : i32
    %c0_i32_1 = arith.constant 0 : i32
    return %arg0, %c0_i32, %c0_i32_0 : i32, i32, i32
  }
  func.func @transform_1(%arg0: i32) -> (i32, i32) {
    %c0_i32 = arith.constant 0 : i32
    %c0_i32_0 = arith.constant 0 : i32
    %c0_i32_1 = arith.constant 0 : i32
    return %c0_i32, %c0_i32_0 : i32, i32
  }
  func.func @transform_2(%arg0: i32) -> (i32, i32) {
    %c0_i32 = arith.constant 0 : i32
    %c0_i32_0 = arith.constant 0 : i32
    %c0_i32_1 = arith.constant 0 : i32
    return %c0_i32, %c0_i32_0 : i32, i32
  }
  func.func @transform_3(%arg0: i32) -> (i32, i32) {
    %c0_i32 = arith.constant 0 : i32
    %c0_i32_0 = arith.constant 0 : i32
    %c0_i32_1 = arith.constant 0 : i32
    return %c0_i32, %c0_i32_0 : i32, i32
  }
  func.func @transform_4(%arg0: i32) -> (i32, i32) {
    %c0_i32 = arith.constant 0 : i32
    %c0_i32_0 = arith.constant 0 : i32
    %c0_i32_1 = arith.constant 0 : i32
    return %c0_i32, %c0_i32_0 : i32, i32
  }
  func.func @transform_5(%arg0: i32) -> (i32, i32, i32) {
    %c0_i32 = arith.constant 0 : i32
    %c0_i32_0 = arith.constant 0 : i32
    %c0_i32_1 = arith.constant 0 : i32
    return %arg0, %c0_i32, %c0_i32_0 : i32, i32, i32
  }
}

module attributes {stable_mosaic.version = 11 : i64} {
  func.func @_linear_kernel(%arg0: i32, %arg1: memref<2x448xf32, #tpu.memory_space<vmem>>, %arg2: memref<448x2xf32, #tpu.memory_space<vmem>>, %arg3: memref<1x2xf32, #tpu.memory_space<vmem>>, %arg4: memref<2x2xf32, #tpu.memory_space<vmem>>) attributes {dimension_semantics = [#tpu.dimension_semantics<arbitrary>], iteration_bounds = array<i64: 1>, scalar_prefetch = 0 : i64, scratch_operands = 0 : i64, tpu.core_type = #tpu.core_type<tc>, window_params = [{pipeline_mode = #tpu.pipeline_mode<synchronous>, transform_indices = @transform_0, window_bounds = array<i64: 2, 448>}, {pipeline_mode = #tpu.pipeline_mode<synchronous>, transform_indices = @transform_1, window_bounds = array<i64: 448, 2>}, {pipeline_mode = #tpu.pipeline_mode<synchronous>, transform_indices = @transform_2, window_bounds = array<i64: 1, 2>}, {pipeline_mode = #tpu.pipeline_mode<synchronous>, transform_indices = @transform_3, window_bounds = array<i64: 2, 2>}]} {
    %c0 = arith.constant 0 : index
    %c0_0 = arith.constant 0 : index
    %0 = vector.load %arg1[%c0, %c0_0] : memref<2x448xf32, #tpu.memory_space<vmem>>, vector<2x448xf32>
    %1 = arith.truncf %0 : vector<2x448xf32> to vector<2x448xbf16>
    %c0_1 = arith.constant 0 : index
    %c0_2 = arith.constant 0 : index
    %2 = vector.load %arg2[%c0_1, %c0_2] : memref<448x2xf32, #tpu.memory_space<vmem>>, vector<448x2xf32>
    %3 = arith.truncf %2 : vector<448x2xf32> to vector<448x2xbf16>
    %cst = arith.constant dense<0.000000e+00> : vector<2x2xf32>
    %4 = tpu.matmul %1, %3, %cst {dimension_numbers = #tpu.dot_dimension_numbers<[1], [0], [0], [1], [0, 0, 1, 1], [], []>} : vector<2x448xbf16>, vector<448x2xbf16>, vector<2x2xf32> -> vector<2x2xf32>
    %c0_3 = arith.constant 0 : index
    %c0_4 = arith.constant 0 : index
    %5 = vector.load %arg3[%c0_3, %c0_4] : memref<1x2xf32, #tpu.memory_space<vmem>>, vector<1x2xf32>
    %6 = vector.broadcast %5 : vector<1x2xf32> to vector<2x2xf32>
    %7 = arith.addf %4, %6 : vector<2x2xf32>
    %c0_5 = arith.constant 0 : index
    %c0_6 = arith.constant 0 : index
    %8 = vector.load %arg4[%c0_5, %c0_6] : memref<2x2xf32, #tpu.memory_space<vmem>>, vector<2x2xf32>
    tpu.vector_store %arg4[%c0_5, %c0_6], %7 {strides = array<i32>} : memref<2x2xf32, #tpu.memory_space<vmem>>, vector<2x2xf32>,
    return
  }
  func.func @transform_0(%arg0: i32) -> (i32, i32) {
    %c0_i32 = arith.constant 0 : i32
    %c0_i32_0 = arith.constant 0 : i32
    %c0_i32_1 = arith.constant 0 : i32
    return %c0_i32, %c0_i32_0 : i32, i32
  }
  func.func @transform_1(%arg0: i32) -> (i32, i32) {
    %c0_i32 = arith.constant 0 : i32
    %c0_i32_0 = arith.constant 0 : i32
    %c0_i32_1 = arith.constant 0 : i32
    return %c0_i32, %c0_i32_0 : i32, i32
  }
  func.func @transform_2(%arg0: i32) -> (i32, i32) {
    %c0_i32 = arith.constant 0 : i32
    %c0_i32_0 = arith.constant 0 : i32
    %c0_i32_1 = arith.constant 0 : i32
    return %c0_i32, %c0_i32_0 : i32, i32
  }
  func.func @transform_3(%arg0: i32) -> (i32, i32) {
    %c0_i32 = arith.constant 0 : i32
    %c0_i32_0 = arith.constant 0 : i32
    %c0_i32_1 = arith.constant 0 : i32
    return %c0_i32, %c0_i32_0 : i32, i32
  }
}

</mosaic_0001>

<llo_original>
// kernel: stems_forward.9
$region0: #{stems_forward.9}
  #allocation0 [shape = 'u32[]', space=smem, size = 0x4, offset = 0x4, fixed_abs, tag = 'smem constant byte address 0x4 - core index']
  #allocation1 [shape = 'u32[72,128]{1,0:T(1,128)}', space=vmem, size = 0x9000, scoped, tag = 'internal scratch']
  %s0 = inlined_call_operand.vmem [shape: f32[2,18,1], index: 0, kind: input, shape index: {}]
  %s1 = inlined_call_operand.vmem [shape: f32[3,1,64], index: 1, kind: input, shape index: {}]
  %s2 = inlined_call_operand.vmem [shape: f32[1,64], index: 2, kind: input, shape index: {}]
  %s3 = inlined_call_operand.vmem [shape: f32[2,16,64], index: 3, kind: output, shape index: {0}]
  %s4 = inlined_call_operand.vmem [shape: f32[1,64], index: 4, kind: output, shape index: {1}]
  %s5 = inlined_call_operand.vmem [shape: f32[1,64], index: 5, kind: output, shape index: {2}]
  %6 = xla_tuple %s3, %s4, %s5
  %s7 = sld [smem:[#allocation0]]
  $region65: #{stems_forward.9} parent=0
    _
  %s9 = ssub.s32 1, %s7
  %s10 = scalar_select 0, %s9, %s7
  loop: start=0, step=1, limit=4
  $region2: #{stems_forward.9} parent=0 // loop_pre_header
    _
  $region3: #{stems_forward.9} parent=0 // loop_header
    %s12 = sphi 0, %s16
    %p13 = scmp.ge.s32.totalorder %s12, 4
    %s22 = sphi 0, %s24
    %s25 = sphi 0, %s22
    %s26 = sphi 0, %s25
    %s42 = sphi 0, %s26
    %s46 = sphi 0, %s46
    %s48 = sphi 0, %s46
    %s49 = sphi 0, %s48
    %s63 = sphi 0, %s49
    %s67 = sphi 0, %s67
    %s69 = sphi 0, %s67
    %s70 = sphi 0, %s69
    %s84 = sphi 0, %s70
    %s90 = sphi 0, %s92
    %s93 = sphi 0, %s90
    %s94 = sphi 0, %s93
    %s110 = sphi 0, %s94
    %s114 = sphi 0, %s114
    %s116 = sphi 0, %s114
    %s117 = sphi 0, %s116
    %s131 = sphi 0, %s117
    %s135 = sphi 0, %s135
    %s137 = sphi 0, %s135
    %s138 = sphi 0, %s137
    %s152 = sphi 0, %s138
  $region4: #{stems_forward.9} parent=0 // loop_header_branch
    %15 = sbr.rel (%p13) target = $region8
  $region5: #{stems_forward.9} parent=0 // loop_body
    %s17 = ssub.s32 %s12, 1
    %s18 = ssub.s32 %s12, 2
    %s19 = sadd.s32 %s12, 1
    %s20 = ssub.s32 %s12, %s19
    %p21 = scmp.eq.s32.totalorder %s20, 0
    %s23 = sadd.s32 %s22, 1
    %s24 = scalar_select %p21, %s22, %s23
    %p27 = pneg %p21
    %p28 = scmp.eq.s32.totalorder %s12, 1
    %p29 = por %p27, %p28
    %p30 = scmp.ne.s32.totalorder %s22, %s25
    %p31 = scmp.eq.s32.totalorder %s12, 0
    %p32 = por %p30, %p31
    %p33 = scmp.ne.s32.totalorder %s22, %s25
    %p34 = scmp.eq.s32.totalorder %s17, 1
    %p35 = por %p33, %p34
    %p36 = scmp.ne.s32.totalorder %s25, %s26
    %p37 = scmp.eq.s32.totalorder %s17, 0
    %p38 = por %p36, %p37
    %p39 = scmp.ne.s32.totalorder %s25, %s26
    %p40 = scmp.eq.s32.totalorder %s18, 1
    %p41 = por %p39, %p40
    %p43 = scmp.ne.s32.totalorder %s26, %s42
    %p44 = scmp.eq.s32.totalorder %s18, 0
    %p45 = por %p43, %p44
    %s47 = sadd.s32 %s46, 1
    %p50 = scmp.eq.s32.totalorder %s12, 1
    %p51 = scmp.ne.s32.totalorder %s46, %s48
    %p52 = scmp.eq.s32.totalorder %s12, 0
    %p53 = por %p51, %p52
    %p54 = scmp.ne.s32.totalorder %s46, %s48
    %p55 = scmp.eq.s32.totalorder %s17, 1
    %p56 = por %p54, %p55
    %p57 = scmp.ne.s32.totalorder %s48, %s49
    %p58 = scmp.eq.s32.totalorder %s17, 0
    %p59 = por %p57, %p58
    %p60 = scmp.ne.s32.totalorder %s48, %s49
    %p61 = scmp.eq.s32.totalorder %s18, 1
    %p62 = por %p60, %p61
    %p64 = scmp.ne.s32.totalorder %s49, %s63
    %p65 = scmp.eq.s32.totalorder %s18, 0
    %p66 = por %p64, %p65
    %s68 = sadd.s32 %s67, 1
    %p71 = scmp.eq.s32.totalorder %s12, 1
    %p72 = scmp.ne.s32.totalorder %s67, %s69
    %p73 = scmp.eq.s32.totalorder %s12, 0
    %p74 = por %p72, %p73
    %p75 = scmp.ne.s32.totalorder %s67, %s69
    %p76 = scmp.eq.s32.totalorder %s17, 1
    %p77 = por %p75, %p76
    %p78 = scmp.ne.s32.totalorder %s69, %s70
    %p79 = scmp.eq.s32.totalorder %s17, 0
    %p80 = por %p78, %p79
    %p81 = scmp.ne.s32.totalorder %s69, %s70
    %p82 = scmp.eq.s32.totalorder %s18, 1
    %p83 = por %p81, %p82
    %p85 = scmp.ne.s32.totalorder %s70, %s84
    %p86 = scmp.eq.s32.totalorder %s18, 0
    %p87 = por %p85, %p86
    %s88 = ssub.s32 %s12, %s19
    %p89 = scmp.eq.s32.totalorder %s88, 0
    %s91 = sadd.s32 %s90, 1
    %s92 = scalar_select %p89, %s90, %s91
    %p95 = pneg %p89
    %p96 = scmp.eq.s32.totalorder %s12, 1
    %p97 = por %p95, %p96
    %p98 = scmp.ne.s32.totalorder %s90, %s93
    %p99 = scmp.eq.s32.totalorder %s12, 0
    %p100 = por %p98, %p99
    %p101 = scmp.ne.s32.totalorder %s90, %s93
    %p102 = scmp.eq.s32.totalorder %s17, 1
    %p103 = por %p101, %p102
    %p104 = scmp.ne.s32.totalorder %s93, %s94
    %p105 = scmp.eq.s32.totalorder %s17, 0
    %p106 = por %p104, %p105
    %p107 = scmp.ne.s32.totalorder %s93, %s94
    %p108 = scmp.eq.s32.totalorder %s18, 1
    %p109 = por %p107, %p108
    %p111 = scmp.ne.s32.totalorder %s94, %s110
    %p112 = scmp.eq.s32.totalorder %s18, 0
    %p113 = por %p111, %p112
    %s115 = sadd.s32 %s114, 1
    %p118 = scmp.eq.s32.totalorder %s12, 1
    %p119 = scmp.ne.s32.totalorder %s114, %s116
    %p120 = scmp.eq.s32.totalorder %s12, 0
    %p121 = por %p119, %p120
    %p122 = scmp.ne.s32.totalorder %s114, %s116
    %p123 = scmp.eq.s32.totalorder %s17, 1
    %p124 = por %p122, %p123
    %p125 = scmp.ne.s32.totalorder %s116, %s117
    %p126 = scmp.eq.s32.totalorder %s17, 0
    %p127 = por %p125, %p126
    %p128 = scmp.ne.s32.totalorder %s116, %s117
    %p129 = scmp.eq.s32.totalorder %s18, 1
    %p130 = por %p128, %p129
    %p132 = scmp.ne.s32.totalorder %s117, %s131
    %p133 = scmp.eq.s32.totalorder %s18, 0
    %p134 = por %p132, %p133
    %s136 = sadd.s32 %s135, 1
    %p139 = scmp.eq.s32.totalorder %s12, 1
    %p140 = scmp.ne.s32.totalorder %s135, %s137
    %p141 = scmp.eq.s32.totalorder %s12, 0
    %p142 = por %p140, %p141
    %p143 = scmp.ne.s32.totalorder %s135, %s137
    %p144 = scmp.eq.s32.totalorder %s17, 1
    %p145 = por %p143, %p144
    %p146 = scmp.ne.s32.totalorder %s137, %s138
    %p147 = scmp.eq.s32.totalorder %s17, 0
    %p148 = por %p146, %p147
    %p149 = scmp.ne.s32.totalorder %s137, %s138
    %p150 = scmp.eq.s32.totalorder %s18, 1
    %p151 = por %p149, %p150
    %p153 = scmp.ne.s32.totalorder %s138, %s152
    %p154 = scmp.eq.s32.totalorder %s18, 0
    %p155 = por %p153, %p154
    %p156 = scmp.le.s32.totalorder 1, %s12
    %p157 = scmp.lt.s32.totalorder %s12, 3
    %p158 = pnand %p156, %p157
    %p159 = pneg %p158
    // Predicated region
    $region9: #{stems_forward.9} parent=5 // pred_check
      _
    $region10: #{stems_forward.9} parent=5 // pred_check_branch
      %161 = sbr.rel (%p158) target = $region12
    $region11: #{stems_forward.9} parent=5 // pred_region
      %s162 = ssub.s32 %s12, 1
      // Predicated region
      $region13: #{stems_forward.9} parent=11 // pred_check
        %p163 = pneg %p59
      $region14: #{stems_forward.9} parent=11 // pred_check_branch
        %165 = sbr.rel (%p163) target = $region16
      $region15: #{stems_forward.9} parent=11 // pred_region
        _
      $region16: #{stems_forward.9} parent=11 // pred_fallthru
        _
      // Predicated region
      $region17: #{stems_forward.9} parent=11 // pred_check
        %p166 = pneg %p80
      $region18: #{stems_forward.9} parent=11 // pred_check_branch
        %168 = sbr.rel (%p166) target = $region20
      $region19: #{stems_forward.9} parent=11 // pred_region
        _
      $region20: #{stems_forward.9} parent=11 // pred_fallthru
        _
    $region12: #{stems_forward.9} parent=5 // pred_fallthru
      _
    %p169 = scmp.lt.s32.totalorder %s12, 2
    // Predicated region
    $region21: #{stems_forward.9} parent=5 // pred_check
      %p170 = pneg %p169
    $region22: #{stems_forward.9} parent=5 // pred_check_branch
      %172 = sbr.rel (%p170) target = $region24
    $region23: #{stems_forward.9} parent=5 // pred_region
      // Predicated region
      $region25: #{stems_forward.9} parent=23 // pred_check
        %p173 = pneg %p32
      $region26: #{stems_forward.9} parent=23 // pred_check_branch
        %175 = sbr.rel (%p173) target = $region28
      $region27: #{stems_forward.9} parent=23 // pred_region
        %p176 = scmp.lt.s32.totalorder %s12, 1
        %s177 = scalar_select %p176, %s12, 1
        %s178 = smul.addr %s177, 3
        %s179 = smul.addr %s178, 8
        %s180 = scalar_lea.vmem %s0, %s179
      $region28: #{stems_forward.9} parent=23 // pred_fallthru
        _
    $region24: #{stems_forward.9} parent=5 // pred_fallthru
      _
    %p181 = scmp.le.s32.totalorder 1, %s12
    %p182 = scmp.lt.s32.totalorder %s12, 3
    %p183 = pnand %p181, %p182
    %p184 = pneg %p183
    // Predicated region
    $region29: #{stems_forward.9} parent=5 // pred_check
      _
    $region30: #{stems_forward.9} parent=5 // pred_check_branch
      %186 = sbr.rel (%p183) target = $region32
    $region31: #{stems_forward.9} parent=5 // pred_region
      %s187 = ssub.s32 %s12, 1
      %p188 = scmp.lt.s32.totalorder %s17, 1
      %s189 = scalar_select %p188, %s17, 1
      %s190 = smul.addr %s189, 3
      %s191 = smul.addr %s190, 8
      %s192 = scalar_lea.vmem %s0, %s191
      %p193 = pneg %p38
      %p194 = pneg %p35
      %p195 = pneg %p59
      %p196 = pneg %p56
      %p197 = pneg %p80
      %p198 = pneg %p77
      %p199 = pneg %p106
      %p200 = pneg %p103
      %p201 = scmp.lt.s32.totalorder %s17, 1
      %s202 = scalar_select %p201, %s17, 1
      %s203 = smul.addr %s202, 2
      %s204 = smul.addr %s203, 8
      %s205 = scalar_lea.vmem %s3, %s204
      %p206 = pneg %p127
      %p207 = pneg %p124
      %p208 = pneg %p148
      %p209 = pneg %p145
      %p210 = scmp.lt.s32.totalorder %s17, 1
      %s211 = scalar_select %p210, %s17, 1
      %s212 = smul.addr %s211, 3
      %s213 = smul.addr %s212, 8
      %s214 = scalar_lea.vmem %s0, %s213
      %p215 = scmp.lt.s32.totalorder %s17, 1
      %s216 = scalar_select %p215, %s17, 1
      %s217 = smul.addr %s216, 2
      %s218 = smul.addr %s217, 8
      %s219 = scalar_lea.vmem %s3, %s218
      %p220 = scmp.eq.s32.totalorder %s17, 0
      // Predicated region
      $region33: #{stems_forward.9} parent=31 // pred_check
        %p221 = pneg %p220
      $region34: #{stems_forward.9} parent=31 // pred_check_branch
        %223 = sbr.rel (%p221) target = $region36
      $region35: #{stems_forward.9} parent=31 // pred_region
        %vm224 = vcmask 516096
        %225 = vst.msk [vmem:[%s4] sm:$0x1] %vm224, 0.0
        %226 = vst.msk [vmem:[%s5] sm:$0x1] %vm224, 0.0
      $region36: #{stems_forward.9} parent=31 // pred_fallthru
        _
      %v227 = vld [vmem:[%s214] sm:$0xff]
      %v228 = vld [vmem:[%s214 + $0x8] sm:$0xff]
      %v229 = vld [vmem:[%s214 + $0x10] sm:$0x3]
      %v230 = vld [vmem:[%s1] sm:$0x1]
      %232 = vset.pattern.permute.xlu0 0
      %233 = vperm.xlu0 %232, %v227
      %v234 = vpop.permute.xlu0 %233
      %237 = vset.pattern.permute.xlu0 0
      %238 = vperm.xlu0 %237, %v228
      %v239 = vpop.permute.xlu0 %238
      %v242 = vperm.slane %v230, 0
      %v244 = vmul.f32 %v234, %v242
      %v245 = vmul.f32 %v239, %v242
      %v246 = vadd.f32 %v244, 0.0
      %v247 = vadd.f32 %v245, 0.0
      %s248 = scalar_lea.vmem %s1, 1
      %v249 = vld [vmem:[%s248] sm:$0x1]
      %251 = vset.pattern.permute.xlu0 0
      %252 = vperm.xlu0 %251, %v229
      %v253 = vpop.permute.xlu0 %252
      %v256 = vperm.slane %v249, 0
      %v258 = vmul.f32 %v234, %v256
      %v259 = vmul.f32 %v239, %v256
      %v260 = vmul.f32 %v253, %v256
      %vm264 = vcmask 1046528
      %v265 = vrot.slane %v258, 1
      %v266 = vrot.slane %v259, 1
      %v267 = vsel %vm264, %v265, %v266
      %v268 = vrot.slane %v260, 1
      %v269 = vsel %vm264, %v266, %v268
      %v272 = vadd.f32 %v246, %v267
      %v273 = vadd.f32 %v247, %v269
      %s274 = scalar_lea.vmem %s1, 2
      %v275 = vld [vmem:[%s274] sm:$0x1]
      %v277 = vperm.slane %v275, 0
      %v279 = vmul.f32 %v234, %v277
      %v280 = vmul.f32 %v239, %v277
      %v281 = vmul.f32 %v253, %v277
      %vm285 = vcmask 1045504
      %v286 = vrot.slane %v279, 2
      %v287 = vrot.slane %v280, 2
      %v288 = vsel %vm285, %v286, %v287
      %v289 = vrot.slane %v281, 2
      %v290 = vsel %vm285, %v287, %v289
      %v293 = vadd.f32 %v272, %v288
      %v294 = vadd.f32 %v273, %v290
      %v295 = vld [vmem:[%s2] sm:$0x1]
      %v297 = vperm.slane %v295, 0
      %v299 = vadd.f32 %v293, %v297
      %v300 = vadd.f32 %v294, %v297
      %vm301 = vcmask 523264
      %302 = vst.msk [vmem:[%s219] sm:$0xff] %vm301, %v299
      %303 = vst.msk [vmem:[%s219 + $0x8] sm:$0xff] %vm301, %v300
      %v304 = vld [vmem:[%s4] sm:$0x1]
      %v305 = vsel %vm301, %v299, 0.0
      %v306 = vsel %vm301, %v300, 0.0
      %v307 = vadd.f32 %v305, %v306
      %v308 = vrot.slane %v307, 4
      %v309 = vadd.f32 %v307, %v308
      %v310 = vrot.slane %v309, 2
      %v311 = vadd.f32 %v309, %v310
      %v312 = vrot.slane %v311, 1
      %v313 = vadd.f32 %v311, %v312
      %v314 = vadd.f32 %v304, %v313
      %vm315 = vcmask 516096
      %316 = vst.msk [vmem:[%s4] sm:$0x1] %vm315, %v314
      %v317 = vld [vmem:[%s5] sm:$0x1]
      %v318 = vmul.f32 %v299, %v299
      %v319 = vmul.f32 %v300, %v300
      %v320 = vsel %vm301, %v318, 0.0
      %v321 = vsel %vm301, %v319, 0.0
      %v322 = vadd.f32 %v320, %v321
      %v323 = vrot.slane %v322, 4
      %v324 = vadd.f32 %v322, %v323
      %v325 = vrot.slane %v324, 2
      %v326 = vadd.f32 %v324, %v325
      %v327 = vrot.slane %v326, 1
      %v328 = vadd.f32 %v326, %v327
      %v329 = vadd.f32 %v317, %v328
      %330 = vst.msk [vmem:[%s5] sm:$0x1] %vm315, %v329
      %p331 = scmp.lt.s32.totalorder %s17, 1
      %s332 = scalar_select %p331, %s17, 1
      %s333 = smul.addr %s332, 2
      %s334 = smul.addr %s333, 8
      %s335 = scalar_lea.vmem %s3, %s334
      // Predicated region
      $region37: #{stems_forward.9} parent=31 // pred_check
        %p336 = pneg %p103
      $region38: #{stems_forward.9} parent=31 // pred_check_branch
        %338 = sbr.rel (%p336) target = $region40
      $region39: #{stems_forward.9} parent=31 // pred_region
        _
      $region40: #{stems_forward.9} parent=31 // pred_fallthru
        _
      // Predicated region
      $region41: #{stems_forward.9} parent=31 // pred_check
        %p339 = pneg %p124
      $region42: #{stems_forward.9} parent=31 // pred_check_branch
        %341 = sbr.rel (%p339) target = $region44
      $region43: #{stems_forward.9} parent=31 // pred_region
        _
      $region44: #{stems_forward.9} parent=31 // pred_fallthru
        _
      // Predicated region
      $region45: #{stems_forward.9} parent=31 // pred_check
        %p342 = pneg %p145
      $region46: #{stems_forward.9} parent=31 // pred_check_branch
        %344 = sbr.rel (%p342) target = $region48
      $region47: #{stems_forward.9} parent=31 // pred_region
        _
      $region48: #{stems_forward.9} parent=31 // pred_fallthru
        _
      // Predicated region
      $region49: #{stems_forward.9} parent=31 // pred_check
        %p345 = pneg %p124
      $region50: #{stems_forward.9} parent=31 // pred_check_branch
        %347 = sbr.rel (%p345) target = $region52
      $region51: #{stems_forward.9} parent=31 // pred_region
        _
      $region52: #{stems_forward.9} parent=31 // pred_fallthru
        _
      // Predicated region
      $region53: #{stems_forward.9} parent=31 // pred_check
        %p348 = pneg %p145
      $region54: #{stems_forward.9} parent=31 // pred_check_branch
        %350 = sbr.rel (%p348) target = $region56
      $region55: #{stems_forward.9} parent=31 // pred_region
        _
      $region56: #{stems_forward.9} parent=31 // pred_fallthru
        _
    $region32: #{stems_forward.9} parent=5 // pred_fallthru
      _
    %p351 = scmp.le.s32.totalorder 2, %s12
    // Predicated region
    $region57: #{stems_forward.9} parent=5 // pred_check
      %p352 = pneg %p351
    $region58: #{stems_forward.9} parent=5 // pred_check_branch
      %354 = sbr.rel (%p352) target = $region60
    $region59: #{stems_forward.9} parent=5 // pred_region
      %s355 = ssub.s32 %s12, 2
      // Predicated region
      $region61: #{stems_forward.9} parent=59 // pred_check
        %p356 = pneg %p109
      $region62: #{stems_forward.9} parent=59 // pred_check_branch
        %358 = sbr.rel (%p356) target = $region64
      $region63: #{stems_forward.9} parent=59 // pred_region
        %p359 = scmp.lt.s32.totalorder %s18, 1
        %s360 = scalar_select %p359, %s18, 1
        %s361 = smul.addr %s360, 2
        %s362 = smul.addr %s361, 8
        %s363 = scalar_lea.vmem %s3, %s362
      $region64: #{stems_forward.9} parent=59 // pred_fallthru
        _
    $region60: #{stems_forward.9} parent=5 // pred_fallthru
      _
  $region6: #{stems_forward.9} parent=0 // loop_footer
    %s16 = sadd.s32 1, %s12
  $region7: #{stems_forward.9} parent=0 // loop_footer_branch
    %11 = sbr.rel target = $region3
  $region8: #{stems_forward.9} parent=0 // loop_exit
    _

// kernel: stems_forward.10
$region0: #{stems_forward.10}
  #allocation0 [shape = 'u32[]', space=smem, size = 0x4, offset = 0x4, fixed_abs, tag = 'smem constant byte address 0x4 - core index']
  #allocation1 [shape = 'u32[72,128]{1,0:T(1,128)}', space=vmem, size = 0x9000, scoped, tag = 'internal scratch']
  %s0 = inlined_call_operand.vmem [shape: f32[2,16,64], index: 0, kind: input, shape index: {}]
  %s1 = inlined_call_operand.vmem [shape: f32[1,64], index: 1, kind: input, shape index: {}]
  %s2 = inlined_call_operand.vmem [shape: f32[1,64], index: 2, kind: input, shape index: {}]
  %s3 = inlined_call_operand.vmem [shape: f32[1,64], index: 3, kind: input, shape index: {}]
  %s4 = inlined_call_operand.vmem [shape: f32[1,64], index: 4, kind: input, shape index: {}]
  %s5 = inlined_call_operand.vmem [shape: f32[2,20,64], index: 5, kind: output, shape index: {}]
  %s6 = sld [smem:[#allocation0]]
  $region53: #{stems_forward.10} parent=0
    _
  %s8 = ssub.s32 1, %s6
  %s9 = scalar_select 0, %s8, %s6
  loop: start=0, step=1, limit=4
  $region2: #{stems_forward.10} parent=0 // loop_pre_header
    _
  $region3: #{stems_forward.10} parent=0 // loop_header
    %s11 = sphi 0, %s15
    %p12 = scmp.ge.s32.totalorder %s11, 4
    %s21 = sphi 0, %s23
    %s24 = sphi 0, %s21
    %s25 = sphi 0, %s24
    %s41 = sphi 0, %s25
    %s45 = sphi 0, %s45
    %s47 = sphi 0, %s45
    %s48 = sphi 0, %s47
    %s62 = sphi 0, %s48
    %s66 = sphi 0, %s66
    %s68 = sphi 0, %s66
    %s69 = sphi 0, %s68
    %s83 = sphi 0, %s69
    %s87 = sphi 0, %s87
    %s89 = sphi 0, %s87
    %s90 = sphi 0, %s89
    %s104 = sphi 0, %s90
    %s108 = sphi 0, %s108
    %s110 = sphi 0, %s108
    %s111 = sphi 0, %s110
    %s125 = sphi 0, %s111
    %s131 = sphi 0, %s133
    %s134 = sphi 0, %s131
    %s135 = sphi 0, %s134
    %s151 = sphi 0, %s135
  $region4: #{stems_forward.10} parent=0 // loop_header_branch
    %14 = sbr.rel (%p12) target = $region8
  $region5: #{stems_forward.10} parent=0 // loop_body
    %s16 = ssub.s32 %s11, 1
    %s17 = ssub.s32 %s11, 2
    %s18 = sadd.s32 %s11, 1
    %s19 = ssub.s32 %s11, %s18
    %p20 = scmp.eq.s32.totalorder %s19, 0
    %s22 = sadd.s32 %s21, 1
    %s23 = scalar_select %p20, %s21, %s22
    %p26 = pneg %p20
    %p27 = scmp.eq.s32.totalorder %s11, 1
    %p28 = por %p26, %p27
    %p29 = scmp.ne.s32.totalorder %s21, %s24
    %p30 = scmp.eq.s32.totalorder %s11, 0
    %p31 = por %p29, %p30
    %p32 = scmp.ne.s32.totalorder %s21, %s24
    %p33 = scmp.eq.s32.totalorder %s16, 1
    %p34 = por %p32, %p33
    %p35 = scmp.ne.s32.totalorder %s24, %s25
    %p36 = scmp.eq.s32.totalorder %s16, 0
    %p37 = por %p35, %p36
    %p38 = scmp.ne.s32.totalorder %s24, %s25
    %p39 = scmp.eq.s32.totalorder %s17, 1
    %p40 = por %p38, %p39
    %p42 = scmp.ne.s32.totalorder %s25, %s41
    %p43 = scmp.eq.s32.totalorder %s17, 0
    %p44 = por %p42, %p43
    %s46 = sadd.s32 %s45, 1
    %p49 = scmp.eq.s32.totalorder %s11, 1
    %p50 = scmp.ne.s32.totalorder %s45, %s47
    %p51 = scmp.eq.s32.totalorder %s11, 0
    %p52 = por %p50, %p51
    %p53 = scmp.ne.s32.totalorder %s45, %s47
    %p54 = scmp.eq.s32.totalorder %s16, 1
    %p55 = por %p53, %p54
    %p56 = scmp.ne.s32.totalorder %s47, %s48
    %p57 = scmp.eq.s32.totalorder %s16, 0
    %p58 = por %p56, %p57
    %p59 = scmp.ne.s32.totalorder %s47, %s48
    %p60 = scmp.eq.s32.totalorder %s17, 1
    %p61 = por %p59, %p60
    %p63 = scmp.ne.s32.totalorder %s48, %s62
    %p64 = scmp.eq.s32.totalorder %s17, 0
    %p65 = por %p63, %p64
    %s67 = sadd.s32 %s66, 1
    %p70 = scmp.eq.s32.totalorder %s11, 1
    %p71 = scmp.ne.s32.totalorder %s66, %s68
    %p72 = scmp.eq.s32.totalorder %s11, 0
    %p73 = por %p71, %p72
    %p74 = scmp.ne.s32.totalorder %s66, %s68
    %p75 = scmp.eq.s32.totalorder %s16, 1
    %p76 = por %p74, %p75
    %p77 = scmp.ne.s32.totalorder %s68, %s69
    %p78 = scmp.eq.s32.totalorder %s16, 0
    %p79 = por %p77, %p78
    %p80 = scmp.ne.s32.totalorder %s68, %s69
    %p81 = scmp.eq.s32.totalorder %s17, 1
    %p82 = por %p80, %p81
    %p84 = scmp.ne.s32.totalorder %s69, %s83
    %p85 = scmp.eq.s32.totalorder %s17, 0
    %p86 = por %p84, %p85
    %s88 = sadd.s32 %s87, 1
    %p91 = scmp.eq.s32.totalorder %s11, 1
    %p92 = scmp.ne.s32.totalorder %s87, %s89
    %p93 = scmp.eq.s32.totalorder %s11, 0
    %p94 = por %p92, %p93
    %p95 = scmp.ne.s32.totalorder %s87, %s89
    %p96 = scmp.eq.s32.totalorder %s16, 1
    %p97 = por %p95, %p96
    %p98 = scmp.ne.s32.totalorder %s89, %s90
    %p99 = scmp.eq.s32.totalorder %s16, 0
    %p100 = por %p98, %p99
    %p101 = scmp.ne.s32.totalorder %s89, %s90
    %p102 = scmp.eq.s32.totalorder %s17, 1
    %p103 = por %p101, %p102
    %p105 = scmp.ne.s32.totalorder %s90, %s104
    %p106 = scmp.eq.s32.totalorder %s17, 0
    %p107 = por %p105, %p106
    %s109 = sadd.s32 %s108, 1
    %p112 = scmp.eq.s32.totalorder %s11, 1
    %p113 = scmp.ne.s32.totalorder %s108, %s110
    %p114 = scmp.eq.s32.totalorder %s11, 0
    %p115 = por %p113, %p114
    %p116 = scmp.ne.s32.totalorder %s108, %s110
    %p117 = scmp.eq.s32.totalorder %s16, 1
    %p118 = por %p116, %p117
    %p119 = scmp.ne.s32.totalorder %s110, %s111
    %p120 = scmp.eq.s32.totalorder %s16, 0
    %p121 = por %p119, %p120
    %p122 = scmp.ne.s32.totalorder %s110, %s111
    %p123 = scmp.eq.s32.totalorder %s17, 1
    %p124 = por %p122, %p123
    %p126 = scmp.ne.s32.totalorder %s111, %s125
    %p127 = scmp.eq.s32.totalorder %s17, 0
    %p128 = por %p126, %p127
    %s129 = ssub.s32 %s11, %s18
    %p130 = scmp.eq.s32.totalorder %s129, 0
    %s132 = sadd.s32 %s131, 1
    %s133 = scalar_select %p130, %s131, %s132
    %p136 = pneg %p130
    %p137 = scmp.eq.s32.totalorder %s11, 1
    %p138 = por %p136, %p137
    %p139 = scmp.ne.s32.totalorder %s131, %s134
    %p140 = scmp.eq.s32.totalorder %s11, 0
    %p141 = por %p139, %p140
    %p142 = scmp.ne.s32.totalorder %s131, %s134
    %p143 = scmp.eq.s32.totalorder %s16, 1
    %p144 = por %p142, %p143
    %p145 = scmp.ne.s32.totalorder %s134, %s135
    %p146 = scmp.eq.s32.totalorder %s16, 0
    %p147 = por %p145, %p146
    %p148 = scmp.ne.s32.totalorder %s134, %s135
    %p149 = scmp.eq.s32.totalorder %s17, 1
    %p150 = por %p148, %p149
    %p152 = scmp.ne.s32.totalorder %s135, %s151
    %p153 = scmp.eq.s32.totalorder %s17, 0
    %p154 = por %p152, %p153
    %p155 = scmp.le.s32.totalorder 1, %s11
    %p156 = scmp.lt.s32.totalorder %s11, 3
    %p157 = pnand %p155, %p156
    %p158 = pneg %p157
    // Predicated region
    $region9: #{stems_forward.10} parent=5 // pred_check
      _
    $region10: #{stems_forward.10} parent=5 // pred_check_branch
      %160 = sbr.rel (%p157) target = $region12
    $region11: #{stems_forward.10} parent=5 // pred_region
      %s161 = ssub.s32 %s11, 1
      // Predicated region
      $region13: #{stems_forward.10} parent=11 // pred_check
        %p162 = pneg %p58
      $region14: #{stems_forward.10} parent=11 // pred_check_branch
        %164 = sbr.rel (%p162) target = $region16
      $region15: #{stems_forward.10} parent=11 // pred_region
        _
      $region16: #{stems_forward.10} parent=11 // pred_fallthru
        _
      // Predicated region
      $region17: #{stems_forward.10} parent=11 // pred_check
        %p165 = pneg %p79
      $region18: #{stems_forward.10} parent=11 // pred_check_branch
        %167 = sbr.rel (%p165) target = $region20
      $region19: #{stems_forward.10} parent=11 // pred_region
        _
      $region20: #{stems_forward.10} parent=11 // pred_fallthru
        _
      // Predicated region
      $region21: #{stems_forward.10} parent=11 // pred_check
        %p168 = pneg %p100
      $region22: #{stems_forward.10} parent=11 // pred_check_branch
        %170 = sbr.rel (%p168) target = $region24
      $region23: #{stems_forward.10} parent=11 // pred_region
        _
      $region24: #{stems_forward.10} parent=11 // pred_fallthru
        _
      // Predicated region
      $region25: #{stems_forward.10} parent=11 // pred_check
        %p171 = pneg %p121
      $region26: #{stems_forward.10} parent=11 // pred_check_branch
        %173 = sbr.rel (%p171) target = $region28
      $region27: #{stems_forward.10} parent=11 // pred_region
        _
      $region28: #{stems_forward.10} parent=11 // pred_fallthru
        _
    $region12: #{stems_forward.10} parent=5 // pred_fallthru
      _
    %p174 = scmp.lt.s32.totalorder %s11, 2
    // Predicated region
    $region29: #{stems_forward.10} parent=5 // pred_check
      %p175 = pneg %p174
    $region30: #{stems_forward.10} parent=5 // pred_check_branch
      %177 = sbr.rel (%p175) target = $region32
    $region31: #{stems_forward.10} parent=5 // pred_region
      // Predicated region
      $region33: #{stems_forward.10} parent=31 // pred_check
        %p178 = pneg %p31
      $region34: #{stems_forward.10} parent=31 // pred_check_branch
        %180 = sbr.rel (%p178) target = $region36
      $region35: #{stems_forward.10} parent=31 // pred_region
        %p181 = scmp.lt.s32.totalorder %s11, 1
        %s182 = scalar_select %p181, %s11, 1
        %s183 = smul.addr %s182, 2
        %s184 = smul.addr %s183, 8
        %s185 = scalar_lea.vmem %s0, %s184
      $region36: #{stems_forward.10} parent=31 // pred_fallthru
        _
    $region32: #{stems_forward.10} parent=5 // pred_fallthru
      _
    %p186 = scmp.le.s32.totalorder 1, %s11
    %p187 = scmp.lt.s32.totalorder %s11, 3
    %p188 = pnand %p186, %p187
    %p189 = pneg %p188
    // Predicated region
    $region37: #{stems_forward.10} parent=5 // pred_check
      _
    $region38: #{stems_forward.10} parent=5 // pred_check_branch
      %191 = sbr.rel (%p188) target = $region40
    $region39: #{stems_forward.10} parent=5 // pred_region
      %s192 = ssub.s32 %s11, 1
      %p193 = scmp.lt.s32.totalorder %s16, 1
      %s194 = scalar_select %p193, %s16, 1
      %s195 = smul.addr %s194, 2
      %s196 = smul.addr %s195, 8
      %s197 = scalar_lea.vmem %s0, %s196
      %p198 = pneg %p37
      %p199 = pneg %p34
      %p200 = pneg %p58
      %p201 = pneg %p55
      %p202 = pneg %p79
      %p203 = pneg %p76
      %p204 = pneg %p100
      %p205 = pneg %p97
      %p206 = pneg %p121
      %p207 = pneg %p118
      %p208 = pneg %p147
      %p209 = pneg %p144
      %p210 = scmp.lt.s32.totalorder %s16, 1
      %s211 = scalar_select %p210, %s16, 1
      %s212 = smul.addr %s211, 3
      %s213 = smul.addr %s212, 8
      %s214 = scalar_lea.vmem %s5, %s213
      %p215 = scmp.lt.s32.totalorder %s16, 1
      %s216 = scalar_select %p215, %s16, 1
      %s217 = smul.addr %s216, 2
      %s218 = smul.addr %s217, 8
      %s219 = scalar_lea.vmem %s0, %s218
      %p220 = scmp.lt.s32.totalorder %s16, 1
      %s221 = scalar_select %p220, %s16, 1
      %s222 = smul.addr %s221, 3
      %s223 = smul.addr %s222, 8
      %s224 = scalar_lea.vmem %s5, %s223
      %v225 = vld [vmem:[%s1] sm:$0x1]
      %v226 = vmul.f32 %v225, 0.03125
      %v227 = vld [vmem:[%s2] sm:$0x1]
      %v228 = vmul.f32 %v227, 0.03125
      %v229 = vmul.f32 %v226, %v226
      %v230 = vsub.f32 %v228, %v229
      %v231 = vadd.f32 %v230, 1e-05
      %v232 = vrsqrt.pop %v231
      %v233 = vmul.f32 %v232, %v231
      %v234 = vmul.f32 %v233, %v232
      %v235 = vmul.f32 0.5, %v234
      %v236 = vsub.f32 1.5, %v235
      %v237 = vmul.f32 %v232, %v236
      %vm238 = vweird.f32 %v231
      %vm239 = vweird.f32 %v232
      %vm240 = vmor %vm238, %vm239
      %v241 = vsel %vm240, %v232, %v237
      %v242 = vld [vmem:[%s3] sm:$0x1]
      %v243 = vmul.f32 %v241, %v242
      %v244 = vld [vmem:[%s4] sm:$0x1]
      %v245 = vmul.f32 %v226, %v243
      %v246 = vsub.f32 %v244, %v245
      %v247 = vld [vmem:[%s219] sm:$0xff]
      %v248 = vld [vmem:[%s219 + $0x8] sm:$0xff]
      %v250 = vperm.slane %v243, 0
      %v252 = vmul.f32 %v247, %v250
      %v253 = vmul.f32 %v248, %v250
      %v255 = vperm.slane %v246, 0
      %v257 = vadd.f32 %v252, %v255
      %v258 = vadd.f32 %v253, %v255
      %v259 = vmax.f32 %v257, 0.0
      %v260 = vmax.f32 %v258, 0.0
      %vm263 = vcmask 1043456
      %v264 = vrot.slane %v259, 4
      %v265 = vrot.slane %v260, 4
      %v266 = vsel %vm263, %v264, %v265
      %v270 = vsel %vm263, 0.0, %v264
      %vm271 = vcmask 523264
      %272 = vst.msk [vmem:[%s224] sm:$0xff] %vm271, %v270
      %273 = vst.msk [vmem:[%s224 + $0x8] sm:$0xff] %vm271, %v266
      %vm274 = vcmask 519168
      %275 = vst.msk [vmem:[%s224 + $0x10] sm:$0xf] %vm274, %v265
      %p276 = scmp.lt.s32.totalorder %s16, 1
      %s277 = scalar_select %p276, %s16, 1
      %s278 = smul.addr %s277, 3
      %s279 = smul.addr %s278, 8
      %s280 = scalar_lea.vmem %s5, %s279
      // Predicated region
      $region41: #{stems_forward.10} parent=39 // pred_check
        %p281 = pneg %p144
      $region42: #{stems_forward.10} parent=39 // pred_check_branch
        %283 = sbr.rel (%p281) target = $region44
      $region43: #{stems_forward.10} parent=39 // pred_region
        _
      $region44: #{stems_forward.10} parent=39 // pred_fallthru
        _
    $region40: #{stems_forward.10} parent=5 // pred_fallthru
      _
    %p284 = scmp.le.s32.totalorder 2, %s11
    // Predicated region
    $region45: #{stems_forward.10} parent=5 // pred_check
      %p285 = pneg %p284
    $region46: #{stems_forward.10} parent=5 // pred_check_branch
      %287 = sbr.rel (%p285) target = $region48
    $region47: #{stems_forward.10} parent=5 // pred_region
      %s288 = ssub.s32 %s11, 2
      // Predicated region
      $region49: #{stems_forward.10} parent=47 // pred_check
        %p289 = pneg %p150
      $region50: #{stems_forward.10} parent=47 // pred_check_branch
        %291 = sbr.rel (%p289) target = $region52
      $region51: #{stems_forward.10} parent=47 // pred_region
        %p292 = scmp.lt.s32.totalorder %s17, 1
        %s293 = scalar_select %p292, %s17, 1
        %s294 = smul.addr %s293, 3
        %s295 = smul.addr %s294, 8
        %s296 = scalar_lea.vmem %s5, %s295
      $region52: #{stems_forward.10} parent=47 // pred_fallthru
        _
    $region48: #{stems_forward.10} parent=5 // pred_fallthru
      _
  $region6: #{stems_forward.10} parent=0 // loop_footer
    %s15 = sadd.s32 1, %s11
  $region7: #{stems_forward.10} parent=0 // loop_footer_branch
    %10 = sbr.rel target = $region3
  $region8: #{stems_forward.10} parent=0 // loop_exit
    _

// kernel: stems_forward.12
$region0: #{stems_forward.12}
  #allocation0 [shape = 'u32[]', space=smem, size = 0x4, offset = 0x4, fixed_abs, tag = 'smem constant byte address 0x4 - core index']
  #allocation1 [shape = 'u32[72,128]{1,0:T(1,128)}', space=vmem, size = 0x9000, scoped, tag = 'internal scratch']
  %s0 = inlined_call_operand.vmem [shape: f32[2,16,64], index: 0, kind: input, shape index: {}]
  %s1 = inlined_call_operand.vmem [shape: f32[1,64], index: 1, kind: input, shape index: {}]
  %s2 = inlined_call_operand.vmem [shape: f32[1,64], index: 2, kind: input, shape index: {}]
  %s3 = inlined_call_operand.vmem [shape: f32[1,64], index: 3, kind: input, shape index: {}]
  %s4 = inlined_call_operand.vmem [shape: f32[1,64], index: 4, kind: input, shape index: {}]
  %s5 = inlined_call_operand.vmem [shape: f32[2,24,64], index: 5, kind: output, shape index: {}]
  %s6 = sld [smem:[#allocation0]]
  $region53: #{stems_forward.12} parent=0
    _
  %s8 = ssub.s32 1, %s6
  %s9 = scalar_select 0, %s8, %s6
  loop: start=0, step=1, limit=4
  $region2: #{stems_forward.12} parent=0 // loop_pre_header
    _
  $region3: #{stems_forward.12} parent=0 // loop_header
    %s11 = sphi 0, %s15
    %p12 = scmp.ge.s32.totalorder %s11, 4
    %s21 = sphi 0, %s23
    %s24 = sphi 0, %s21
    %s25 = sphi 0, %s24
    %s41 = sphi 0, %s25
    %s45 = sphi 0, %s45
    %s47 = sphi 0, %s45
    %s48 = sphi 0, %s47
    %s62 = sphi 0, %s48
    %s66 = sphi 0, %s66
    %s68 = sphi 0, %s66
    %s69 = sphi 0, %s68
    %s83 = sphi 0, %s69
    %s87 = sphi 0, %s87
    %s89 = sphi 0, %s87
    %s90 = sphi 0, %s89
    %s104 = sphi 0, %s90
    %s108 = sphi 0, %s108
    %s110 = sphi 0, %s108
    %s111 = sphi 0, %s110
    %s125 = sphi 0, %s111
    %s131 = sphi 0, %s133
    %s134 = sphi 0, %s131
    %s135 = sphi 0, %s134
    %s151 = sphi 0, %s135
  $region4: #{stems_forward.12} parent=0 // loop_header_branch
    %14 = sbr.rel (%p12) target = $region8
  $region5: #{stems_forward.12} parent=0 // loop_body
    %s16 = ssub.s32 %s11, 1
    %s17 = ssub.s32 %s11, 2
    %s18 = sadd.s32 %s11, 1
    %s19 = ssub.s32 %s11, %s18
    %p20 = scmp.eq.s32.totalorder %s19, 0
    %s22 = sadd.s32 %s21, 1
    %s23 = scalar_select %p20, %s21, %s22
    %p26 = pneg %p20
    %p27 = scmp.eq.s32.totalorder %s11, 1
    %p28 = por %p26, %p27
    %p29 = scmp.ne.s32.totalorder %s21, %s24
    %p30 = scmp.eq.s32.totalorder %s11, 0
    %p31 = por %p29, %p30
    %p32 = scmp.ne.s32.totalorder %s21, %s24
    %p33 = scmp.eq.s32.totalorder %s16, 1
    %p34 = por %p32, %p33
    %p35 = scmp.ne.s32.totalorder %s24, %s25
    %p36 = scmp.eq.s32.totalorder %s16, 0
    %p37 = por %p35, %p36
    %p38 = scmp.ne.s32.totalorder %s24, %s25
    %p39 = scmp.eq.s32.totalorder %s17, 1
    %p40 = por %p38, %p39
    %p42 = scmp.ne.s32.totalorder %s25, %s41
    %p43 = scmp.eq.s32.totalorder %s17, 0
    %p44 = por %p42, %p43
    %s46 = sadd.s32 %s45, 1
    %p49 = scmp.eq.s32.totalorder %s11, 1
    %p50 = scmp.ne.s32.totalorder %s45, %s47
    %p51 = scmp.eq.s32.totalorder %s11, 0
    %p52 = por %p50, %p51
    %p53 = scmp.ne.s32.totalorder %s45, %s47
    %p54 = scmp.eq.s32.totalorder %s16, 1
    %p55 = por %p53, %p54
    %p56 = scmp.ne.s32.totalorder %s47, %s48
    %p57 = scmp.eq.s32.totalorder %s16, 0
    %p58 = por %p56, %p57
    %p59 = scmp.ne.s32.totalorder %s47, %s48
    %p60 = scmp.eq.s32.totalorder %s17, 1
    %p61 = por %p59, %p60
    %p63 = scmp.ne.s32.totalorder %s48, %s62
    %p64 = scmp.eq.s32.totalorder %s17, 0
    %p65 = por %p63, %p64
    %s67 = sadd.s32 %s66, 1
    %p70 = scmp.eq.s32.totalorder %s11, 1
    %p71 = scmp.ne.s32.totalorder %s66, %s68
    %p72 = scmp.eq.s32.totalorder %s11, 0
    %p73 = por %p71, %p72
    %p74 = scmp.ne.s32.totalorder %s66, %s68
    %p75 = scmp.eq.s32.totalorder %s16, 1
    %p76 = por %p74, %p75
    %p77 = scmp.ne.s32.totalorder %s68, %s69
    %p78 = scmp.eq.s32.totalorder %s16, 0
    %p79 = por %p77, %p78
    %p80 = scmp.ne.s32.totalorder %s68, %s69
    %p81 = scmp.eq.s32.totalorder %s17, 1
    %p82 = por %p80, %p81
    %p84 = scmp.ne.s32.totalorder %s69, %s83
    %p85 = scmp.eq.s32.totalorder %s17, 0
    %p86 = por %p84, %p85
    %s88 = sadd.s32 %s87, 1
    %p91 = scmp.eq.s32.totalorder %s11, 1
    %p92 = scmp.ne.s32.totalorder %s87, %s89
    %p93 = scmp.eq.s32.totalorder %s11, 0
    %p94 = por %p92, %p93
    %p95 = scmp.ne.s32.totalorder %s87, %s89
    %p96 = scmp.eq.s32.totalorder %s16, 1
    %p97 = por %p95, %p96
    %p98 = scmp.ne.s32.totalorder %s89, %s90
    %p99 = scmp.eq.s32.totalorder %s16, 0
    %p100 = por %p98, %p99
    %p101 = scmp.ne.s32.totalorder %s89, %s90
    %p102 = scmp.eq.s32.totalorder %s17, 1
    %p103 = por %p101, %p102
    %p105 = scmp.ne.s32.totalorder %s90, %s104
    %p106 = scmp.eq.s32.totalorder %s17, 0
    %p107 = por %p105, %p106
    %s109 = sadd.s32 %s108, 1
    %p112 = scmp.eq.s32.totalorder %s11, 1
    %p113 = scmp.ne.s32.totalorder %s108, %s110
    %p114 = scmp.eq.s32.totalorder %s11, 0
    %p115 = por %p113, %p114
    %p116 = scmp.ne.s32.totalorder %s108, %s110
    %p117 = scmp.eq.s32.totalorder %s16, 1
    %p118 = por %p116, %p117
    %p119 = scmp.ne.s32.totalorder %s110, %s111
    %p120 = scmp.eq.s32.totalorder %s16, 0
    %p121 = por %p119, %p120
    %p122 = scmp.ne.s32.totalorder %s110, %s111
    %p123 = scmp.eq.s32.totalorder %s17, 1
    %p124 = por %p122, %p123
    %p126 = scmp.ne.s32.totalorder %s111, %s125
    %p127 = scmp.eq.s32.totalorder %s17, 0
    %p128 = por %p126, %p127
    %s129 = ssub.s32 %s11, %s18
    %p130 = scmp.eq.s32.totalorder %s129, 0
    %s132 = sadd.s32 %s131, 1
    %s133 = scalar_select %p130, %s131, %s132
    %p136 = pneg %p130
    %p137 = scmp.eq.s32.totalorder %s11, 1
    %p138 = por %p136, %p137
    %p139 = scmp.ne.s32.totalorder %s131, %s134
    %p140 = scmp.eq.s32.totalorder %s11, 0
    %p141 = por %p139, %p140
    %p142 = scmp.ne.s32.totalorder %s131, %s134
    %p143 = scmp.eq.s32.totalorder %s16, 1
    %p144 = por %p142, %p143
    %p145 = scmp.ne.s32.totalorder %s134, %s135
    %p146 = scmp.eq.s32.totalorder %s16, 0
    %p147 = por %p145, %p146
    %p148 = scmp.ne.s32.totalorder %s134, %s135
    %p149 = scmp.eq.s32.totalorder %s17, 1
    %p150 = por %p148, %p149
    %p152 = scmp.ne.s32.totalorder %s135, %s151
    %p153 = scmp.eq.s32.totalorder %s17, 0
    %p154 = por %p152, %p153
    %p155 = scmp.le.s32.totalorder 1, %s11
    %p156 = scmp.lt.s32.totalorder %s11, 3
    %p157 = pnand %p155, %p156
    %p158 = pneg %p157
    // Predicated region
    $region9: #{stems_forward.12} parent=5 // pred_check
      _
    $region10: #{stems_forward.12} parent=5 // pred_check_branch
      %160 = sbr.rel (%p157) target = $region12
    $region11: #{stems_forward.12} parent=5 // pred_region
      %s161 = ssub.s32 %s11, 1
      // Predicated region
      $region13: #{stems_forward.12} parent=11 // pred_check
        %p162 = pneg %p58
      $region14: #{stems_forward.12} parent=11 // pred_check_branch
        %164 = sbr.rel (%p162) target = $region16
      $region15: #{stems_forward.12} parent=11 // pred_region
        _
      $region16: #{stems_forward.12} parent=11 // pred_fallthru
        _
      // Predicated region
      $region17: #{stems_forward.12} parent=11 // pred_check
        %p165 = pneg %p79
      $region18: #{stems_forward.12} parent=11 // pred_check_branch
        %167 = sbr.rel (%p165) target = $region20
      $region19: #{stems_forward.12} parent=11 // pred_region
        _
      $region20: #{stems_forward.12} parent=11 // pred_fallthru
        _
      // Predicated region
      $region21: #{stems_forward.12} parent=11 // pred_check
        %p168 = pneg %p100
      $region22: #{stems_forward.12} parent=11 // pred_check_branch
        %170 = sbr.rel (%p168) target = $region24
      $region23: #{stems_forward.12} parent=11 // pred_region
        _
      $region24: #{stems_forward.12} parent=11 // pred_fallthru
        _
      // Predicated region
      $region25: #{stems_forward.12} parent=11 // pred_check
        %p171 = pneg %p121
      $region26: #{stems_forward.12} parent=11 // pred_check_branch
        %173 = sbr.rel (%p171) target = $region28
      $region27: #{stems_forward.12} parent=11 // pred_region
        _
      $region28: #{stems_forward.12} parent=11 // pred_fallthru
        _
    $region12: #{stems_forward.12} parent=5 // pred_fallthru
      _
    %p174 = scmp.lt.s32.totalorder %s11, 2
    // Predicated region
    $region29: #{stems_forward.12} parent=5 // pred_check
      %p175 = pneg %p174
    $region30: #{stems_forward.12} parent=5 // pred_check_branch
      %177 = sbr.rel (%p175) target = $region32
    $region31: #{stems_forward.12} parent=5 // pred_region
      // Predicated region
      $region33: #{stems_forward.12} parent=31 // pred_check
        %p178 = pneg %p31
      $region34: #{stems_forward.12} parent=31 // pred_check_branch
        %180 = sbr.rel (%p178) target = $region36
      $region35: #{stems_forward.12} parent=31 // pred_region
        %p181 = scmp.lt.s32.totalorder %s11, 1
        %s182 = scalar_select %p181, %s11, 1
        %s183 = smul.addr %s182, 2
        %s184 = smul.addr %s183, 8
        %s185 = scalar_lea.vmem %s0, %s184
      $region36: #{stems_forward.12} parent=31 // pred_fallthru
        _
    $region32: #{stems_forward.12} parent=5 // pred_fallthru
      _
    %p186 = scmp.le.s32.totalorder 1, %s11
    %p187 = scmp.lt.s32.totalorder %s11, 3
    %p188 = pnand %p186, %p187
    %p189 = pneg %p188
    // Predicated region
    $region37: #{stems_forward.12} parent=5 // pred_check
      _
    $region38: #{stems_forward.12} parent=5 // pred_check_branch
      %191 = sbr.rel (%p188) target = $region40
    $region39: #{stems_forward.12} parent=5 // pred_region
      %s192 = ssub.s32 %s11, 1
      %p193 = scmp.lt.s32.totalorder %s16, 1
      %s194 = scalar_select %p193, %s16, 1
      %s195 = smul.addr %s194, 2
      %s196 = smul.addr %s195, 8
      %s197 = scalar_lea.vmem %s0, %s196
      %p198 = pneg %p37
      %p199 = pneg %p34
      %p200 = pneg %p58
      %p201 = pneg %p55
      %p202 = pneg %p79
      %p203 = pneg %p76
      %p204 = pneg %p100
      %p205 = pneg %p97
      %p206 = pneg %p121
      %p207 = pneg %p118
      %p208 = pneg %p147
      %p209 = pneg %p144
      %p210 = scmp.lt.s32.totalorder %s16, 1
      %s211 = scalar_select %p210, %s16, 1
      %s212 = smul.addr %s211, 3
      %s213 = smul.addr %s212, 8
      %s214 = scalar_lea.vmem %s5, %s213
      %p215 = scmp.lt.s32.totalorder %s16, 1
      %s216 = scalar_select %p215, %s16, 1
      %s217 = smul.addr %s216, 2
      %s218 = smul.addr %s217, 8
      %s219 = scalar_lea.vmem %s0, %s218
      %p220 = scmp.lt.s32.totalorder %s16, 1
      %s221 = scalar_select %p220, %s16, 1
      %s222 = smul.addr %s221, 3
      %s223 = smul.addr %s222, 8
      %s224 = scalar_lea.vmem %s5, %s223
      %v225 = vld [vmem:[%s1] sm:$0x1]
      %v226 = vmul.f32 %v225, 0.03125
      %v227 = vld [vmem:[%s2] sm:$0x1]
      %v228 = vmul.f32 %v227, 0.03125
      %v229 = vmul.f32 %v226, %v226
      %v230 = vsub.f32 %v228, %v229
      %v231 = vadd.f32 %v230, 1e-05
      %v232 = vrsqrt.pop %v231
      %v233 = vmul.f32 %v232, %v231
      %v234 = vmul.f32 %v233, %v232
      %v235 = vmul.f32 0.5, %v234
      %v236 = vsub.f32 1.5, %v235
      %v237 = vmul.f32 %v232, %v236
      %vm238 = vweird.f32 %v231
      %vm239 = vweird.f32 %v232
      %vm240 = vmor %vm238, %vm239
      %v241 = vsel %vm240, %v232, %v237
      %v242 = vld [vmem:[%s3] sm:$0x1]
      %v243 = vmul.f32 %v241, %v242
      %v244 = vld [vmem:[%s4] sm:$0x1]
      %v245 = vmul.f32 %v226, %v243
      %v246 = vsub.f32 %v244, %v245
      %v247 = vld [vmem:[%s219] sm:$0xff]
      %v248 = vld [vmem:[%s219 + $0x8] sm:$0xff]
      %v250 = vperm.slane %v243, 0
      %v252 = vmul.f32 %v247, %v250
      %v253 = vmul.f32 %v248, %v250
      %v255 = vperm.slane %v246, 0
      %v257 = vadd.f32 %v252, %v255
      %v258 = vadd.f32 %v253, %v255
      %v259 = vmax.f32 %v257, 0.0
      %v260 = vmax.f32 %v258, 0.0
      %vm261 = vcmask 523264
      %262 = vst.msk [vmem:[%s224] sm:$0xff] %vm261, 0.0
      %263 = vst.msk [vmem:[%s224 + $0x8] sm:$0xff] %vm261, %v259
      %264 = vst.msk [vmem:[%s224 + $0x10] sm:$0xff] %vm261, %v260
      %p265 = scmp.lt.s32.totalorder %s16, 1
      %s266 = scalar_select %p265, %s16, 1
      %s267 = smul.addr %s266, 3
      %s268 = smul.addr %s267, 8
      %s269 = scalar_lea.vmem %s5, %s268
      // Predicated region
      $region41: #{stems_forward.12} parent=39 // pred_check
        %p270 = pneg %p144
      $region42: #{stems_forward.12} parent=39 // pred_check_branch
        %272 = sbr.rel (%p270) target = $region44
      $region43: #{stems_forward.12} parent=39 // pred_region
        _
      $region44: #{stems_forward.12} parent=39 // pred_fallthru
        _
    $region40: #{stems_forward.12} parent=5 // pred_fallthru
      _
    %p273 = scmp.le.s32.totalorder 2, %s11
    // Predicated region
    $region45: #{stems_forward.12} parent=5 // pred_check
      %p274 = pneg %p273
    $region46: #{stems_forward.12} parent=5 // pred_check_branch
      %276 = sbr.rel (%p274) target = $region48
    $region47: #{stems_forward.12} parent=5 // pred_region
      %s277 = ssub.s32 %s11, 2
      // Predicated region
      $region49: #{stems_forward.12} parent=47 // pred_check
        %p278 = pneg %p150
      $region50: #{stems_forward.12} parent=47 // pred_check_branch
        %280 = sbr.rel (%p278) target = $region52
      $region51: #{stems_forward.12} parent=47 // pred_region
        %p281 = scmp.lt.s32.totalorder %s17, 1
        %s282 = scalar_select %p281, %s17, 1
        %s283 = smul.addr %s282, 3
        %s284 = smul.addr %s283, 8
        %s285 = scalar_lea.vmem %s5, %s284
      $region52: #{stems_forward.12} parent=47 // pred_fallthru
        _
    $region48: #{stems_forward.12} parent=5 // pred_fallthru
      _
  $region6: #{stems_forward.12} parent=0 // loop_footer
    %s15 = sadd.s32 1, %s11
  $region7: #{stems_forward.12} parent=0 // loop_footer_branch
    %10 = sbr.rel target = $region3
  $region8: #{stems_forward.12} parent=0 // loop_exit
    _

// kernel: stems_forward.11
$region0: #{stems_forward.11}
  #allocation0 [shape = 'u32[]', space=smem, size = 0x4, offset = 0x4, fixed_abs, tag = 'smem constant byte address 0x4 - core index']
  #allocation1 [shape = 'u32[72,128]{1,0:T(1,128)}', space=vmem, size = 0x9000, scoped, tag = 'internal scratch']
  %s0 = inlined_call_operand.vmem [shape: f32[2,20,64], index: 0, kind: input, shape index: {}]
  %s1 = inlined_call_operand.vmem [shape: f32[3,64,64], index: 1, kind: input, shape index: {}]
  %s2 = inlined_call_operand.vmem [shape: f32[1,64], index: 2, kind: input, shape index: {}]
  %s3 = inlined_call_operand.vmem [shape: f32[2,16,64], index: 3, kind: output, shape index: {0}]
  %s4 = inlined_call_operand.vmem [shape: f32[1,64], index: 4, kind: output, shape index: {1}]
  %s5 = inlined_call_operand.vmem [shape: f32[1,64], index: 5, kind: output, shape index: {2}]
  %6 = xla_tuple %s3, %s4, %s5
  %s7 = sld [smem:[#allocation0]]
  $region65: #{stems_forward.11} parent=0
    _
  %s9 = ssub.s32 1, %s7
  %s10 = scalar_select 0, %s9, %s7
  loop: start=0, step=1, limit=4
  $region2: #{stems_forward.11} parent=0 // loop_pre_header
    _
  $region3: #{stems_forward.11} parent=0 // loop_header
    %s12 = sphi 0, %s16
    %p13 = scmp.ge.s32.totalorder %s12, 4
    %s22 = sphi 0, %s24
    %s25 = sphi 0, %s22
    %s26 = sphi 0, %s25
    %s42 = sphi 0, %s26
    %s46 = sphi 0, %s46
    %s48 = sphi 0, %s46
    %s49 = sphi 0, %s48
    %s63 = sphi 0, %s49
    %s67 = sphi 0, %s67
    %s69 = sphi 0, %s67
    %s70 = sphi 0, %s69
    %s84 = sphi 0, %s70
    %s90 = sphi 0, %s92
    %s93 = sphi 0, %s90
    %s94 = sphi 0, %s93
    %s110 = sphi 0, %s94
    %s114 = sphi 0, %s114
    %s116 = sphi 0, %s114
    %s117 = sphi 0, %s116
    %s131 = sphi 0, %s117
    %s135 = sphi 0, %s135
    %s137 = sphi 0, %s135
    %s138 = sphi 0, %s137
    %s152 = sphi 0, %s138
  $region4: #{stems_forward.11} parent=0 // loop_header_branch
    %15 = sbr.rel (%p13) target = $region8
  $region5: #{stems_forward.11} parent=0 // loop_body
    %s17 = ssub.s32 %s12, 1
    %s18 = ssub.s32 %s12, 2
    %s19 = sadd.s32 %s12, 1
    %s20 = ssub.s32 %s12, %s19
    %p21 = scmp.eq.s32.totalorder %s20, 0
    %s23 = sadd.s32 %s22, 1
    %s24 = scalar_select %p21, %s22, %s23
    %p27 = pneg %p21
    %p28 = scmp.eq.s32.totalorder %s12, 1
    %p29 = por %p27, %p28
    %p30 = scmp.ne.s32.totalorder %s22, %s25
    %p31 = scmp.eq.s32.totalorder %s12, 0
    %p32 = por %p30, %p31
    %p33 = scmp.ne.s32.totalorder %s22, %s25
    %p34 = scmp.eq.s32.totalorder %s17, 1
    %p35 = por %p33, %p34
    %p36 = scmp.ne.s32.totalorder %s25, %s26
    %p37 = scmp.eq.s32.totalorder %s17, 0
    %p38 = por %p36, %p37
    %p39 = scmp.ne.s32.totalorder %s25, %s26
    %p40 = scmp.eq.s32.totalorder %s18, 1
    %p41 = por %p39, %p40
    %p43 = scmp.ne.s32.totalorder %s26, %s42
    %p44 = scmp.eq.s32.totalorder %s18, 0
    %p45 = por %p43, %p44
    %s47 = sadd.s32 %s46, 1
    %p50 = scmp.eq.s32.totalorder %s12, 1
    %p51 = scmp.ne.s32.totalorder %s46, %s48
    %p52 = scmp.eq.s32.totalorder %s12, 0
    %p53 = por %p51, %p52
    %p54 = scmp.ne.s32.totalorder %s46, %s48
    %p55 = scmp.eq.s32.totalorder %s17, 1
    %p56 = por %p54, %p55
    %p57 = scmp.ne.s32.totalorder %s48, %s49
    %p58 = scmp.eq.s32.totalorder %s17, 0
    %p59 = por %p57, %p58
    %p60 = scmp.ne.s32.totalorder %s48, %s49
    %p61 = scmp.eq.s32.totalorder %s18, 1
    %p62 = por %p60, %p61
    %p64 = scmp.ne.s32.totalorder %s49, %s63
    %p65 = scmp.eq.s32.totalorder %s18, 0
    %p66 = por %p64, %p65
    %s68 = sadd.s32 %s67, 1
    %p71 = scmp.eq.s32.totalorder %s12, 1
    %p72 = scmp.ne.s32.totalorder %s67, %s69
    %p73 = scmp.eq.s32.totalorder %s12, 0
    %p74 = por %p72, %p73
    %p75 = scmp.ne.s32.totalorder %s67, %s69
    %p76 = scmp.eq.s32.totalorder %s17, 1
    %p77 = por %p75, %p76
    %p78 = scmp.ne.s32.totalorder %s69, %s70
    %p79 = scmp.eq.s32.totalorder %s17, 0
    %p80 = por %p78, %p79
    %p81 = scmp.ne.s32.totalorder %s69, %s70
    %p82 = scmp.eq.s32.totalorder %s18, 1
    %p83 = por %p81, %p82
    %p85 = scmp.ne.s32.totalorder %s70, %s84
    %p86 = scmp.eq.s32.totalorder %s18, 0
    %p87 = por %p85, %p86
    %s88 = ssub.s32 %s12, %s19
    %p89 = scmp.eq.s32.totalorder %s88, 0
    %s91 = sadd.s32 %s90, 1
    %s92 = scalar_select %p89, %s90, %s91
    %p95 = pneg %p89
    %p96 = scmp.eq.s32.totalorder %s12, 1
    %p97 = por %p95, %p96
    %p98 = scmp.ne.s32.totalorder %s90, %s93
    %p99 = scmp.eq.s32.totalorder %s12, 0
    %p100 = por %p98, %p99
    %p101 = scmp.ne.s32.totalorder %s90, %s93
    %p102 = scmp.eq.s32.totalorder %s17, 1
    %p103 = por %p101, %p102
    %p104 = scmp.ne.s32.totalorder %s93, %s94
    %p105 = scmp.eq.s32.totalorder %s17, 0
    %p106 = por %p104, %p105
    %p107 = scmp.ne.s32.totalorder %s93, %s94
    %p108 = scmp.eq.s32.totalorder %s18, 1
    %p109 = por %p107, %p108
    %p111 = scmp.ne.s32.totalorder %s94, %s110
    %p112 = scmp.eq.s32.totalorder %s18, 0
    %p113 = por %p111, %p112
    %s115 = sadd.s32 %s114, 1
    %p118 = scmp.eq.s32.totalorder %s12, 1
    %p119 = scmp.ne.s32.totalorder %s114, %s116
    %p120 = scmp.eq.s32.totalorder %s12, 0
    %p121 = por %p119, %p120
    %p122 = scmp.ne.s32.totalorder %s114, %s116
    %p123 = scmp.eq.s32.totalorder %s17, 1
    %p124 = por %p122, %p123
    %p125 = scmp.ne.s32.totalorder %s116, %s117
    %p126 = scmp.eq.s32.totalorder %s17, 0
    %p127 = por %p125, %p126
    %p128 = scmp.ne.s32.totalorder %s116, %s117
    %p129 = scmp.eq.s32.totalorder %s18, 1
    %p130 = por %p128, %p129
    %p132 = scmp.ne.s32.totalorder %s117, %s131
    %p133 = scmp.eq.s32.totalorder %s18, 0
    %p134 = por %p132, %p133
    %s136 = sadd.s32 %s135, 1
    %p139 = scmp.eq.s32.totalorder %s12, 1
    %p140 = scmp.ne.s32.totalorder %s135, %s137
    %p141 = scmp.eq.s32.totalorder %s12, 0
    %p142 = por %p140, %p141
    %p143 = scmp.ne.s32.totalorder %s135, %s137
    %p144 = scmp.eq.s32.totalorder %s17, 1
    %p145 = por %p143, %p144
    %p146 = scmp.ne.s32.totalorder %s137, %s138
    %p147 = scmp.eq.s32.totalorder %s17, 0
    %p148 = por %p146, %p147
    %p149 = scmp.ne.s32.totalorder %s137, %s138
    %p150 = scmp.eq.s32.totalorder %s18, 1
    %p151 = por %p149, %p150
    %p153 = scmp.ne.s32.totalorder %s138, %s152
    %p154 = scmp.eq.s32.totalorder %s18, 0
    %p155 = por %p153, %p154
    %p156 = scmp.le.s32.totalorder 1, %s12
    %p157 = scmp.lt.s32.totalorder %s12, 3
    %p158 = pnand %p156, %p157
    %p159 = pneg %p158
    // Predicated region
    $region9: #{stems_forward.11} parent=5 // pred_check
      _
    $region10: #{stems_forward.11} parent=5 // pred_check_branch
      %161 = sbr.rel (%p158) target = $region12
    $region11: #{stems_forward.11} parent=5 // pred_region
      %s162 = ssub.s32 %s12, 1
      // Predicated region
      $region13: #{stems_forward.11} parent=11 // pred_check
        %p163 = pneg %p59
      $region14: #{stems_forward.11} parent=11 // pred_check_branch
        %165 = sbr.rel (%p163) target = $region16
      $region15: #{stems_forward.11} parent=11 // pred_region
        _
      $region16: #{stems_forward.11} parent=11 // pred_fallthru
        _
      // Predicated region
      $region17: #{stems_forward.11} parent=11 // pred_check
        %p166 = pneg %p80
      $region18: #{stems_forward.11} parent=11 // pred_check_branch
        %168 = sbr.rel (%p166) target = $region20
      $region19: #{stems_forward.11} parent=11 // pred_region
        _
      $region20: #{stems_forward.11} parent=11 // pred_fallthru
        _
    $region12: #{stems_forward.11} parent=5 // pred_fallthru
      _
    %p169 = scmp.lt.s32.totalorder %s12, 2
    // Predicated region
    $region21: #{stems_forward.11} parent=5 // pred_check
      %p170 = pneg %p169
    $region22: #{stems_forward.11} parent=5 // pred_check_branch
      %172 = sbr.rel (%p170) target = $region24
    $region23: #{stems_forward.11} parent=5 // pred_region
      // Predicated region
      $region25: #{stems_forward.11} parent=23 // pred_check
        %p173 = pneg %p32
      $region26: #{stems_forward.11} parent=23 // pred_check_branch
        %175 = sbr.rel (%p173) target = $region28
      $region27: #{stems_forward.11} parent=23 // pred_region
        %p176 = scmp.lt.s32.totalorder %s12, 1
        %s177 = scalar_select %p176, %s12, 1
        %s178 = smul.addr %s177, 3
        %s179 = smul.addr %s178, 8
        %s180 = scalar_lea.vmem %s0, %s179
      $region28: #{stems_forward.11} parent=23 // pred_fallthru
        _
    $region24: #{stems_forward.11} parent=5 // pred_fallthru
      _
    %p181 = scmp.le.s32.totalorder 1, %s12
    %p182 = scmp.lt.s32.totalorder %s12, 3
    %p183 = pnand %p181, %p182
    %p184 = pneg %p183
    // Predicated region
    $region29: #{stems_forward.11} parent=5 // pred_check
      _
    $region30: #{stems_forward.11} parent=5 // pred_check_branch
      %186 = sbr.rel (%p183) target = $region32
    $region31: #{stems_forward.11} parent=5 // pred_region
      %s187 = ssub.s32 %s12, 1
      %p188 = scmp.lt.s32.totalorder %s17, 1
      %s189 = scalar_select %p188, %s17, 1
      %s190 = smul.addr %s189, 3
      %s191 = smul.addr %s190, 8
      %s192 = scalar_lea.vmem %s0, %s191
      %p193 = pneg %p38
      %p194 = pneg %p35
      %p195 = pneg %p59
      %p196 = pneg %p56
      %p197 = pneg %p80
      %p198 = pneg %p77
      %p199 = pneg %p106
      %p200 = pneg %p103
      %p201 = scmp.lt.s32.totalorder %s17, 1
      %s202 = scalar_select %p201, %s17, 1
      %s203 = smul.addr %s202, 2
      %s204 = smul.addr %s203, 8
      %s205 = scalar_lea.vmem %s3, %s204
      %p206 = pneg %p127
      %p207 = pneg %p124
      %p208 = pneg %p148
      %p209 = pneg %p145
      %p210 = scmp.lt.s32.totalorder %s17, 1
      %s211 = scalar_select %p210, %s17, 1
      %s212 = smul.addr %s211, 3
      %s213 = smul.addr %s212, 8
      %s214 = scalar_lea.vmem %s0, %s213
      %p215 = scmp.lt.s32.totalorder %s17, 1
      %s216 = scalar_select %p215, %s17, 1
      %s217 = smul.addr %s216, 2
      %s218 = smul.addr %s217, 8
      %s219 = scalar_lea.vmem %s3, %s218
      %p221 = scmp.eq.s32.totalorder %s17, 0
      // Predicated region
      $region33: #{stems_forward.11} parent=31 // pred_check
        %p222 = pneg %p221
      $region34: #{stems_forward.11} parent=31 // pred_check_branch
        %224 = sbr.rel (%p222) target = $region36
      $region35: #{stems_forward.11} parent=31 // pred_region
        %vm225 = vcmask 516096
        %226 = vst.msk [vmem:[%s4] sm:$0x1] %vm225, 0.0
        %227 = vst.msk [vmem:[%s5] sm:$0x1] %vm225, 0.0
      $region36: #{stems_forward.11} parent=31 // pred_fallthru
        _
      %v228 = vld [vmem:[%s214] sm:$0xff]
      %v229 = vld [vmem:[%s214 + $0x8] sm:$0xff]
      %v230 = vld [vmem:[%s214 + $0x10] sm:$0xf]
      %v231 = vpack.c.bf16 %v228, %v228
      %v232 = vpack.c.bf16 %v229, %v229
      %v233 = vpack.c.bf16 %v230, %v230
      %v234 = vld [vmem:[%s1] sm:$0xff]
      %v235 = vld [vmem:[%s1 + $0x8] sm:$0xff]
      %v236 = vld [vmem:[%s1 + $0x10] sm:$0xff]
      %v237 = vld [vmem:[%s1 + $0x18] sm:$0xff]
      %v238 = vld [vmem:[%s1 + $0x20] sm:$0xff]
      %v239 = vld [vmem:[%s1 + $0x28] sm:$0xff]
      %v240 = vld [vmem:[%s1 + $0x30] sm:$0xff]
      %v241 = vld [vmem:[%s1 + $0x38] sm:$0xff]
      %v242 = vld [vmem:[%s1 + $0x40] sm:$0xff]
      %v243 = vld [vmem:[%s1 + $0x48] sm:$0xff]
      %v244 = vld [vmem:[%s1 + $0x50] sm:$0xff]
      %v245 = vld [vmem:[%s1 + $0x58] sm:$0xff]
      %v246 = vld [vmem:[%s1 + $0x60] sm:$0xff]
      %v247 = vld [vmem:[%s1 + $0x68] sm:$0xff]
      %v248 = vld [vmem:[%s1 + $0x70] sm:$0xff]
      %v249 = vld [vmem:[%s1 + $0x78] sm:$0xff]
      %v250 = vld [vmem:[%s1 + $0x80] sm:$0xff]
      %v251 = vld [vmem:[%s1 + $0x88] sm:$0xff]
      %v252 = vld [vmem:[%s1 + $0x90] sm:$0xff]
      %v253 = vld [vmem:[%s1 + $0x98] sm:$0xff]
      %v254 = vld [vmem:[%s1 + $0xa0] sm:$0xff]
      %v255 = vld [vmem:[%s1 + $0xa8] sm:$0xff]
      %v256 = vld [vmem:[%s1 + $0xb0] sm:$0xff]
      %v257 = vld [vmem:[%s1 + $0xb8] sm:$0xff]
      %v258 = vpack.c.bf16 %v234, %v234
      %v259 = vpack.c.bf16 %v235, %v235
      %v260 = vpack.c.bf16 %v236, %v236
      %v261 = vpack.c.bf16 %v237, %v237
      %v262 = vpack.c.bf16 %v238, %v238
      %v263 = vpack.c.bf16 %v239, %v239
      %v264 = vpack.c.bf16 %v240, %v240
      %v265 = vpack.c.bf16 %v241, %v241
      %v266 = vpack.c.bf16 %v242, %v242
      %v267 = vpack.c.bf16 %v243, %v243
      %v268 = vpack.c.bf16 %v244, %v244
      %v269 = vpack.c.bf16 %v245, %v245
      %v270 = vpack.c.bf16 %v246, %v246
      %v271 = vpack.c.bf16 %v247, %v247
      %v272 = vpack.c.bf16 %v248, %v248
      %v273 = vpack.c.bf16 %v249, %v249
      %v274 = vpack.c.bf16 %v250, %v250
      %v275 = vpack.c.bf16 %v251, %v251
      %v276 = vpack.c.bf16 %v252, %v252
      %v277 = vpack.c.bf16 %v253, %v253
      %v278 = vpack.c.bf16 %v254, %v254
      %v279 = vpack.c.bf16 %v255, %v255
      %v280 = vpack.c.bf16 %v256, %v256
      %v281 = vpack.c.bf16 %v257, %v257
      %v285 = vunpack.c.l.b16 %v231
      %v286 = vunpack.c.l.b16 %v232
      %v287 = vunpack.c.l.b16 %v233
      %v288 = vpack.c.b16 %v286, %v285
      %v289 = vpack.c.b16 %v287, %v287
      %vm290 = vcmask 1046528
      %v291 = vrot.slane %v288, 1
      %v292 = vrot.slane %v289, 1
      %v293 = vsel %vm290, %v291, %v292
      %v302 = vunpack.c.l.b16 %v266
      %v303 = vunpack.c.l.b16 %v267
      %v304 = vunpack.c.l.b16 %v268
      %v305 = vunpack.c.l.b16 %v269
      %v306 = vunpack.c.l.b16 %v270
      %v307 = vunpack.c.l.b16 %v271
      %v308 = vunpack.c.l.b16 %v272
      %v309 = vunpack.c.l.b16 %v273
      %v310 = vpack.c.b16 %v303, %v302
      %v311 = vpack.c.b16 %v305, %v304
      %v312 = vpack.c.b16 %v307, %v306
      %v313 = vpack.c.b16 %v309, %v308
      %vm318 = vcmask 523264
      %v320 = vsel %vm318, %v293, 0
      %322 = vmatpush.bf16.msra.mxu0 0
      %323 = vmatpush.bf16.msra.mxu0 0
      %324 = vmatpush.bf16.msra.mxu0 0
      %325 = vmatpush.bf16.msra.mxu0 0
      %326 = vmatpush.bf16.msra.mxu0 %v313
      %327 = vmatpush.bf16.msra.mxu0 %v312
      %328 = vmatpush.bf16.msra.mxu0 %v311
      %329 = vmatpush.bf16.msra.mxu0 %v310
      %330 = vmatmul.bf16.gmra.mxu0 %v320
      %v331 = vpop.f32.mrf.mxu0
      %v332 = vadd.f32 0.0, %v331
      %v333 = vpop.f32.mrf.mxu0
      %v334 = vadd.f32 0.0, %v333
      %335 = vdwg.mxu0
      %v344 = vunpack.c.l.b16 %v258
      %v345 = vunpack.c.l.b16 %v259
      %v346 = vunpack.c.l.b16 %v260
      %v347 = vunpack.c.l.b16 %v261
      %v348 = vunpack.c.l.b16 %v262
      %v349 = vunpack.c.l.b16 %v263
      %v350 = vunpack.c.l.b16 %v264
      %v351 = vunpack.c.l.b16 %v265
      %v352 = vpack.c.b16 %v345, %v344
      %v353 = vpack.c.b16 %v347, %v346
      %v354 = vpack.c.b16 %v349, %v348
      %v355 = vpack.c.b16 %v351, %v350
      %v361 = vsel %vm318, %v288, 0
      %363 = vmatpush.bf16.msra.mxu0 0
      %364 = vmatpush.bf16.msra.mxu0 0
      %365 = vmatpush.bf16.msra.mxu0 0
      %366 = vmatpush.bf16.msra.mxu0 0
      %367 = vmatpush.bf16.msra.mxu0 %v355
      %368 = vmatpush.bf16.msra.mxu0 %v354
      %369 = vmatpush.bf16.msra.mxu0 %v353
      %370 = vmatpush.bf16.msra.mxu0 %v352
      %371 = vmatmul.bf16.gmra.mxu0 %v361
      %v372 = vpop.f32.mrf.mxu0
      %v373 = vadd.f32 %v332, %v372
      %v374 = vpop.f32.mrf.mxu0
      %v375 = vadd.f32 %v334, %v374
      %376 = vdwg.mxu0
      %vm377 = vcmask 1045504
      %v378 = vrot.slane %v288, 2
      %v379 = vrot.slane %v289, 2
      %v380 = vsel %vm377, %v378, %v379
      %v389 = vunpack.c.l.b16 %v274
      %v390 = vunpack.c.l.b16 %v275
      %v391 = vunpack.c.l.b16 %v276
      %v392 = vunpack.c.l.b16 %v277
      %v393 = vunpack.c.l.b16 %v278
      %v394 = vunpack.c.l.b16 %v279
      %v395 = vunpack.c.l.b16 %v280
      %v396 = vunpack.c.l.b16 %v281
      %v397 = vpack.c.b16 %v390, %v389
      %v398 = vpack.c.b16 %v392, %v391
      %v399 = vpack.c.b16 %v394, %v393
      %v400 = vpack.c.b16 %v396, %v395
      %v406 = vsel %vm318, %v380, 0
      %408 = vmatpush.bf16.msra.mxu0 0
      %409 = vmatpush.bf16.msra.mxu0 0
      %410 = vmatpush.bf16.msra.mxu0 0
      %411 = vmatpush.bf16.msra.mxu0 0
      %412 = vmatpush.bf16.msra.mxu0 %v400
      %413 = vmatpush.bf16.msra.mxu0 %v399
      %414 = vmatpush.bf16.msra.mxu0 %v398
      %415 = vmatpush.bf16.msra.mxu0 %v397
      %416 = vmatmul.bf16.gmra.mxu0 %v406
      %v417 = vpop.f32.mrf.mxu0
      %v418 = vadd.f32 0.0, %v417
      %v419 = vpop.f32.mrf.mxu0
      %v420 = vadd.f32 0.0, %v419
      %421 = vdwg.mxu0
      %v422 = vadd.f32 %v373, %v418
      %v423 = vadd.f32 %v375, %v420
      %v424 = vld [vmem:[%s2] sm:$0x1]
      %v426 = vperm.slane %v424, 0
      %v428 = vadd.f32 %v422, %v426
      %v429 = vadd.f32 %v423, %v426
      %430 = vst.msk [vmem:[%s219] sm:$0xff] %vm318, %v428
      %431 = vst.msk [vmem:[%s219 + $0x8] sm:$0xff] %vm318, %v429
      %v432 = vld [vmem:[%s4] sm:$0x1]
      %v433 = vsel %vm318, %v428, 0.0
      %v434 = vsel %vm318, %v429, 0.0
      %v435 = vadd.f32 %v433, %v434
      %v436 = vrot.slane %v435, 4
      %v437 = vadd.f32 %v435, %v436
      %v438 = vrot.slane %v437, 2
      %v439 = vadd.f32 %v437, %v438
      %v440 = vrot.slane %v439, 1
      %v441 = vadd.f32 %v439, %v440
      %v442 = vadd.f32 %v432, %v441
      %vm443 = vcmask 516096
      %444 = vst.msk [vmem:[%s4] sm:$0x1] %vm443, %v442
      %v445 = vld [vmem:[%s5] sm:$0x1]
      %v446 = vmul.f32 %v428, %v428
      %v447 = vmul.f32 %v429, %v429
      %v448 = vsel %vm318, %v446, 0.0
      %v449 = vsel %vm318, %v447, 0.0
      %v450 = vadd.f32 %v448, %v449
      %v451 = vrot.slane %v450, 4
      %v452 = vadd.f32 %v450, %v451
      %v453 = vrot.slane %v452, 2
      %v454 = vadd.f32 %v452, %v453
      %v455 = vrot.slane %v454, 1
      %v456 = vadd.f32 %v454, %v455
      %v457 = vadd.f32 %v445, %v456
      %458 = vst.msk [vmem:[%s5] sm:$0x1] %vm443, %v457
      %p459 = scmp.lt.s32.totalorder %s17, 1
      %s460 = scalar_select %p459, %s17, 1
      %s461 = smul.addr %s460, 2
      %s462 = smul.addr %s461, 8
      %s463 = scalar_lea.vmem %s3, %s462
      // Predicated region
      $region37: #{stems_forward.11} parent=31 // pred_check
        %p464 = pneg %p103
      $region38: #{stems_forward.11} parent=31 // pred_check_branch
        %466 = sbr.rel (%p464) target = $region40
      $region39: #{stems_forward.11} parent=31 // pred_region
        _
      $region40: #{stems_forward.11} parent=31 // pred_fallthru
        _
      // Predicated region
      $region41: #{stems_forward.11} parent=31 // pred_check
        %p467 = pneg %p124
      $region42: #{stems_forward.11} parent=31 // pred_check_branch
        %469 = sbr.rel (%p467) target = $region44
      $region43: #{stems_forward.11} parent=31 // pred_region
        _
      $region44: #{stems_forward.11} parent=31 // pred_fallthru
        _
      // Predicated region
      $region45: #{stems_forward.11} parent=31 // pred_check
        %p470 = pneg %p145
      $region46: #{stems_forward.11} parent=31 // pred_check_branch
        %472 = sbr.rel (%p470) target = $region48
      $region47: #{stems_forward.11} parent=31 // pred_region
        _
      $region48: #{stems_forward.11} parent=31 // pred_fallthru
        _
      // Predicated region
      $region49: #{stems_forward.11} parent=31 // pred_check
        %p473 = pneg %p124
      $region50: #{stems_forward.11} parent=31 // pred_check_branch
        %475 = sbr.rel (%p473) target = $region52
      $region51: #{stems_forward.11} parent=31 // pred_region
        _
      $region52: #{stems_forward.11} parent=31 // pred_fallthru
        _
      // Predicated region
      $region53: #{stems_forward.11} parent=31 // pred_check
        %p476 = pneg %p145
      $region54: #{stems_forward.11} parent=31 // pred_check_branch
        %478 = sbr.rel (%p476) target = $region56
      $region55: #{stems_forward.11} parent=31 // pred_region
        _
      $region56: #{stems_forward.11} parent=31 // pred_fallthru
        _
    $region32: #{stems_forward.11} parent=5 // pred_fallthru
      _
    %p479 = scmp.le.s32.totalorder 2, %s12
    // Predicated region
    $region57: #{stems_forward.11} parent=5 // pred_check
      %p480 = pneg %p479
    $region58: #{stems_forward.11} parent=5 // pred_check_branch
      %482 = sbr.rel (%p480) target = $region60
    $region59: #{stems_forward.11} parent=5 // pred_region
      %s483 = ssub.s32 %s12, 2
      // Predicated region
      $region61: #{stems_forward.11} parent=59 // pred_check
        %p484 = pneg %p109
      $region62: #{stems_forward.11} parent=59 // pred_check_branch
        %486 = sbr.rel (%p484) target = $region64
      $region63: #{stems_forward.11} parent=59 // pred_region
        %p487 = scmp.lt.s32.totalorder %s18, 1
        %s488 = scalar_select %p487, %s18, 1
        %s489 = smul.addr %s488, 2
        %s490 = smul.addr %s489, 8
        %s491 = scalar_lea.vmem %s3, %s490
      $region64: #{stems_forward.11} parent=59 // pred_fallthru
        _
    $region60: #{stems_forward.11} parent=5 // pred_fallthru
      _
  $region6: #{stems_forward.11} parent=0 // loop_footer
    %s16 = sadd.s32 1, %s12
  $region7: #{stems_forward.11} parent=0 // loop_footer_branch
    %11 = sbr.rel target = $region3
  $region8: #{stems_forward.11} parent=0 // loop_exit
    _

// kernel: stems_forward.13
$region0: #{stems_forward.13}
  #allocation0 [shape = 'u32[]', space=smem, size = 0x4, offset = 0x4, fixed_abs, tag = 'smem constant byte address 0x4 - core index']
  #allocation1 [shape = 'u32[72,128]{1,0:T(1,128)}', space=vmem, size = 0x9000, scoped, tag = 'internal scratch']
  %s0 = inlined_call_operand.vmem [shape: f32[2,24,64], index: 0, kind: input, shape index: {}]
  %s1 = inlined_call_operand.vmem [shape: f32[3,64,64], index: 1, kind: input, shape index: {}]
  %s2 = inlined_call_operand.vmem [shape: f32[1,64], index: 2, kind: input, shape index: {}]
  %s3 = inlined_call_operand.vmem [shape: f32[2,16,64], index: 3, kind: output, shape index: {0}]
  %s4 = inlined_call_operand.vmem [shape: f32[1,64], index: 4, kind: output, shape index: {1}]
  %s5 = inlined_call_operand.vmem [shape: f32[1,64], index: 5, kind: output, shape index: {2}]
  %6 = xla_tuple %s3, %s4, %s5
  %s7 = sld [smem:[#allocation0]]
  $region65: #{stems_forward.13} parent=0
    _
  %s9 = ssub.s32 1, %s7
  %s10 = scalar_select 0, %s9, %s7
  loop: start=0, step=1, limit=4
  $region2: #{stems_forward.13} parent=0 // loop_pre_header
    _
  $region3: #{stems_forward.13} parent=0 // loop_header
    %s12 = sphi 0, %s16
    %p13 = scmp.ge.s32.totalorder %s12, 4
    %s22 = sphi 0, %s24
    %s25 = sphi 0, %s22
    %s26 = sphi 0, %s25
    %s42 = sphi 0, %s26
    %s46 = sphi 0, %s46
    %s48 = sphi 0, %s46
    %s49 = sphi 0, %s48
    %s63 = sphi 0, %s49
    %s67 = sphi 0, %s67
    %s69 = sphi 0, %s67
    %s70 = sphi 0, %s69
    %s84 = sphi 0, %s70
    %s90 = sphi 0, %s92
    %s93 = sphi 0, %s90
    %s94 = sphi 0, %s93
    %s110 = sphi 0, %s94
    %s114 = sphi 0, %s114
    %s116 = sphi 0, %s114
    %s117 = sphi 0, %s116
    %s131 = sphi 0, %s117
    %s135 = sphi 0, %s135
    %s137 = sphi 0, %s135
    %s138 = sphi 0, %s137
    %s152 = sphi 0, %s138
  $region4: #{stems_forward.13} parent=0 // loop_header_branch
    %15 = sbr.rel (%p13) target = $region8
  $region5: #{stems_forward.13} parent=0 // loop_body
    %s17 = ssub.s32 %s12, 1
    %s18 = ssub.s32 %s12, 2
    %s19 = sadd.s32 %s12, 1
    %s20 = ssub.s32 %s12, %s19
    %p21 = scmp.eq.s32.totalorder %s20, 0
    %s23 = sadd.s32 %s22, 1
    %s24 = scalar_select %p21, %s22, %s23
    %p27 = pneg %p21
    %p28 = scmp.eq.s32.totalorder %s12, 1
    %p29 = por %p27, %p28
    %p30 = scmp.ne.s32.totalorder %s22, %s25
    %p31 = scmp.eq.s32.totalorder %s12, 0
    %p32 = por %p30, %p31
    %p33 = scmp.ne.s32.totalorder %s22, %s25
    %p34 = scmp.eq.s32.totalorder %s17, 1
    %p35 = por %p33, %p34
    %p36 = scmp.ne.s32.totalorder %s25, %s26
    %p37 = scmp.eq.s32.totalorder %s17, 0
    %p38 = por %p36, %p37
    %p39 = scmp.ne.s32.totalorder %s25, %s26
    %p40 = scmp.eq.s32.totalorder %s18, 1
    %p41 = por %p39, %p40
    %p43 = scmp.ne.s32.totalorder %s26, %s42
    %p44 = scmp.eq.s32.totalorder %s18, 0
    %p45 = por %p43, %p44
    %s47 = sadd.s32 %s46, 1
    %p50 = scmp.eq.s32.totalorder %s12, 1
    %p51 = scmp.ne.s32.totalorder %s46, %s48
    %p52 = scmp.eq.s32.totalorder %s12, 0
    %p53 = por %p51, %p52
    %p54 = scmp.ne.s32.totalorder %s46, %s48
    %p55 = scmp.eq.s32.totalorder %s17, 1
    %p56 = por %p54, %p55
    %p57 = scmp.ne.s32.totalorder %s48, %s49
    %p58 = scmp.eq.s32.totalorder %s17, 0
    %p59 = por %p57, %p58
    %p60 = scmp.ne.s32.totalorder %s48, %s49
    %p61 = scmp.eq.s32.totalorder %s18, 1
    %p62 = por %p60, %p61
    %p64 = scmp.ne.s32.totalorder %s49, %s63
    %p65 = scmp.eq.s32.totalorder %s18, 0
    %p66 = por %p64, %p65
    %s68 = sadd.s32 %s67, 1
    %p71 = scmp.eq.s32.totalorder %s12, 1
    %p72 = scmp.ne.s32.totalorder %s67, %s69
    %p73 = scmp.eq.s32.totalorder %s12, 0
    %p74 = por %p72, %p73
    %p75 = scmp.ne.s32.totalorder %s67, %s69
    %p76 = scmp.eq.s32.totalorder %s17, 1
    %p77 = por %p75, %p76
    %p78 = scmp.ne.s32.totalorder %s69, %s70
    %p79 = scmp.eq.s32.totalorder %s17, 0
    %p80 = por %p78, %p79
    %p81 = scmp.ne.s32.totalorder %s69, %s70
    %p82 = scmp.eq.s32.totalorder %s18, 1
    %p83 = por %p81, %p82
    %p85 = scmp.ne.s32.totalorder %s70, %s84
    %p86 = scmp.eq.s32.totalorder %s18, 0
    %p87 = por %p85, %p86
    %s88 = ssub.s32 %s12, %s19
    %p89 = scmp.eq.s32.totalorder %s88, 0
    %s91 = sadd.s32 %s90, 1
    %s92 = scalar_select %p89, %s90, %s91
    %p95 = pneg %p89
    %p96 = scmp.eq.s32.totalorder %s12, 1
    %p97 = por %p95, %p96
    %p98 = scmp.ne.s32.totalorder %s90, %s93
    %p99 = scmp.eq.s32.totalorder %s12, 0
    %p100 = por %p98, %p99
    %p101 = scmp.ne.s32.totalorder %s90, %s93
    %p102 = scmp.eq.s32.totalorder %s17, 1
    %p103 = por %p101, %p102
    %p104 = scmp.ne.s32.totalorder %s93, %s94
    %p105 = scmp.eq.s32.totalorder %s17, 0
    %p106 = por %p104, %p105
    %p107 = scmp.ne.s32.totalorder %s93, %s94
    %p108 = scmp.eq.s32.totalorder %s18, 1
    %p109 = por %p107, %p108
    %p111 = scmp.ne.s32.totalorder %s94, %s110
    %p112 = scmp.eq.s32.totalorder %s18, 0
    %p113 = por %p111, %p112
    %s115 = sadd.s32 %s114, 1
    %p118 = scmp.eq.s32.totalorder %s12, 1
    %p119 = scmp.ne.s32.totalorder %s114, %s116
    %p120 = scmp.eq.s32.totalorder %s12, 0
    %p121 = por %p119, %p120
    %p122 = scmp.ne.s32.totalorder %s114, %s116
    %p123 = scmp.eq.s32.totalorder %s17, 1
    %p124 = por %p122, %p123
    %p125 = scmp.ne.s32.totalorder %s116, %s117
    %p126 = scmp.eq.s32.totalorder %s17, 0
    %p127 = por %p125, %p126
    %p128 = scmp.ne.s32.totalorder %s116, %s117
    %p129 = scmp.eq.s32.totalorder %s18, 1
    %p130 = por %p128, %p129
    %p132 = scmp.ne.s32.totalorder %s117, %s131
    %p133 = scmp.eq.s32.totalorder %s18, 0
    %p134 = por %p132, %p133
    %s136 = sadd.s32 %s135, 1
    %p139 = scmp.eq.s32.totalorder %s12, 1
    %p140 = scmp.ne.s32.totalorder %s135, %s137
    %p141 = scmp.eq.s32.totalorder %s12, 0
    %p142 = por %p140, %p141
    %p143 = scmp.ne.s32.totalorder %s135, %s137
    %p144 = scmp.eq.s32.totalorder %s17, 1
    %p145 = por %p143, %p144
    %p146 = scmp.ne.s32.totalorder %s137, %s138
    %p147 = scmp.eq.s32.totalorder %s17, 0
    %p148 = por %p146, %p147
    %p149 = scmp.ne.s32.totalorder %s137, %s138
    %p150 = scmp.eq.s32.totalorder %s18, 1
    %p151 = por %p149, %p150
    %p153 = scmp.ne.s32.totalorder %s138, %s152
    %p154 = scmp.eq.s32.totalorder %s18, 0
    %p155 = por %p153, %p154
    %p156 = scmp.le.s32.totalorder 1, %s12
    %p157 = scmp.lt.s32.totalorder %s12, 3
    %p158 = pnand %p156, %p157
    %p159 = pneg %p158
    // Predicated region
    $region9: #{stems_forward.13} parent=5 // pred_check
      _
    $region10: #{stems_forward.13} parent=5 // pred_check_branch
      %161 = sbr.rel (%p158) target = $region12
    $region11: #{stems_forward.13} parent=5 // pred_region
      %s162 = ssub.s32 %s12, 1
      // Predicated region
      $region13: #{stems_forward.13} parent=11 // pred_check
        %p163 = pneg %p59
      $region14: #{stems_forward.13} parent=11 // pred_check_branch
        %165 = sbr.rel (%p163) target = $region16
      $region15: #{stems_forward.13} parent=11 // pred_region
        _
      $region16: #{stems_forward.13} parent=11 // pred_fallthru
        _
      // Predicated region
      $region17: #{stems_forward.13} parent=11 // pred_check
        %p166 = pneg %p80
      $region18: #{stems_forward.13} parent=11 // pred_check_branch
        %168 = sbr.rel (%p166) target = $region20
      $region19: #{stems_forward.13} parent=11 // pred_region
        _
      $region20: #{stems_forward.13} parent=11 // pred_fallthru
        _
    $region12: #{stems_forward.13} parent=5 // pred_fallthru
      _
    %p169 = scmp.lt.s32.totalorder %s12, 2
    // Predicated region
    $region21: #{stems_forward.13} parent=5 // pred_check
      %p170 = pneg %p169
    $region22: #{stems_forward.13} parent=5 // pred_check_branch
      %172 = sbr.rel (%p170) target = $region24
    $region23: #{stems_forward.13} parent=5 // pred_region
      // Predicated region
      $region25: #{stems_forward.13} parent=23 // pred_check
        %p173 = pneg %p32
      $region26: #{stems_forward.13} parent=23 // pred_check_branch
        %175 = sbr.rel (%p173) target = $region28
      $region27: #{stems_forward.13} parent=23 // pred_region
        %p176 = scmp.lt.s32.totalorder %s12, 1
        %s177 = scalar_select %p176, %s12, 1
        %s178 = smul.addr %s177, 3
        %s179 = smul.addr %s178, 8
        %s180 = scalar_lea.vmem %s0, %s179
      $region28: #{stems_forward.13} parent=23 // pred_fallthru
        _
    $region24: #{stems_forward.13} parent=5 // pred_fallthru
      _
    %p181 = scmp.le.s32.totalorder 1, %s12
    %p182 = scmp.lt.s32.totalorder %s12, 3
    %p183 = pnand %p181, %p182
    %p184 = pneg %p183
    // Predicated region
    $region29: #{stems_forward.13} parent=5 // pred_check
      _
    $region30: #{stems_forward.13} parent=5 // pred_check_branch
      %186 = sbr.rel (%p183) target = $region32
    $region31: #{stems_forward.13} parent=5 // pred_region
      %s187 = ssub.s32 %s12, 1
      %p188 = scmp.lt.s32.totalorder %s17, 1
      %s189 = scalar_select %p188, %s17, 1
      %s190 = smul.addr %s189, 3
      %s191 = smul.addr %s190, 8
      %s192 = scalar_lea.vmem %s0, %s191
      %p193 = pneg %p38
      %p194 = pneg %p35
      %p195 = pneg %p59
      %p196 = pneg %p56
      %p197 = pneg %p80
      %p198 = pneg %p77
      %p199 = pneg %p106
      %p200 = pneg %p103
      %p201 = scmp.lt.s32.totalorder %s17, 1
      %s202 = scalar_select %p201, %s17, 1
      %s203 = smul.addr %s202, 2
      %s204 = smul.addr %s203, 8
      %s205 = scalar_lea.vmem %s3, %s204
      %p206 = pneg %p127
      %p207 = pneg %p124
      %p208 = pneg %p148
      %p209 = pneg %p145
      %p210 = scmp.lt.s32.totalorder %s17, 1
      %s211 = scalar_select %p210, %s17, 1
      %s212 = smul.addr %s211, 3
      %s213 = smul.addr %s212, 8
      %s214 = scalar_lea.vmem %s0, %s213
      %p215 = scmp.lt.s32.totalorder %s17, 1
      %s216 = scalar_select %p215, %s17, 1
      %s217 = smul.addr %s216, 2
      %s218 = smul.addr %s217, 8
      %s219 = scalar_lea.vmem %s3, %s218
      %p221 = scmp.eq.s32.totalorder %s17, 0
      // Predicated region
      $region33: #{stems_forward.13} parent=31 // pred_check
        %p222 = pneg %p221
      $region34: #{stems_forward.13} parent=31 // pred_check_branch
        %224 = sbr.rel (%p222) target = $region36
      $region35: #{stems_forward.13} parent=31 // pred_region
        %vm225 = vcmask 516096
        %226 = vst.msk [vmem:[%s4] sm:$0x1] %vm225, 0.0
        %227 = vst.msk [vmem:[%s5] sm:$0x1] %vm225, 0.0
      $region36: #{stems_forward.13} parent=31 // pred_fallthru
        _
      %v228 = vld [vmem:[%s214] sm:$0xff]
      %v229 = vld [vmem:[%s214 + $0x8] sm:$0xff]
      %v230 = vld [vmem:[%s214 + $0x10] sm:$0xff]
      %v231 = vpack.c.bf16 %v228, %v228
      %v232 = vpack.c.bf16 %v229, %v229
      %v233 = vpack.c.bf16 %v230, %v230
      %v234 = vld [vmem:[%s1] sm:$0xff]
      %v235 = vld [vmem:[%s1 + $0x8] sm:$0xff]
      %v236 = vld [vmem:[%s1 + $0x10] sm:$0xff]
      %v237 = vld [vmem:[%s1 + $0x18] sm:$0xff]
      %v238 = vld [vmem:[%s1 + $0x20] sm:$0xff]
      %v239 = vld [vmem:[%s1 + $0x28] sm:$0xff]
      %v240 = vld [vmem:[%s1 + $0x30] sm:$0xff]
      %v241 = vld [vmem:[%s1 + $0x38] sm:$0xff]
      %v242 = vld [vmem:[%s1 + $0x40] sm:$0xff]
      %v243 = vld [vmem:[%s1 + $0x48] sm:$0xff]
      %v244 = vld [vmem:[%s1 + $0x50] sm:$0xff]
      %v245 = vld [vmem:[%s1 + $0x58] sm:$0xff]
      %v246 = vld [vmem:[%s1 + $0x60] sm:$0xff]
      %v247 = vld [vmem:[%s1 + $0x68] sm:$0xff]
      %v248 = vld [vmem:[%s1 + $0x70] sm:$0xff]
      %v249 = vld [vmem:[%s1 + $0x78] sm:$0xff]
      %v250 = vld [vmem:[%s1 + $0x80] sm:$0xff]
      %v251 = vld [vmem:[%s1 + $0x88] sm:$0xff]
      %v252 = vld [vmem:[%s1 + $0x90] sm:$0xff]
      %v253 = vld [vmem:[%s1 + $0x98] sm:$0xff]
      %v254 = vld [vmem:[%s1 + $0xa0] sm:$0xff]
      %v255 = vld [vmem:[%s1 + $0xa8] sm:$0xff]
      %v256 = vld [vmem:[%s1 + $0xb0] sm:$0xff]
      %v257 = vld [vmem:[%s1 + $0xb8] sm:$0xff]
      %v258 = vpack.c.bf16 %v234, %v234
      %v259 = vpack.c.bf16 %v235, %v235
      %v260 = vpack.c.bf16 %v236, %v236
      %v261 = vpack.c.bf16 %v237, %v237
      %v262 = vpack.c.bf16 %v238, %v238
      %v263 = vpack.c.bf16 %v239, %v239
      %v264 = vpack.c.bf16 %v240, %v240
      %v265 = vpack.c.bf16 %v241, %v241
      %v266 = vpack.c.bf16 %v242, %v242
      %v267 = vpack.c.bf16 %v243, %v243
      %v268 = vpack.c.bf16 %v244, %v244
      %v269 = vpack.c.bf16 %v245, %v245
      %v270 = vpack.c.bf16 %v246, %v246
      %v271 = vpack.c.bf16 %v247, %v247
      %v272 = vpack.c.bf16 %v248, %v248
      %v273 = vpack.c.bf16 %v249, %v249
      %v274 = vpack.c.bf16 %v250, %v250
      %v275 = vpack.c.bf16 %v251, %v251
      %v276 = vpack.c.bf16 %v252, %v252
      %v277 = vpack.c.bf16 %v253, %v253
      %v278 = vpack.c.bf16 %v254, %v254
      %v279 = vpack.c.bf16 %v255, %v255
      %v280 = vpack.c.bf16 %v256, %v256
      %v281 = vpack.c.bf16 %v257, %v257
      %v285 = vunpack.c.l.b16 %v231
      %v286 = vunpack.c.l.b16 %v232
      %v287 = vunpack.c.l.b16 %v233
      %v288 = vpack.c.b16 %v286, %v285
      %v289 = vpack.c.b16 %v287, %v287
      %vm290 = vcmask 1045504
      %v291 = vrot.slane %v288, 2
      %v292 = vrot.slane %v289, 2
      %v293 = vsel %vm290, %v291, %v292
      %v302 = vunpack.c.l.b16 %v266
      %v303 = vunpack.c.l.b16 %v267
      %v304 = vunpack.c.l.b16 %v268
      %v305 = vunpack.c.l.b16 %v269
      %v306 = vunpack.c.l.b16 %v270
      %v307 = vunpack.c.l.b16 %v271
      %v308 = vunpack.c.l.b16 %v272
      %v309 = vunpack.c.l.b16 %v273
      %v310 = vpack.c.b16 %v303, %v302
      %v311 = vpack.c.b16 %v305, %v304
      %v312 = vpack.c.b16 %v307, %v306
      %v313 = vpack.c.b16 %v309, %v308
      %vm318 = vcmask 523264
      %v320 = vsel %vm318, %v293, 0
      %322 = vmatpush.bf16.msra.mxu0 0
      %323 = vmatpush.bf16.msra.mxu0 0
      %324 = vmatpush.bf16.msra.mxu0 0
      %325 = vmatpush.bf16.msra.mxu0 0
      %326 = vmatpush.bf16.msra.mxu0 %v313
      %327 = vmatpush.bf16.msra.mxu0 %v312
      %328 = vmatpush.bf16.msra.mxu0 %v311
      %329 = vmatpush.bf16.msra.mxu0 %v310
      %330 = vmatmul.bf16.gmra.mxu0 %v320
      %v331 = vpop.f32.mrf.mxu0
      %v332 = vadd.f32 0.0, %v331
      %v333 = vpop.f32.mrf.mxu0
      %v334 = vadd.f32 0.0, %v333
      %335 = vdwg.mxu0
      %v344 = vunpack.c.l.b16 %v258
      %v345 = vunpack.c.l.b16 %v259
      %v346 = vunpack.c.l.b16 %v260
      %v347 = vunpack.c.l.b16 %v261
      %v348 = vunpack.c.l.b16 %v262
      %v349 = vunpack.c.l.b16 %v263
      %v350 = vunpack.c.l.b16 %v264
      %v351 = vunpack.c.l.b16 %v265
      %v352 = vpack.c.b16 %v345, %v344
      %v353 = vpack.c.b16 %v347, %v346
      %v354 = vpack.c.b16 %v349, %v348
      %v355 = vpack.c.b16 %v351, %v350
      %v361 = vsel %vm318, %v288, 0
      %363 = vmatpush.bf16.msra.mxu0 0
      %364 = vmatpush.bf16.msra.mxu0 0
      %365 = vmatpush.bf16.msra.mxu0 0
      %366 = vmatpush.bf16.msra.mxu0 0
      %367 = vmatpush.bf16.msra.mxu0 %v355
      %368 = vmatpush.bf16.msra.mxu0 %v354
      %369 = vmatpush.bf16.msra.mxu0 %v353
      %370 = vmatpush.bf16.msra.mxu0 %v352
      %371 = vmatmul.bf16.gmra.mxu0 %v361
      %v372 = vpop.f32.mrf.mxu0
      %v373 = vadd.f32 %v332, %v372
      %v374 = vpop.f32.mrf.mxu0
      %v375 = vadd.f32 %v334, %v374
      %376 = vdwg.mxu0
      %v377 = vpack.c.b16 %v287, %v286
      %v386 = vunpack.c.l.b16 %v274
      %v387 = vunpack.c.l.b16 %v275
      %v388 = vunpack.c.l.b16 %v276
      %v389 = vunpack.c.l.b16 %v277
      %v390 = vunpack.c.l.b16 %v278
      %v391 = vunpack.c.l.b16 %v279
      %v392 = vunpack.c.l.b16 %v280
      %v393 = vunpack.c.l.b16 %v281
      %v394 = vpack.c.b16 %v387, %v386
      %v395 = vpack.c.b16 %v389, %v388
      %v396 = vpack.c.b16 %v391, %v390
      %v397 = vpack.c.b16 %v393, %v392
      %v403 = vsel %vm318, %v377, 0
      %405 = vmatpush.bf16.msra.mxu0 0
      %406 = vmatpush.bf16.msra.mxu0 0
      %407 = vmatpush.bf16.msra.mxu0 0
      %408 = vmatpush.bf16.msra.mxu0 0
      %409 = vmatpush.bf16.msra.mxu0 %v397
      %410 = vmatpush.bf16.msra.mxu0 %v396
      %411 = vmatpush.bf16.msra.mxu0 %v395
      %412 = vmatpush.bf16.msra.mxu0 %v394
      %413 = vmatmul.bf16.gmra.mxu0 %v403
      %v414 = vpop.f32.mrf.mxu0
      %v415 = vadd.f32 0.0, %v414
      %v416 = vpop.f32.mrf.mxu0
      %v417 = vadd.f32 0.0, %v416
      %418 = vdwg.mxu0
      %v419 = vadd.f32 %v373, %v415
      %v420 = vadd.f32 %v375, %v417
      %v421 = vld [vmem:[%s2] sm:$0x1]
      %v423 = vperm.slane %v421, 0
      %v425 = vadd.f32 %v419, %v423
      %v426 = vadd.f32 %v420, %v423
      %427 = vst.msk [vmem:[%s219] sm:$0xff] %vm318, %v425
      %428 = vst.msk [vmem:[%s219 + $0x8] sm:$0xff] %vm318, %v426
      %v429 = vld [vmem:[%s4] sm:$0x1]
      %v430 = vsel %vm318, %v425, 0.0
      %v431 = vsel %vm318, %v426, 0.0
      %v432 = vadd.f32 %v430, %v431
      %v433 = vrot.slane %v432, 4
      %v434 = vadd.f32 %v432, %v433
      %v435 = vrot.slane %v434, 2
      %v436 = vadd.f32 %v434, %v435
      %v437 = vrot.slane %v436, 1
      %v438 = vadd.f32 %v436, %v437
      %v439 = vadd.f32 %v429, %v438
      %vm440 = vcmask 516096
      %441 = vst.msk [vmem:[%s4] sm:$0x1] %vm440, %v439
      %v442 = vld [vmem:[%s5] sm:$0x1]
      %v443 = vmul.f32 %v425, %v425
      %v444 = vmul.f32 %v426, %v426
      %v445 = vsel %vm318, %v443, 0.0
      %v446 = vsel %vm318, %v444, 0.0
      %v447 = vadd.f32 %v445, %v446
      %v448 = vrot.slane %v447, 4
      %v449 = vadd.f32 %v447, %v448
      %v450 = vrot.slane %v449, 2
      %v451 = vadd.f32 %v449, %v450
      %v452 = vrot.slane %v451, 1
      %v453 = vadd.f32 %v451, %v452
      %v454 = vadd.f32 %v442, %v453
      %455 = vst.msk [vmem:[%s5] sm:$0x1] %vm440, %v454
      %p456 = scmp.lt.s32.totalorder %s17, 1
      %s457 = scalar_select %p456, %s17, 1
      %s458 = smul.addr %s457, 2
      %s459 = smul.addr %s458, 8
      %s460 = scalar_lea.vmem %s3, %s459
      // Predicated region
      $region37: #{stems_forward.13} parent=31 // pred_check
        %p461 = pneg %p103
      $region38: #{stems_forward.13} parent=31 // pred_check_branch
        %463 = sbr.rel (%p461) target = $region40
      $region39: #{stems_forward.13} parent=31 // pred_region
        _
      $region40: #{stems_forward.13} parent=31 // pred_fallthru
        _
      // Predicated region
      $region41: #{stems_forward.13} parent=31 // pred_check
        %p464 = pneg %p124
      $region42: #{stems_forward.13} parent=31 // pred_check_branch
        %466 = sbr.rel (%p464) target = $region44
      $region43: #{stems_forward.13} parent=31 // pred_region
        _
      $region44: #{stems_forward.13} parent=31 // pred_fallthru
        _
      // Predicated region
      $region45: #{stems_forward.13} parent=31 // pred_check
        %p467 = pneg %p145
      $region46: #{stems_forward.13} parent=31 // pred_check_branch
        %469 = sbr.rel (%p467) target = $region48
      $region47: #{stems_forward.13} parent=31 // pred_region
        _
      $region48: #{stems_forward.13} parent=31 // pred_fallthru
        _
      // Predicated region
      $region49: #{stems_forward.13} parent=31 // pred_check
        %p470 = pneg %p124
      $region50: #{stems_forward.13} parent=31 // pred_check_branch
        %472 = sbr.rel (%p470) target = $region52
      $region51: #{stems_forward.13} parent=31 // pred_region
        _
      $region52: #{stems_forward.13} parent=31 // pred_fallthru
        _
      // Predicated region
      $region53: #{stems_forward.13} parent=31 // pred_check
        %p473 = pneg %p145
      $region54: #{stems_forward.13} parent=31 // pred_check_branch
        %475 = sbr.rel (%p473) target = $region56
      $region55: #{stems_forward.13} parent=31 // pred_region
        _
      $region56: #{stems_forward.13} parent=31 // pred_fallthru
        _
    $region32: #{stems_forward.13} parent=5 // pred_fallthru
      _
    %p476 = scmp.le.s32.totalorder 2, %s12
    // Predicated region
    $region57: #{stems_forward.13} parent=5 // pred_check
      %p477 = pneg %p476
    $region58: #{stems_forward.13} parent=5 // pred_check_branch
      %479 = sbr.rel (%p477) target = $region60
    $region59: #{stems_forward.13} parent=5 // pred_region
      %s480 = ssub.s32 %s12, 2
      // Predicated region
      $region61: #{stems_forward.13} parent=59 // pred_check
        %p481 = pneg %p109
      $region62: #{stems_forward.13} parent=59 // pred_check_branch
        %483 = sbr.rel (%p481) target = $region64
      $region63: #{stems_forward.13} parent=59 // pred_region
        %p484 = scmp.lt.s32.totalorder %s18, 1
        %s485 = scalar_select %p484, %s18, 1
        %s486 = smul.addr %s485, 2
        %s487 = smul.addr %s486, 8
        %s488 = scalar_lea.vmem %s3, %s487
      $region64: #{stems_forward.13} parent=59 // pred_fallthru
        _
    $region60: #{stems_forward.13} parent=5 // pred_fallthru
      _
  $region6: #{stems_forward.13} parent=0 // loop_footer
    %s16 = sadd.s32 1, %s12
  $region7: #{stems_forward.13} parent=0 // loop_footer_branch
    %11 = sbr.rel target = $region3
  $region8: #{stems_forward.13} parent=0 // loop_exit
    _

// kernel: stems_forward.14
$region0: #{stems_forward.14}
  #allocation0 [shape = 'u32[]', space=smem, size = 0x4, offset = 0x4, fixed_abs, tag = 'smem constant byte address 0x4 - core index']
  #allocation1 [shape = 'u32[72,128]{1,0:T(1,128)}', space=vmem, size = 0x9000, scoped, tag = 'internal scratch']
  %s0 = inlined_call_operand.vmem [shape: f32[2,16,64], index: 0, kind: input, shape index: {}]
  %s1 = inlined_call_operand.vmem [shape: f32[1,64], index: 1, kind: input, shape index: {}]
  %s2 = inlined_call_operand.vmem [shape: f32[1,64], index: 2, kind: input, shape index: {}]
  %s3 = inlined_call_operand.vmem [shape: f32[1,64], index: 3, kind: input, shape index: {}]
  %s4 = inlined_call_operand.vmem [shape: f32[1,64], index: 4, kind: input, shape index: {}]
  %s5 = inlined_call_operand.vmem [shape: f32[2,1,64], index: 5, kind: output, shape index: {}]
  %s6 = sld [smem:[#allocation0]]
  $region53: #{stems_forward.14} parent=0
    _
  %s8 = ssub.s32 1, %s6
  %s9 = scalar_select 0, %s8, %s6
  loop: start=0, step=1, limit=4
  $region2: #{stems_forward.14} parent=0 // loop_pre_header
    _
  $region3: #{stems_forward.14} parent=0 // loop_header
    %s11 = sphi 0, %s15
    %p12 = scmp.ge.s32.totalorder %s11, 4
    %s21 = sphi 0, %s23
    %s24 = sphi 0, %s21
    %s25 = sphi 0, %s24
    %s41 = sphi 0, %s25
    %s45 = sphi 0, %s45
    %s47 = sphi 0, %s45
    %s48 = sphi 0, %s47
    %s62 = sphi 0, %s48
    %s66 = sphi 0, %s66
    %s68 = sphi 0, %s66
    %s69 = sphi 0, %s68
    %s83 = sphi 0, %s69
    %s87 = sphi 0, %s87
    %s89 = sphi 0, %s87
    %s90 = sphi 0, %s89
    %s104 = sphi 0, %s90
    %s108 = sphi 0, %s108
    %s110 = sphi 0, %s108
    %s111 = sphi 0, %s110
    %s125 = sphi 0, %s111
    %s131 = sphi 0, %s133
    %s134 = sphi 0, %s131
    %s135 = sphi 0, %s134
    %s151 = sphi 0, %s135
  $region4: #{stems_forward.14} parent=0 // loop_header_branch
    %14 = sbr.rel (%p12) target = $region8
  $region5: #{stems_forward.14} parent=0 // loop_body
    %s16 = ssub.s32 %s11, 1
    %s17 = ssub.s32 %s11, 2
    %s18 = sadd.s32 %s11, 1
    %s19 = ssub.s32 %s11, %s18
    %p20 = scmp.eq.s32.totalorder %s19, 0
    %s22 = sadd.s32 %s21, 1
    %s23 = scalar_select %p20, %s21, %s22
    %p26 = pneg %p20
    %p27 = scmp.eq.s32.totalorder %s11, 1
    %p28 = por %p26, %p27
    %p29 = scmp.ne.s32.totalorder %s21, %s24
    %p30 = scmp.eq.s32.totalorder %s11, 0
    %p31 = por %p29, %p30
    %p32 = scmp.ne.s32.totalorder %s21, %s24
    %p33 = scmp.eq.s32.totalorder %s16, 1
    %p34 = por %p32, %p33
    %p35 = scmp.ne.s32.totalorder %s24, %s25
    %p36 = scmp.eq.s32.totalorder %s16, 0
    %p37 = por %p35, %p36
    %p38 = scmp.ne.s32.totalorder %s24, %s25
    %p39 = scmp.eq.s32.totalorder %s17, 1
    %p40 = por %p38, %p39
    %p42 = scmp.ne.s32.totalorder %s25, %s41
    %p43 = scmp.eq.s32.totalorder %s17, 0
    %p44 = por %p42, %p43
    %s46 = sadd.s32 %s45, 1
    %p49 = scmp.eq.s32.totalorder %s11, 1
    %p50 = scmp.ne.s32.totalorder %s45, %s47
    %p51 = scmp.eq.s32.totalorder %s11, 0
    %p52 = por %p50, %p51
    %p53 = scmp.ne.s32.totalorder %s45, %s47
    %p54 = scmp.eq.s32.totalorder %s16, 1
    %p55 = por %p53, %p54
    %p56 = scmp.ne.s32.totalorder %s47, %s48
    %p57 = scmp.eq.s32.totalorder %s16, 0
    %p58 = por %p56, %p57
    %p59 = scmp.ne.s32.totalorder %s47, %s48
    %p60 = scmp.eq.s32.totalorder %s17, 1
    %p61 = por %p59, %p60
    %p63 = scmp.ne.s32.totalorder %s48, %s62
    %p64 = scmp.eq.s32.totalorder %s17, 0
    %p65 = por %p63, %p64
    %s67 = sadd.s32 %s66, 1
    %p70 = scmp.eq.s32.totalorder %s11, 1
    %p71 = scmp.ne.s32.totalorder %s66, %s68
    %p72 = scmp.eq.s32.totalorder %s11, 0
    %p73 = por %p71, %p72
    %p74 = scmp.ne.s32.totalorder %s66, %s68
    %p75 = scmp.eq.s32.totalorder %s16, 1
    %p76 = por %p74, %p75
    %p77 = scmp.ne.s32.totalorder %s68, %s69
    %p78 = scmp.eq.s32.totalorder %s16, 0
    %p79 = por %p77, %p78
    %p80 = scmp.ne.s32.totalorder %s68, %s69
    %p81 = scmp.eq.s32.totalorder %s17, 1
    %p82 = por %p80, %p81
    %p84 = scmp.ne.s32.totalorder %s69, %s83
    %p85 = scmp.eq.s32.totalorder %s17, 0
    %p86 = por %p84, %p85
    %s88 = sadd.s32 %s87, 1
    %p91 = scmp.eq.s32.totalorder %s11, 1
    %p92 = scmp.ne.s32.totalorder %s87, %s89
    %p93 = scmp.eq.s32.totalorder %s11, 0
    %p94 = por %p92, %p93
    %p95 = scmp.ne.s32.totalorder %s87, %s89
    %p96 = scmp.eq.s32.totalorder %s16, 1
    %p97 = por %p95, %p96
    %p98 = scmp.ne.s32.totalorder %s89, %s90
    %p99 = scmp.eq.s32.totalorder %s16, 0
    %p100 = por %p98, %p99
    %p101 = scmp.ne.s32.totalorder %s89, %s90
    %p102 = scmp.eq.s32.totalorder %s17, 1
    %p103 = por %p101, %p102
    %p105 = scmp.ne.s32.totalorder %s90, %s104
    %p106 = scmp.eq.s32.totalorder %s17, 0
    %p107 = por %p105, %p106
    %s109 = sadd.s32 %s108, 1
    %p112 = scmp.eq.s32.totalorder %s11, 1
    %p113 = scmp.ne.s32.totalorder %s108, %s110
    %p114 = scmp.eq.s32.totalorder %s11, 0
    %p115 = por %p113, %p114
    %p116 = scmp.ne.s32.totalorder %s108, %s110
    %p117 = scmp.eq.s32.totalorder %s16, 1
    %p118 = por %p116, %p117
    %p119 = scmp.ne.s32.totalorder %s110, %s111
    %p120 = scmp.eq.s32.totalorder %s16, 0
    %p121 = por %p119, %p120
    %p122 = scmp.ne.s32.totalorder %s110, %s111
    %p123 = scmp.eq.s32.totalorder %s17, 1
    %p124 = por %p122, %p123
    %p126 = scmp.ne.s32.totalorder %s111, %s125
    %p127 = scmp.eq.s32.totalorder %s17, 0
    %p128 = por %p126, %p127
    %s129 = ssub.s32 %s11, %s18
    %p130 = scmp.eq.s32.totalorder %s129, 0
    %s132 = sadd.s32 %s131, 1
    %s133 = scalar_select %p130, %s131, %s132
    %p136 = pneg %p130
    %p137 = scmp.eq.s32.totalorder %s11, 1
    %p138 = por %p136, %p137
    %p139 = scmp.ne.s32.totalorder %s131, %s134
    %p140 = scmp.eq.s32.totalorder %s11, 0
    %p141 = por %p139, %p140
    %p142 = scmp.ne.s32.totalorder %s131, %s134
    %p143 = scmp.eq.s32.totalorder %s16, 1
    %p144 = por %p142, %p143
    %p145 = scmp.ne.s32.totalorder %s134, %s135
    %p146 = scmp.eq.s32.totalorder %s16, 0
    %p147 = por %p145, %p146
    %p148 = scmp.ne.s32.totalorder %s134, %s135
    %p149 = scmp.eq.s32.totalorder %s17, 1
    %p150 = por %p148, %p149
    %p152 = scmp.ne.s32.totalorder %s135, %s151
    %p153 = scmp.eq.s32.totalorder %s17, 0
    %p154 = por %p152, %p153
    %p155 = scmp.le.s32.totalorder 1, %s11
    %p156 = scmp.lt.s32.totalorder %s11, 3
    %p157 = pnand %p155, %p156
    %p158 = pneg %p157
    // Predicated region
    $region9: #{stems_forward.14} parent=5 // pred_check
      _
    $region10: #{stems_forward.14} parent=5 // pred_check_branch
      %160 = sbr.rel (%p157) target = $region12
    $region11: #{stems_forward.14} parent=5 // pred_region
      %s161 = ssub.s32 %s11, 1
      // Predicated region
      $region13: #{stems_forward.14} parent=11 // pred_check
        %p162 = pneg %p58
      $region14: #{stems_forward.14} parent=11 // pred_check_branch
        %164 = sbr.rel (%p162) target = $region16
      $region15: #{stems_forward.14} parent=11 // pred_region
        _
      $region16: #{stems_forward.14} parent=11 // pred_fallthru
        _
      // Predicated region
      $region17: #{stems_forward.14} parent=11 // pred_check
        %p165 = pneg %p79
      $region18: #{stems_forward.14} parent=11 // pred_check_branch
        %167 = sbr.rel (%p165) target = $region20
      $region19: #{stems_forward.14} parent=11 // pred_region
        _
      $region20: #{stems_forward.14} parent=11 // pred_fallthru
        _
      // Predicated region
      $region21: #{stems_forward.14} parent=11 // pred_check
        %p168 = pneg %p100
      $region22: #{stems_forward.14} parent=11 // pred_check_branch
        %170 = sbr.rel (%p168) target = $region24
      $region23: #{stems_forward.14} parent=11 // pred_region
        _
      $region24: #{stems_forward.14} parent=11 // pred_fallthru
        _
      // Predicated region
      $region25: #{stems_forward.14} parent=11 // pred_check
        %p171 = pneg %p121
      $region26: #{stems_forward.14} parent=11 // pred_check_branch
        %173 = sbr.rel (%p171) target = $region28
      $region27: #{stems_forward.14} parent=11 // pred_region
        _
      $region28: #{stems_forward.14} parent=11 // pred_fallthru
        _
    $region12: #{stems_forward.14} parent=5 // pred_fallthru
      _
    %p174 = scmp.lt.s32.totalorder %s11, 2
    // Predicated region
    $region29: #{stems_forward.14} parent=5 // pred_check
      %p175 = pneg %p174
    $region30: #{stems_forward.14} parent=5 // pred_check_branch
      %177 = sbr.rel (%p175) target = $region32
    $region31: #{stems_forward.14} parent=5 // pred_region
      // Predicated region
      $region33: #{stems_forward.14} parent=31 // pred_check
        %p178 = pneg %p31
      $region34: #{stems_forward.14} parent=31 // pred_check_branch
        %180 = sbr.rel (%p178) target = $region36
      $region35: #{stems_forward.14} parent=31 // pred_region
        %p181 = scmp.lt.s32.totalorder %s11, 1
        %s182 = scalar_select %p181, %s11, 1
        %s183 = smul.addr %s182, 2
        %s184 = smul.addr %s183, 8
        %s185 = scalar_lea.vmem %s0, %s184
      $region36: #{stems_forward.14} parent=31 // pred_fallthru
        _
    $region32: #{stems_forward.14} parent=5 // pred_fallthru
      _
    %p186 = scmp.le.s32.totalorder 1, %s11
    %p187 = scmp.lt.s32.totalorder %s11, 3
    %p188 = pnand %p186, %p187
    %p189 = pneg %p188
    // Predicated region
    $region37: #{stems_forward.14} parent=5 // pred_check
      _
    $region38: #{stems_forward.14} parent=5 // pred_check_branch
      %191 = sbr.rel (%p188) target = $region40
    $region39: #{stems_forward.14} parent=5 // pred_region
      %s192 = ssub.s32 %s11, 1
      %p193 = scmp.lt.s32.totalorder %s16, 1
      %s194 = scalar_select %p193, %s16, 1
      %s195 = smul.addr %s194, 2
      %s196 = smul.addr %s195, 8
      %s197 = scalar_lea.vmem %s0, %s196
      %p198 = pneg %p37
      %p199 = pneg %p34
      %p200 = pneg %p58
      %p201 = pneg %p55
      %p202 = pneg %p79
      %p203 = pneg %p76
      %p204 = pneg %p100
      %p205 = pneg %p97
      %p206 = pneg %p121
      %p207 = pneg %p118
      %p208 = pneg %p147
      %p209 = pneg %p144
      %p210 = scmp.lt.s32.totalorder %s16, 1
      %s211 = scalar_select %p210, %s16, 1
      %s212 = scalar_lea.vmem %s5, %s211
      %p213 = scmp.lt.s32.totalorder %s16, 1
      %s214 = scalar_select %p213, %s16, 1
      %s215 = smul.addr %s214, 2
      %s216 = smul.addr %s215, 8
      %s217 = scalar_lea.vmem %s0, %s216
      %p218 = scmp.lt.s32.totalorder %s16, 1
      %s219 = scalar_select %p218, %s16, 1
      %s220 = scalar_lea.vmem %s5, %s219
      %v221 = vld [vmem:[%s1] sm:$0x1]
      %v222 = vmul.f32 %v221, 0.03125
      %v223 = vld [vmem:[%s2] sm:$0x1]
      %v224 = vmul.f32 %v223, 0.03125
      %v225 = vmul.f32 %v222, %v222
      %v226 = vsub.f32 %v224, %v225
      %v227 = vadd.f32 %v226, 1e-05
      %v228 = vrsqrt.pop %v227
      %v229 = vmul.f32 %v228, %v227
      %v230 = vmul.f32 %v229, %v228
      %v231 = vmul.f32 0.5, %v230
      %v232 = vsub.f32 1.5, %v231
      %v233 = vmul.f32 %v228, %v232
      %vm234 = vweird.f32 %v227
      %vm235 = vweird.f32 %v228
      %vm236 = vmor %vm234, %vm235
      %v237 = vsel %vm236, %v228, %v233
      %v238 = vld [vmem:[%s3] sm:$0x1]
      %v239 = vmul.f32 %v237, %v238
      %v240 = vld [vmem:[%s4] sm:$0x1]
      %v241 = vmul.f32 %v222, %v239
      %v242 = vsub.f32 %v240, %v241
      %v243 = vld [vmem:[%s217] sm:$0xff]
      %v244 = vld [vmem:[%s217 + $0x8] sm:$0xff]
      %v246 = vperm.slane %v239, 0
      %v248 = vmul.f32 %v243, %v246
      %v249 = vmul.f32 %v244, %v246
      %v251 = vperm.slane %v242, 0
      %v253 = vadd.f32 %v248, %v251
      %v254 = vadd.f32 %v249, %v251
      %v255 = vmax.f32 %v253, 0.0
      %v256 = vmax.f32 %v254, 0.0
      %vm257 = vcmask 523264
      %v258 = vsel %vm257, %v255, 0.0
      %v259 = vsel %vm257, %v256, 0.0
      %v260 = vadd.f32 %v258, %v259
      %v261 = vrot.slane %v260, 4
      %v262 = vadd.f32 %v260, %v261
      %v263 = vrot.slane %v262, 2
      %v264 = vadd.f32 %v262, %v263
      %v265 = vrot.slane %v264, 1
      %v266 = vadd.f32 %v264, %v265
      %v267 = vrcp.pop 16.0
      %v268 = vmul.f32 16.0, %v267
      %v269 = vsub.f32 1.0, %v268
      %v270 = vmul.f32 %v267, %v269
      %v271 = vadd.f32 %v267, %v270
      %vm272 = vweird.f32 %v267
      %v273 = vsel %vm272, %v267, %v271
      %v274 = vmul.f32 %v266, %v273
      %vm275 = vcmask 516096
      %276 = vst.msk [vmem:[%s220] sm:$0x1] %vm275, %v274
      %p277 = scmp.lt.s32.totalorder %s16, 1
      %s278 = scalar_select %p277, %s16, 1
      %s279 = scalar_lea.vmem %s5, %s278
      // Predicated region
      $region41: #{stems_forward.14} parent=39 // pred_check
        %p280 = pneg %p144
      $region42: #{stems_forward.14} parent=39 // pred_check_branch
        %282 = sbr.rel (%p280) target = $region44
      $region43: #{stems_forward.14} parent=39 // pred_region
        _
      $region44: #{stems_forward.14} parent=39 // pred_fallthru
        _
    $region40: #{stems_forward.14} parent=5 // pred_fallthru
      _
    %p283 = scmp.le.s32.totalorder 2, %s11
    // Predicated region
    $region45: #{stems_forward.14} parent=5 // pred_check
      %p284 = pneg %p283
    $region46: #{stems_forward.14} parent=5 // pred_check_branch
      %286 = sbr.rel (%p284) target = $region48
    $region47: #{stems_forward.14} parent=5 // pred_region
      %s287 = ssub.s32 %s11, 2
      // Predicated region
      $region49: #{stems_forward.14} parent=47 // pred_check
        %p288 = pneg %p150
      $region50: #{stems_forward.14} parent=47 // pred_check_branch
        %290 = sbr.rel (%p288) target = $region52
      $region51: #{stems_forward.14} parent=47 // pred_region
        %p291 = scmp.lt.s32.totalorder %s17, 1
        %s292 = scalar_select %p291, %s17, 1
        %s293 = scalar_lea.vmem %s5, %s292
      $region52: #{stems_forward.14} parent=47 // pred_fallthru
        _
    $region48: #{stems_forward.14} parent=5 // pred_fallthru
      _
  $region6: #{stems_forward.14} parent=0 // loop_footer
    %s15 = sadd.s32 1, %s11
  $region7: #{stems_forward.14} parent=0 // loop_footer_branch
    %10 = sbr.rel target = $region3
  $region8: #{stems_forward.14} parent=0 // loop_exit
    _

// kernel: stems_forward.15
$region0: #{stems_forward.15}
  #allocation0 [shape = 'u32[]', space=smem, size = 0x4, offset = 0x4, fixed_abs, tag = 'smem constant byte address 0x4 - core index']
  #allocation1 [shape = 'u32[72,128]{1,0:T(1,128)}', space=vmem, size = 0x9000, scoped, tag = 'internal scratch']
  %s0 = inlined_call_operand.vmem [shape: f32[2,64], index: 0, kind: input, shape index: {}]
  %s1 = inlined_call_operand.vmem [shape: f32[64,128], index: 1, kind: input, shape index: {}]
  %s2 = inlined_call_operand.vmem [shape: f32[1,128], index: 2, kind: input, shape index: {}]
  %s3 = inlined_call_operand.vmem [shape: f32[2,64], index: 3, kind: input, shape index: {}]
  %s4 = inlined_call_operand.vmem [shape: f32[64,64], index: 4, kind: input, shape index: {}]
  %s5 = inlined_call_operand.vmem [shape: f32[1,64], index: 5, kind: input, shape index: {}]
  %s6 = inlined_call_operand.vmem [shape: f32[2,64], index: 6, kind: output, shape index: {0}]
  %s7 = inlined_call_operand.hbm [shape: f32[1,1], index: 7, kind: output, shape index: {1}]
  %8 = xla_tuple %s6, %s7
  %s9 = sld [smem:[#allocation0]]
  $region42: #{stems_forward.15} parent=0
    _
  %s11 = ssub.s32 1, %s9
  %s12 = scalar_select 0, %s11, %s9
  $region1: #{stems_forward.15} parent=0
    #allocation2 [shape = 'u8[512]{0}', space=vmem, size = 0x400, scoped, tag = 'output window, operand 1, single buffered']
    #allocation3 [shape = 's32[1]{0}', space=sflag, size = 0x4, scoped, tag = 'scoped memory for stems_forward.15']
    %13 = vsyncpa [#allocation3], 0
    // Predicated region
    $region2: #{stems_forward.15} parent=1 // pred_check
      _
    $region3: #{stems_forward.15} parent=1 // pred_check_branch
      %15 = sbr.rel (0) target = $region5
    $region4: #{stems_forward.15} parent=1 // pred_region
      _
    $region5: #{stems_forward.15} parent=1 // pred_fallthru
      _
    // Predicated region
    $region6: #{stems_forward.15} parent=1 // pred_check
      _
    $region7: #{stems_forward.15} parent=1 // pred_check_branch
      %17 = sbr.rel (0) target = $region9
    $region8: #{stems_forward.15} parent=1 // pred_region
      _
    $region9: #{stems_forward.15} parent=1 // pred_fallthru
      _
    // Predicated region
    $region10: #{stems_forward.15} parent=1 // pred_check
      _
    $region11: #{stems_forward.15} parent=1 // pred_check_branch
      %19 = sbr.rel (0) target = $region13
    $region12: #{stems_forward.15} parent=1 // pred_region
      _
    $region13: #{stems_forward.15} parent=1 // pred_fallthru
      _
    // Predicated region
    $region14: #{stems_forward.15} parent=1 // pred_check
      _
    $region15: #{stems_forward.15} parent=1 // pred_check_branch
      %21 = sbr.rel (0) target = $region17
    $region16: #{stems_forward.15} parent=1 // pred_region
      _
    $region17: #{stems_forward.15} parent=1 // pred_fallthru
      _
    // Predicated region
    $region18: #{stems_forward.15} parent=1 // pred_check
      _
    $region19: #{stems_forward.15} parent=1 // pred_check_branch
      %23 = sbr.rel (0) target = $region21
    $region20: #{stems_forward.15} parent=1 // pred_region
      _
    $region21: #{stems_forward.15} parent=1 // pred_fallthru
      _
    // Predicated region
    $region22: #{stems_forward.15} parent=1 // pred_check
      _
    $region23: #{stems_forward.15} parent=1 // pred_check_branch
      %25 = sbr.rel (0) target = $region25
    $region24: #{stems_forward.15} parent=1 // pred_region
      _
    $region25: #{stems_forward.15} parent=1 // pred_fallthru
      _
    %v27 = vld [vmem:[%s0] sm:$0x3]
    %v28 = vpack.c.bf16 %v27, %v27
    %v29 = vld [vmem:[%s1] sm:$0xff]
    %v30 = vld [vmem:[%s1 + $0x8] sm:$0xff]
    %v31 = vld [vmem:[%s1 + $0x10] sm:$0xff]
    %v32 = vld [vmem:[%s1 + $0x18] sm:$0xff]
    %v33 = vld [vmem:[%s1 + $0x20] sm:$0xff]
    %v34 = vld [vmem:[%s1 + $0x28] sm:$0xff]
    %v35 = vld [vmem:[%s1 + $0x30] sm:$0xff]
    %v36 = vld [vmem:[%s1 + $0x38] sm:$0xff]
    %v37 = vpack.c.bf16 %v30, %v29
    %v38 = vpack.c.bf16 %v32, %v31
    %v39 = vpack.c.bf16 %v34, %v33
    %v40 = vpack.c.bf16 %v36, %v35
    %v41 = vld [vmem:[%s2] sm:$0x1]
    %v43 = vperm.slane %v41, 0
    %vm45 = vcmask 523264
    %v47 = vsel %vm45, %v28, 0
    %49 = vmatpush.bf16.msra.mxu0 0
    %50 = vmatpush.bf16.msra.mxu0 0
    %51 = vmatpush.bf16.msra.mxu0 0
    %52 = vmatpush.bf16.msra.mxu0 0
    %53 = vmatpush.bf16.msra.mxu0 %v40
    %54 = vmatpush.bf16.msra.mxu0 %v39
    %55 = vmatpush.bf16.msra.mxu0 %v38
    %56 = vmatpush.bf16.msra.mxu0 %v37
    %57 = vmatmul.bf16.gmra.mxu0 %v47
    %v58 = vpop.f32.mrf.mxu0
    %v59 = vadd.f32 %v43, %v58
    %v60 = vpop.f32.mrf.mxu0
    %61 = vdwg.mxu0
    %v62 = vmul.f32 %v59, 0.5
    %v63 = vmul.f32 %v62, 1.442695
    %v64 = vpow.pop %v63
    %v65 = vld [vmem:[%s3] sm:$0x3]
    %67 = vrot.lane.b32.xlu0 %v64, 64
    %v68 = vpop.permute.xlu0 %67
    %v70 = vmul.f32 %v65, %v68
    %v71 = vadd.f32 %v59, %v70
    %v72 = vadd.f32 %v59, 1.0
    %v73 = vmul.f32 %v59, %v59
    %75 = vrot.lane.b32.xlu0 %v73, 64
    %v76 = vpop.permute.xlu0 %75
    %v78 = vsub.f32 %v72, %v76
    %v79 = vmul.f32 %v59, 1.442695
    %v80 = vpow.pop %v79
    %v81 = vsub.f32 %v78, %v80
    %83 = vrot.lane.b32.xlu0 %v81, 64
    %v84 = vpop.permute.xlu0 %83
    %vm86 = vcmask 517120
    %v87 = vsel %vm86, %v84, 0.0
    %88 = vadd.xlane.f32.xlu0 %v87
    %v89 = vpop.xlane.xlu0 %88
    %v90 = vmul.f32 %v89, -0.5
    %vm91 = vcmask 1041408
    %v92 = vsel %vm91, %v90, 0.0
    %v93 = vrot.slane %v92, 4
    %v94 = vadd.f32 %v92, %v93
    %v95 = vrot.slane %v94, 2
    %v96 = vadd.f32 %v94, %v95
    %v97 = vrot.slane %v96, 1
    %v98 = vadd.f32 %v96, %v97
    %v99 = vrcp.pop 2.0
    %v100 = vmul.f32 2.0, %v99
    %v101 = vsub.f32 1.0, %v100
    %v102 = vmul.f32 %v99, %v101
    %v103 = vadd.f32 %v99, %v102
    %vm104 = vweird.f32 %v99
    %v105 = vsel %vm104, %v99, %v103
    %v106 = vmul.f32 %v98, %v105
    %vm107 = vcmask 0
    %108 = vst.msk [vmem:[#allocation2] sm:$0x1] %vm107, %v106
    %v109 = vpack.c.bf16 %v71, %v71
    %v110 = vld [vmem:[%s4] sm:$0xff]
    %v111 = vld [vmem:[%s4 + $0x8] sm:$0xff]
    %v112 = vld [vmem:[%s4 + $0x10] sm:$0xff]
    %v113 = vld [vmem:[%s4 + $0x18] sm:$0xff]
    %v114 = vld [vmem:[%s4 + $0x20] sm:$0xff]
    %v115 = vld [vmem:[%s4 + $0x28] sm:$0xff]
    %v116 = vld [vmem:[%s4 + $0x30] sm:$0xff]
    %v117 = vld [vmem:[%s4 + $0x38] sm:$0xff]
    %v118 = vpack.c.bf16 %v111, %v110
    %v119 = vpack.c.bf16 %v113, %v112
    %v120 = vpack.c.bf16 %v115, %v114
    %v121 = vpack.c.bf16 %v117, %v116
    %v122 = vld [vmem:[%s5] sm:$0x1]
    %v124 = vperm.slane %v122, 0
    %v127 = vsel %vm45, %v109, 0
    %129 = vmatpush.bf16.msra.mxu0 0
    %130 = vmatpush.bf16.msra.mxu0 0
    %131 = vmatpush.bf16.msra.mxu0 0
    %132 = vmatpush.bf16.msra.mxu0 0
    %133 = vmatpush.bf16.msra.mxu0 %v121
    %134 = vmatpush.bf16.msra.mxu0 %v120
    %135 = vmatpush.bf16.msra.mxu0 %v119
    %136 = vmatpush.bf16.msra.mxu0 %v118
    %137 = vmatmul.bf16.gmra.mxu0 %v127
    %v138 = vpop.f32.mrf.mxu0
    %v139 = vadd.f32 %v124, %v138
    %v140 = vpop.f32.mrf.mxu0
    %141 = vdwg.mxu0
    %142 = vst.msk [vmem:[%s6] sm:$0x3] %vm86, %v139
    // Predicated region
    $region26: #{stems_forward.15} parent=1 // pred_check
      _
    $region27: #{stems_forward.15} parent=1 // pred_check_branch
      %144 = sbr.rel (0) target = $region29
    $region28: #{stems_forward.15} parent=1 // pred_region
      _
    $region29: #{stems_forward.15} parent=1 // pred_fallthru
      _
    // Predicated region
    $region30: #{stems_forward.15} parent=1 // pred_check
      _
    $region31: #{stems_forward.15} parent=1 // pred_check_branch
      %146 = sbr.rel (0) target = $region33
    $region32: #{stems_forward.15} parent=1 // pred_region
      %148 = vsyncadd [#allocation3], 0
      %s150 = sshll.u32 [#allocation2], 4
      %s151 = int_to_ptr.vmem [resolvable:$true] %s150
      %s152 = sshll.u32 %s7, 4
      %s153 = int_to_ptr.hbm [resolvable:$true] %s152
      %155 = dma.vmem_to_hbm [thread:$0]  %s151, 16, %s153, [#allocation3]
    $region33: #{stems_forward.15} parent=1 // pred_fallthru
      _
    // Predicated region
    $region34: #{stems_forward.15} parent=1 // pred_check
      _
    $region35: #{stems_forward.15} parent=1 // pred_check_branch
      %157 = sbr.rel (0) target = $region37
    $region36: #{stems_forward.15} parent=1 // pred_region
      _
    $region37: #{stems_forward.15} parent=1 // pred_fallthru
      _
    // Predicated region
    $region38: #{stems_forward.15} parent=1 // pred_check
      _
    $region39: #{stems_forward.15} parent=1 // pred_check_branch
      %159 = sbr.rel (0) target = $region41
    $region40: #{stems_forward.15} parent=1 // pred_region
      %161 = dma.done [#allocation3], 16
    $region41: #{stems_forward.15} parent=1 // pred_fallthru
      _
    %162 = vsyncpa [#allocation3], 1

// kernel: stems_forward.16
$region0: #{stems_forward.16}
  #allocation0 [shape = 'u32[]', space=smem, size = 0x4, offset = 0x4, fixed_abs, tag = 'smem constant byte address 0x4 - core index']
  #allocation1 [shape = 'u32[72,128]{1,0:T(1,128)}', space=vmem, size = 0x9000, scoped, tag = 'internal scratch']
  %s0 = inlined_call_operand.vmem [shape: f32[2,1,64], index: 0, kind: input, shape index: {}]
  %s1 = inlined_call_operand.vmem [shape: f32[64,192], index: 1, kind: input, shape index: {}]
  %s2 = inlined_call_operand.vmem [shape: f32[1,192], index: 2, kind: input, shape index: {}]
  %s3 = inlined_call_operand.vmem [shape: f32[64,64], index: 3, kind: input, shape index: {}]
  %s4 = inlined_call_operand.vmem [shape: f32[1,64], index: 4, kind: input, shape index: {}]
  %s5 = inlined_call_operand.vmem [shape: f32[2,16,64], index: 5, kind: output, shape index: {}]
  %s6 = sld [smem:[#allocation0]]
  $region53: #{stems_forward.16} parent=0
    _
  %s8 = ssub.s32 1, %s6
  %s9 = scalar_select 0, %s8, %s6
  loop: start=0, step=1, limit=4
  $region2: #{stems_forward.16} parent=0 // loop_pre_header
    _
  $region3: #{stems_forward.16} parent=0 // loop_header
    %s11 = sphi 0, %s15
    %p12 = scmp.ge.s32.totalorder %s11, 4
    %s21 = sphi 0, %s23
    %s24 = sphi 0, %s21
    %s25 = sphi 0, %s24
    %s41 = sphi 0, %s25
    %s45 = sphi 0, %s45
    %s47 = sphi 0, %s45
    %s48 = sphi 0, %s47
    %s62 = sphi 0, %s48
    %s66 = sphi 0, %s66
    %s68 = sphi 0, %s66
    %s69 = sphi 0, %s68
    %s83 = sphi 0, %s69
    %s87 = sphi 0, %s87
    %s89 = sphi 0, %s87
    %s90 = sphi 0, %s89
    %s104 = sphi 0, %s90
    %s108 = sphi 0, %s108
    %s110 = sphi 0, %s108
    %s111 = sphi 0, %s110
    %s125 = sphi 0, %s111
    %s131 = sphi 0, %s133
    %s134 = sphi 0, %s131
    %s135 = sphi 0, %s134
    %s151 = sphi 0, %s135
  $region4: #{stems_forward.16} parent=0 // loop_header_branch
    %14 = sbr.rel (%p12) target = $region8
  $region5: #{stems_forward.16} parent=0 // loop_body
    %s16 = ssub.s32 %s11, 1
    %s17 = ssub.s32 %s11, 2
    %s18 = sadd.s32 %s11, 1
    %s19 = ssub.s32 %s11, %s18
    %p20 = scmp.eq.s32.totalorder %s19, 0
    %s22 = sadd.s32 %s21, 1
    %s23 = scalar_select %p20, %s21, %s22
    %p26 = pneg %p20
    %p27 = scmp.eq.s32.totalorder %s11, 1
    %p28 = por %p26, %p27
    %p29 = scmp.ne.s32.totalorder %s21, %s24
    %p30 = scmp.eq.s32.totalorder %s11, 0
    %p31 = por %p29, %p30
    %p32 = scmp.ne.s32.totalorder %s21, %s24
    %p33 = scmp.eq.s32.totalorder %s16, 1
    %p34 = por %p32, %p33
    %p35 = scmp.ne.s32.totalorder %s24, %s25
    %p36 = scmp.eq.s32.totalorder %s16, 0
    %p37 = por %p35, %p36
    %p38 = scmp.ne.s32.totalorder %s24, %s25
    %p39 = scmp.eq.s32.totalorder %s17, 1
    %p40 = por %p38, %p39
    %p42 = scmp.ne.s32.totalorder %s25, %s41
    %p43 = scmp.eq.s32.totalorder %s17, 0
    %p44 = por %p42, %p43
    %s46 = sadd.s32 %s45, 1
    %p49 = scmp.eq.s32.totalorder %s11, 1
    %p50 = scmp.ne.s32.totalorder %s45, %s47
    %p51 = scmp.eq.s32.totalorder %s11, 0
    %p52 = por %p50, %p51
    %p53 = scmp.ne.s32.totalorder %s45, %s47
    %p54 = scmp.eq.s32.totalorder %s16, 1
    %p55 = por %p53, %p54
    %p56 = scmp.ne.s32.totalorder %s47, %s48
    %p57 = scmp.eq.s32.totalorder %s16, 0
    %p58 = por %p56, %p57
    %p59 = scmp.ne.s32.totalorder %s47, %s48
    %p60 = scmp.eq.s32.totalorder %s17, 1
    %p61 = por %p59, %p60
    %p63 = scmp.ne.s32.totalorder %s48, %s62
    %p64 = scmp.eq.s32.totalorder %s17, 0
    %p65 = por %p63, %p64
    %s67 = sadd.s32 %s66, 1
    %p70 = scmp.eq.s32.totalorder %s11, 1
    %p71 = scmp.ne.s32.totalorder %s66, %s68
    %p72 = scmp.eq.s32.totalorder %s11, 0
    %p73 = por %p71, %p72
    %p74 = scmp.ne.s32.totalorder %s66, %s68
    %p75 = scmp.eq.s32.totalorder %s16, 1
    %p76 = por %p74, %p75
    %p77 = scmp.ne.s32.totalorder %s68, %s69
    %p78 = scmp.eq.s32.totalorder %s16, 0
    %p79 = por %p77, %p78
    %p80 = scmp.ne.s32.totalorder %s68, %s69
    %p81 = scmp.eq.s32.totalorder %s17, 1
    %p82 = por %p80, %p81
    %p84 = scmp.ne.s32.totalorder %s69, %s83
    %p85 = scmp.eq.s32.totalorder %s17, 0
    %p86 = por %p84, %p85
    %s88 = sadd.s32 %s87, 1
    %p91 = scmp.eq.s32.totalorder %s11, 1
    %p92 = scmp.ne.s32.totalorder %s87, %s89
    %p93 = scmp.eq.s32.totalorder %s11, 0
    %p94 = por %p92, %p93
    %p95 = scmp.ne.s32.totalorder %s87, %s89
    %p96 = scmp.eq.s32.totalorder %s16, 1
    %p97 = por %p95, %p96
    %p98 = scmp.ne.s32.totalorder %s89, %s90
    %p99 = scmp.eq.s32.totalorder %s16, 0
    %p100 = por %p98, %p99
    %p101 = scmp.ne.s32.totalorder %s89, %s90
    %p102 = scmp.eq.s32.totalorder %s17, 1
    %p103 = por %p101, %p102
    %p105 = scmp.ne.s32.totalorder %s90, %s104
    %p106 = scmp.eq.s32.totalorder %s17, 0
    %p107 = por %p105, %p106
    %s109 = sadd.s32 %s108, 1
    %p112 = scmp.eq.s32.totalorder %s11, 1
    %p113 = scmp.ne.s32.totalorder %s108, %s110
    %p114 = scmp.eq.s32.totalorder %s11, 0
    %p115 = por %p113, %p114
    %p116 = scmp.ne.s32.totalorder %s108, %s110
    %p117 = scmp.eq.s32.totalorder %s16, 1
    %p118 = por %p116, %p117
    %p119 = scmp.ne.s32.totalorder %s110, %s111
    %p120 = scmp.eq.s32.totalorder %s16, 0
    %p121 = por %p119, %p120
    %p122 = scmp.ne.s32.totalorder %s110, %s111
    %p123 = scmp.eq.s32.totalorder %s17, 1
    %p124 = por %p122, %p123
    %p126 = scmp.ne.s32.totalorder %s111, %s125
    %p127 = scmp.eq.s32.totalorder %s17, 0
    %p128 = por %p126, %p127
    %s129 = ssub.s32 %s11, %s18
    %p130 = scmp.eq.s32.totalorder %s129, 0
    %s132 = sadd.s32 %s131, 1
    %s133 = scalar_select %p130, %s131, %s132
    %p136 = pneg %p130
    %p137 = scmp.eq.s32.totalorder %s11, 1
    %p138 = por %p136, %p137
    %p139 = scmp.ne.s32.totalorder %s131, %s134
    %p140 = scmp.eq.s32.totalorder %s11, 0
    %p141 = por %p139, %p140
    %p142 = scmp.ne.s32.totalorder %s131, %s134
    %p143 = scmp.eq.s32.totalorder %s16, 1
    %p144 = por %p142, %p143
    %p145 = scmp.ne.s32.totalorder %s134, %s135
    %p146 = scmp.eq.s32.totalorder %s16, 0
    %p147 = por %p145, %p146
    %p148 = scmp.ne.s32.totalorder %s134, %s135
    %p149 = scmp.eq.s32.totalorder %s17, 1
    %p150 = por %p148, %p149
    %p152 = scmp.ne.s32.totalorder %s135, %s151
    %p153 = scmp.eq.s32.totalorder %s17, 0
    %p154 = por %p152, %p153
    %p155 = scmp.le.s32.totalorder 1, %s11
    %p156 = scmp.lt.s32.totalorder %s11, 3
    %p157 = pnand %p155, %p156
    %p158 = pneg %p157
    // Predicated region
    $region9: #{stems_forward.16} parent=5 // pred_check
      _
    $region10: #{stems_forward.16} parent=5 // pred_check_branch
      %160 = sbr.rel (%p157) target = $region12
    $region11: #{stems_forward.16} parent=5 // pred_region
      %s161 = ssub.s32 %s11, 1
      // Predicated region
      $region13: #{stems_forward.16} parent=11 // pred_check
        %p162 = pneg %p58
      $region14: #{stems_forward.16} parent=11 // pred_check_branch
        %164 = sbr.rel (%p162) target = $region16
      $region15: #{stems_forward.16} parent=11 // pred_region
        _
      $region16: #{stems_forward.16} parent=11 // pred_fallthru
        _
      // Predicated region
      $region17: #{stems_forward.16} parent=11 // pred_check
        %p165 = pneg %p79
      $region18: #{stems_forward.16} parent=11 // pred_check_branch
        %167 = sbr.rel (%p165) target = $region20
      $region19: #{stems_forward.16} parent=11 // pred_region
        _
      $region20: #{stems_forward.16} parent=11 // pred_fallthru
        _
      // Predicated region
      $region21: #{stems_forward.16} parent=11 // pred_check
        %p168 = pneg %p100
      $region22: #{stems_forward.16} parent=11 // pred_check_branch
        %170 = sbr.rel (%p168) target = $region24
      $region23: #{stems_forward.16} parent=11 // pred_region
        _
      $region24: #{stems_forward.16} parent=11 // pred_fallthru
        _
      // Predicated region
      $region25: #{stems_forward.16} parent=11 // pred_check
        %p171 = pneg %p121
      $region26: #{stems_forward.16} parent=11 // pred_check_branch
        %173 = sbr.rel (%p171) target = $region28
      $region27: #{stems_forward.16} parent=11 // pred_region
        _
      $region28: #{stems_forward.16} parent=11 // pred_fallthru
        _
    $region12: #{stems_forward.16} parent=5 // pred_fallthru
      _
    %p174 = scmp.lt.s32.totalorder %s11, 2
    // Predicated region
    $region29: #{stems_forward.16} parent=5 // pred_check
      %p175 = pneg %p174
    $region30: #{stems_forward.16} parent=5 // pred_check_branch
      %177 = sbr.rel (%p175) target = $region32
    $region31: #{stems_forward.16} parent=5 // pred_region
      // Predicated region
      $region33: #{stems_forward.16} parent=31 // pred_check
        %p178 = pneg %p31
      $region34: #{stems_forward.16} parent=31 // pred_check_branch
        %180 = sbr.rel (%p178) target = $region36
      $region35: #{stems_forward.16} parent=31 // pred_region
        %p181 = scmp.lt.s32.totalorder %s11, 1
        %s182 = scalar_select %p181, %s11, 1
        %s183 = scalar_lea.vmem %s0, %s182
      $region36: #{stems_forward.16} parent=31 // pred_fallthru
        _
    $region32: #{stems_forward.16} parent=5 // pred_fallthru
      _
    %p184 = scmp.le.s32.totalorder 1, %s11
    %p185 = scmp.lt.s32.totalorder %s11, 3
    %p186 = pnand %p184, %p185
    %p187 = pneg %p186
    // Predicated region
    $region37: #{stems_forward.16} parent=5 // pred_check
      _
    $region38: #{stems_forward.16} parent=5 // pred_check_branch
      %189 = sbr.rel (%p186) target = $region40
    $region39: #{stems_forward.16} parent=5 // pred_region
      %s190 = ssub.s32 %s11, 1
      %p191 = scmp.lt.s32.totalorder %s16, 1
      %s192 = scalar_select %p191, %s16, 1
      %s193 = scalar_lea.vmem %s0, %s192
      %p194 = pneg %p37
      %p195 = pneg %p34
      %p196 = pneg %p58
      %p197 = pneg %p55
      %p198 = pneg %p79
      %p199 = pneg %p76
      %p200 = pneg %p100
      %p201 = pneg %p97
      %p202 = pneg %p121
      %p203 = pneg %p118
      %p204 = pneg %p147
      %p205 = pneg %p144
      %p206 = scmp.lt.s32.totalorder %s16, 1
      %s207 = scalar_select %p206, %s16, 1
      %s208 = smul.addr %s207, 2
      %s209 = smul.addr %s208, 8
      %s210 = scalar_lea.vmem %s5, %s209
      %p211 = scmp.lt.s32.totalorder %s16, 1
      %s212 = scalar_select %p211, %s16, 1
      %s213 = scalar_lea.vmem %s0, %s212
      %p214 = scmp.lt.s32.totalorder %s16, 1
      %s215 = scalar_select %p214, %s16, 1
      %s216 = smul.addr %s215, 2
      %s217 = smul.addr %s216, 8
      %s218 = scalar_lea.vmem %s5, %s217
      %v220 = vld [vmem:[%s213] sm:$0x1]
      %v222 = vperm.slane %v220, 0
      %v224 = vpack.c.bf16 %v222, %v222
      %v225 = vld [vmem:[%s1] sm:$0xff]
      %v226 = vld [vmem:[%s1 + $0x8] sm:$0xff]
      %v227 = vld [vmem:[%s1 + $0x10] sm:$0xff]
      %v228 = vld [vmem:[%s1 + $0x18] sm:$0xff]
      %v229 = vld [vmem:[%s1 + $0x20] sm:$0xff]
      %v230 = vld [vmem:[%s1 + $0x28] sm:$0xff]
      %v231 = vld [vmem:[%s1 + $0x30] sm:$0xff]
      %v232 = vld [vmem:[%s1 + $0x38] sm:$0xff]
      %v233 = vld [vmem:[%s1 + $0x40] sm:$0xff]
      %v234 = vld [vmem:[%s1 + $0x48] sm:$0xff]
      %v235 = vld [vmem:[%s1 + $0x50] sm:$0xff]
      %v236 = vld [vmem:[%s1 + $0x58] sm:$0xff]
      %v237 = vld [vmem:[%s1 + $0x60] sm:$0xff]
      %v238 = vld [vmem:[%s1 + $0x68] sm:$0xff]
      %v239 = vld [vmem:[%s1 + $0x70] sm:$0xff]
      %v240 = vld [vmem:[%s1 + $0x78] sm:$0xff]
      %v241 = vpack.c.bf16 %v227, %v225
      %v242 = vpack.c.bf16 %v228, %v226
      %v243 = vpack.c.bf16 %v231, %v229
      %v244 = vpack.c.bf16 %v232, %v230
      %v245 = vpack.c.bf16 %v235, %v233
      %v246 = vpack.c.bf16 %v236, %v234
      %v247 = vpack.c.bf16 %v239, %v237
      %v248 = vpack.c.bf16 %v240, %v238
      %v249 = vld [vmem:[%s2] sm:$0x3]
      %v251 = vperm.slane %v249, 0
      %v252 = vperm.slane %v249, 1
      %vm255 = vcmask 523264
      %v257 = vsel %vm255, %v224, 0
      %259 = vmatpush.bf16.msra.mxu0 0
      %260 = vmatpush.bf16.msra.mxu0 0
      %261 = vmatpush.bf16.msra.mxu0 0
      %262 = vmatpush.bf16.msra.mxu0 0
      %263 = vmatpush.bf16.msra.mxu0 %v247
      %264 = vmatpush.bf16.msra.mxu0 %v245
      %265 = vmatpush.bf16.msra.mxu0 %v243
      %266 = vmatpush.bf16.msra.mxu0 %v241
      %267 = vmatmul.bf16.gmra.mxu0 %v257
      %v268 = vpop.f32.mrf.mxu0
      %v269 = vadd.f32 %v251, %v268
      %v270 = vpop.f32.mrf.mxu0
      %v271 = vadd.f32 %v251, %v270
      %272 = vdwg.mxu0
      %273 = vmatpush.bf16.msra.mxu0 0
      %274 = vmatpush.bf16.msra.mxu0 0
      %275 = vmatpush.bf16.msra.mxu0 0
      %276 = vmatpush.bf16.msra.mxu0 0
      %277 = vmatpush.bf16.msra.mxu0 %v248
      %278 = vmatpush.bf16.msra.mxu0 %v246
      %279 = vmatpush.bf16.msra.mxu0 %v244
      %280 = vmatpush.bf16.msra.mxu0 %v242
      %281 = vmatmul.bf16.gmra.mxu0 %v257
      %v282 = vpop.f32.mrf.mxu0
      %v283 = vadd.f32 %v252, %v282
      %v284 = vpop.f32.mrf.mxu0
      %v285 = vadd.f32 %v252, %v284
      %286 = vdwg.mxu0
      %v287 = vld [vmem:[%s3] sm:$0xff]
      %v288 = vld [vmem:[%s3 + $0x8] sm:$0xff]
      %v289 = vld [vmem:[%s3 + $0x10] sm:$0xff]
      %v290 = vld [vmem:[%s3 + $0x18] sm:$0xff]
      %v291 = vld [vmem:[%s3 + $0x20] sm:$0xff]
      %v292 = vld [vmem:[%s3 + $0x28] sm:$0xff]
      %v293 = vld [vmem:[%s3 + $0x30] sm:$0xff]
      %v294 = vld [vmem:[%s3 + $0x38] sm:$0xff]
      %v295 = vpack.c.bf16 %v287, %v287
      %v296 = vpack.c.bf16 %v288, %v288
      %v297 = vpack.c.bf16 %v289, %v289
      %v298 = vpack.c.bf16 %v290, %v290
      %v299 = vpack.c.bf16 %v291, %v291
      %v300 = vpack.c.bf16 %v292, %v292
      %v301 = vpack.c.bf16 %v293, %v293
      %v302 = vpack.c.bf16 %v294, %v294
      %v303 = vpack.c.bf16 %v271, %v269
      %v304 = vpack.c.bf16 %v285, %v283
      %306 = vrot.lane.b32.xlu0 %v303, 64
      %v307 = vpop.permute.xlu0 %306
      %vm308 = vcmask 130048
      %v310 = vsel %vm308, %v303, 0
      %v313 = vsel %vm308, %v307, 0
      %315 = vmatpush.bf16.xpose.msra.mxu0 0
      %316 = vmatpush.bf16.xpose.msra.mxu0 0
      %317 = vmatpush.bf16.xpose.msra.mxu0 0
      %318 = vmatpush.bf16.xpose.msra.mxu0 0
      %319 = vmatpush.bf16.xpose.msra.mxu0 0
      %320 = vmatpush.bf16.xpose.msra.mxu0 0
      %321 = vmatpush.bf16.xpose.msra.mxu0 0
      %322 = vmatpush.bf16.xpose.msra.mxu0 %v313
      %323 = vmatmul.bf16.gmra.mxu0 %v310
      %v324 = vpop.f32.mrf.mxu0
      %v325 = vadd.f32 0.0, %v324
      %v326 = vpop.f32.mrf.mxu0
      %v327 = vadd.f32 0.0, %v326
      %328 = vdwg.mxu0
      %v329 = vmul.f32 %v325, 0.25
      %v330 = vmul.f32 %v327, 0.25
      %v331 = vsel %vm308, %v329, -inf
      %332 = vmax.xlane.f32.xlu0 %v331
      %v333 = vpop.xlane.xlu0 %332
      %v334 = vsel %vm308, %v330, -inf
      %335 = vmax.xlane.f32.xlu0 %v334
      %v336 = vpop.xlane.xlu0 %335
      %v337 = vsub.f32 %v329, %v333
      %v338 = vsub.f32 %v330, %v336
      %v339 = vmul.f32 %v337, 1.442695
      %v340 = vpow.pop %v339
      %v341 = vmul.f32 %v338, 1.442695
      %v342 = vpow.pop %v341
      %v343 = vsel %vm308, %v340, 0.0
      %344 = vadd.xlane.f32.xlu0 %v343
      %v345 = vpop.xlane.xlu0 %344
      %v346 = vsel %vm308, %v342, 0.0
      %347 = vadd.xlane.f32.xlu0 %v346
      %v348 = vpop.xlane.xlu0 %347
      %v349 = vrcp.pop %v345
      %v350 = vrcp.pop %v348
      %v351 = vmul.f32 %v340, %v349
      %v352 = vmul.f32 %v342, %v350
      %v353 = vpack.c.bf16 %v352, %v351
      %v355 = vsel %vm308, %v353, 0
      %357 = vmatpush.bf16.msra.mxu0 0
      %358 = vmatpush.bf16.msra.mxu0 0
      %359 = vmatpush.bf16.msra.mxu0 0
      %360 = vmatpush.bf16.msra.mxu0 0
      %361 = vmatpush.bf16.msra.mxu0 0
      %362 = vmatpush.bf16.msra.mxu0 0
      %363 = vmatpush.bf16.msra.mxu0 0
      %364 = vmatpush.bf16.msra.mxu0 %v304
      %365 = vmatmul.bf16.gmra.mxu0 %v355
      %v366 = vpop.f32.mrf.mxu0
      %v367 = vadd.f32 0.0, %v366
      %v368 = vpop.f32.mrf.mxu0
      %v369 = vadd.f32 0.0, %v368
      %370 = vdwg.mxu0
      %v371 = vpack.c.bf16 %v369, %v367
      %372 = vrot.lane.b32.xlu0 %v303, 112
      %v373 = vpop.permute.xlu0 %372
      %374 = vrot.lane.b32.xlu0 %v303, 48
      %v375 = vpop.permute.xlu0 %374
      %v377 = vsel %vm308, %v373, 0
      %v380 = vsel %vm308, %v375, 0
      %382 = vmatpush.bf16.xpose.msra.mxu0 0
      %383 = vmatpush.bf16.xpose.msra.mxu0 0
      %384 = vmatpush.bf16.xpose.msra.mxu0 0
      %385 = vmatpush.bf16.xpose.msra.mxu0 0
      %386 = vmatpush.bf16.xpose.msra.mxu0 0
      %387 = vmatpush.bf16.xpose.msra.mxu0 0
      %388 = vmatpush.bf16.xpose.msra.mxu0 0
      %389 = vmatpush.bf16.xpose.msra.mxu0 %v380
      %390 = vmatmul.bf16.gmra.mxu0 %v377
      %v391 = vpop.f32.mrf.mxu0
      %v392 = vadd.f32 0.0, %v391
      %v393 = vpop.f32.mrf.mxu0
      %v394 = vadd.f32 0.0, %v393
      %395 = vdwg.mxu0
      %v396 = vmul.f32 %v392, 0.25
      %v397 = vmul.f32 %v394, 0.25
      %v398 = vsel %vm308, %v396, -inf
      %399 = vmax.xlane.f32.xlu0 %v398
      %v400 = vpop.xlane.xlu0 %399
      %v401 = vsel %vm308, %v397, -inf
      %402 = vmax.xlane.f32.xlu0 %v401
      %v403 = vpop.xlane.xlu0 %402
      %v404 = vsub.f32 %v396, %v400
      %v405 = vsub.f32 %v397, %v403
      %v406 = vmul.f32 %v404, 1.442695
      %v407 = vpow.pop %v406
      %v408 = vmul.f32 %v405, 1.442695
      %v409 = vpow.pop %v408
      %v410 = vsel %vm308, %v407, 0.0
      %411 = vadd.xlane.f32.xlu0 %v410
      %v412 = vpop.xlane.xlu0 %411
      %v413 = vsel %vm308, %v409, 0.0
      %414 = vadd.xlane.f32.xlu0 %v413
      %v415 = vpop.xlane.xlu0 %414
      %v416 = vrcp.pop %v412
      %v417 = vrcp.pop %v415
      %v418 = vmul.f32 %v407, %v416
      %v419 = vmul.f32 %v409, %v417
      %v420 = vpack.c.bf16 %v419, %v418
      %422 = vrot.lane.b32.xlu0 %v304, 112
      %v423 = vpop.permute.xlu0 %422
      %v426 = vsel %vm308, %v420, 0
      %428 = vmatpush.bf16.msra.mxu0 0
      %429 = vmatpush.bf16.msra.mxu0 0
      %430 = vmatpush.bf16.msra.mxu0 0
      %431 = vmatpush.bf16.msra.mxu0 0
      %432 = vmatpush.bf16.msra.mxu0 0
      %433 = vmatpush.bf16.msra.mxu0 0
      %434 = vmatpush.bf16.msra.mxu0 0
      %435 = vmatpush.bf16.msra.mxu0 %v423
      %436 = vmatmul.bf16.gmra.mxu0 %v426
      %v437 = vpop.f32.mrf.mxu0
      %v438 = vadd.f32 0.0, %v437
      %v439 = vpop.f32.mrf.mxu0
      %v440 = vadd.f32 0.0, %v439
      %441 = vdwg.mxu0
      %v442 = vpack.c.bf16 %v440, %v438
      %v445 = vunpack.c.l.b16 %v297
      %v446 = vunpack.c.l.b16 %v298
      %v447 = vpack.c.b16 %v446, %v445
      %v450 = vsel %vm308, %v442, 0
      %452 = vmatpush.bf16.msra.mxu0 0
      %453 = vmatpush.bf16.msra.mxu0 0
      %454 = vmatpush.bf16.msra.mxu0 0
      %455 = vmatpush.bf16.msra.mxu0 0
      %456 = vmatpush.bf16.msra.mxu0 0
      %457 = vmatpush.bf16.msra.mxu0 0
      %458 = vmatpush.bf16.msra.mxu0 0
      %459 = vmatpush.bf16.msra.mxu0 %v447
      %460 = vmatmul.bf16.gmra.mxu0 %v450
      %v461 = vpop.f32.mrf.mxu0
      %v462 = vadd.f32 0.0, %v461
      %v463 = vpop.f32.mrf.mxu0
      %v464 = vadd.f32 0.0, %v463
      %465 = vdwg.mxu0
      %v468 = vunpack.c.l.b16 %v295
      %v469 = vunpack.c.l.b16 %v296
      %v470 = vpack.c.b16 %v469, %v468
      %v473 = vsel %vm308, %v371, 0
      %475 = vmatpush.bf16.msra.mxu0 0
      %476 = vmatpush.bf16.msra.mxu0 0
      %477 = vmatpush.bf16.msra.mxu0 0
      %478 = vmatpush.bf16.msra.mxu0 0
      %479 = vmatpush.bf16.msra.mxu0 0
      %480 = vmatpush.bf16.msra.mxu0 0
      %481 = vmatpush.bf16.msra.mxu0 0
      %482 = vmatpush.bf16.msra.mxu0 %v470
      %483 = vmatmul.bf16.gmra.mxu0 %v473
      %v484 = vpop.f32.mrf.mxu0
      %v485 = vadd.f32 %v462, %v484
      %v486 = vpop.f32.mrf.mxu0
      %v487 = vadd.f32 %v464, %v486
      %488 = vdwg.mxu0
      %489 = vrot.lane.b32.xlu0 %v303, 96
      %v490 = vpop.permute.xlu0 %489
      %491 = vrot.lane.b32.xlu0 %v303, 32
      %v492 = vpop.permute.xlu0 %491
      %v494 = vsel %vm308, %v490, 0
      %v497 = vsel %vm308, %v492, 0
      %499 = vmatpush.bf16.xpose.msra.mxu0 0
      %500 = vmatpush.bf16.xpose.msra.mxu0 0
      %501 = vmatpush.bf16.xpose.msra.mxu0 0
      %502 = vmatpush.bf16.xpose.msra.mxu0 0
      %503 = vmatpush.bf16.xpose.msra.mxu0 0
      %504 = vmatpush.bf16.xpose.msra.mxu0 0
      %505 = vmatpush.bf16.xpose.msra.mxu0 0
      %506 = vmatpush.bf16.xpose.msra.mxu0 %v497
      %507 = vmatmul.bf16.gmra.mxu0 %v494
      %v508 = vpop.f32.mrf.mxu0
      %v509 = vadd.f32 0.0, %v508
      %v510 = vpop.f32.mrf.mxu0
      %v511 = vadd.f32 0.0, %v510
      %512 = vdwg.mxu0
      %v513 = vmul.f32 %v509, 0.25
      %v514 = vmul.f32 %v511, 0.25
      %v515 = vsel %vm308, %v513, -inf
      %516 = vmax.xlane.f32.xlu0 %v515
      %v517 = vpop.xlane.xlu0 %516
      %v518 = vsel %vm308, %v514, -inf
      %519 = vmax.xlane.f32.xlu0 %v518
      %v520 = vpop.xlane.xlu0 %519
      %v521 = vsub.f32 %v513, %v517
      %v522 = vsub.f32 %v514, %v520
      %v523 = vmul.f32 %v521, 1.442695
      %v524 = vpow.pop %v523
      %v525 = vmul.f32 %v522, 1.442695
      %v526 = vpow.pop %v525
      %v527 = vsel %vm308, %v524, 0.0
      %528 = vadd.xlane.f32.xlu0 %v527
      %v529 = vpop.xlane.xlu0 %528
      %v530 = vsel %vm308, %v526, 0.0
      %531 = vadd.xlane.f32.xlu0 %v530
      %v532 = vpop.xlane.xlu0 %531
      %v533 = vrcp.pop %v529
      %v534 = vrcp.pop %v532
      %v535 = vmul.f32 %v524, %v533
      %v536 = vmul.f32 %v526, %v534
      %v537 = vpack.c.bf16 %v536, %v535
      %538 = vrot.lane.b32.xlu0 %v304, 96
      %v539 = vpop.permute.xlu0 %538
      %v542 = vsel %vm308, %v537, 0
      %544 = vmatpush.bf16.msra.mxu0 0
      %545 = vmatpush.bf16.msra.mxu0 0
      %546 = vmatpush.bf16.msra.mxu0 0
      %547 = vmatpush.bf16.msra.mxu0 0
      %548 = vmatpush.bf16.msra.mxu0 0
      %549 = vmatpush.bf16.msra.mxu0 0
      %550 = vmatpush.bf16.msra.mxu0 0
      %551 = vmatpush.bf16.msra.mxu0 %v539
      %552 = vmatmul.bf16.gmra.mxu0 %v542
      %v553 = vpop.f32.mrf.mxu0
      %v554 = vadd.f32 0.0, %v553
      %v555 = vpop.f32.mrf.mxu0
      %v556 = vadd.f32 0.0, %v555
      %557 = vdwg.mxu0
      %v558 = vpack.c.bf16 %v556, %v554
      %v561 = vunpack.c.l.b16 %v299
      %v562 = vunpack.c.l.b16 %v300
      %v563 = vpack.c.b16 %v562, %v561
      %v566 = vsel %vm308, %v558, 0
      %568 = vmatpush.bf16.msra.mxu0 0
      %569 = vmatpush.bf16.msra.mxu0 0
      %570 = vmatpush.bf16.msra.mxu0 0
      %571 = vmatpush.bf16.msra.mxu0 0
      %572 = vmatpush.bf16.msra.mxu0 0
      %573 = vmatpush.bf16.msra.mxu0 0
      %574 = vmatpush.bf16.msra.mxu0 0
      %575 = vmatpush.bf16.msra.mxu0 %v563
      %576 = vmatmul.bf16.gmra.mxu0 %v566
      %v577 = vpop.f32.mrf.mxu0
      %v578 = vadd.f32 0.0, %v577
      %v579 = vpop.f32.mrf.mxu0
      %v580 = vadd.f32 0.0, %v579
      %581 = vdwg.mxu0
      %v582 = vadd.f32 %v485, %v578
      %v583 = vadd.f32 %v487, %v580
      %584 = vrot.lane.b32.xlu0 %v303, 80
      %v585 = vpop.permute.xlu0 %584
      %586 = vrot.lane.b32.xlu0 %v303, 16
      %v587 = vpop.permute.xlu0 %586
      %v589 = vsel %vm308, %v585, 0
      %v592 = vsel %vm308, %v587, 0
      %594 = vmatpush.bf16.xpose.msra.mxu0 0
      %595 = vmatpush.bf16.xpose.msra.mxu0 0
      %596 = vmatpush.bf16.xpose.msra.mxu0 0
      %597 = vmatpush.bf16.xpose.msra.mxu0 0
      %598 = vmatpush.bf16.xpose.msra.mxu0 0
      %599 = vmatpush.bf16.xpose.msra.mxu0 0
      %600 = vmatpush.bf16.xpose.msra.mxu0 0
      %601 = vmatpush.bf16.xpose.msra.mxu0 %v592
      %602 = vmatmul.bf16.gmra.mxu0 %v589
      %v603 = vpop.f32.mrf.mxu0
      %v604 = vadd.f32 0.0, %v603
      %v605 = vpop.f32.mrf.mxu0
      %v606 = vadd.f32 0.0, %v605
      %607 = vdwg.mxu0
      %v608 = vmul.f32 %v604, 0.25
      %v609 = vmul.f32 %v606, 0.25
      %v610 = vsel %vm308, %v608, -inf
      %611 = vmax.xlane.f32.xlu0 %v610
      %v612 = vpop.xlane.xlu0 %611
      %v613 = vsel %vm308, %v609, -inf
      %614 = vmax.xlane.f32.xlu0 %v613
      %v615 = vpop.xlane.xlu0 %614
      %v616 = vsub.f32 %v608, %v612
      %v617 = vsub.f32 %v609, %v615
      %v618 = vmul.f32 %v616, 1.442695
      %v619 = vpow.pop %v618
      %v620 = vmul.f32 %v617, 1.442695
      %v621 = vpow.pop %v620
      %v622 = vsel %vm308, %v619, 0.0
      %623 = vadd.xlane.f32.xlu0 %v622
      %v624 = vpop.xlane.xlu0 %623
      %v625 = vsel %vm308, %v621, 0.0
      %626 = vadd.xlane.f32.xlu0 %v625
      %v627 = vpop.xlane.xlu0 %626
      %v628 = vrcp.pop %v624
      %v629 = vrcp.pop %v627
      %v630 = vmul.f32 %v619, %v628
      %v631 = vmul.f32 %v621, %v629
      %v632 = vpack.c.bf16 %v631, %v630
      %633 = vrot.lane.b32.xlu0 %v304, 80
      %v634 = vpop.permute.xlu0 %633
      %v637 = vsel %vm308, %v632, 0
      %639 = vmatpush.bf16.msra.mxu0 0
      %640 = vmatpush.bf16.msra.mxu0 0
      %641 = vmatpush.bf16.msra.mxu0 0
      %642 = vmatpush.bf16.msra.mxu0 0
      %643 = vmatpush.bf16.msra.mxu0 0
      %644 = vmatpush.bf16.msra.mxu0 0
      %645 = vmatpush.bf16.msra.mxu0 0
      %646 = vmatpush.bf16.msra.mxu0 %v634
      %647 = vmatmul.bf16.gmra.mxu0 %v637
      %v648 = vpop.f32.mrf.mxu0
      %v649 = vadd.f32 0.0, %v648
      %v650 = vpop.f32.mrf.mxu0
      %v651 = vadd.f32 0.0, %v650
      %652 = vdwg.mxu0
      %v653 = vpack.c.bf16 %v651, %v649
      %v656 = vunpack.c.l.b16 %v301
      %v657 = vunpack.c.l.b16 %v302
      %v658 = vpack.c.b16 %v657, %v656
      %v661 = vsel %vm308, %v653, 0
      %663 = vmatpush.bf16.msra.mxu0 0
      %664 = vmatpush.bf16.msra.mxu0 0
      %665 = vmatpush.bf16.msra.mxu0 0
      %666 = vmatpush.bf16.msra.mxu0 0
      %667 = vmatpush.bf16.msra.mxu0 0
      %668 = vmatpush.bf16.msra.mxu0 0
      %669 = vmatpush.bf16.msra.mxu0 0
      %670 = vmatpush.bf16.msra.mxu0 %v658
      %671 = vmatmul.bf16.gmra.mxu0 %v661
      %v672 = vpop.f32.mrf.mxu0
      %v673 = vadd.f32 0.0, %v672
      %v674 = vpop.f32.mrf.mxu0
      %v675 = vadd.f32 0.0, %v674
      %676 = vdwg.mxu0
      %v677 = vadd.f32 %v582, %v673
      %v678 = vadd.f32 %v583, %v675
      %v679 = vld [vmem:[%s4] sm:$0x1]
      %v681 = vperm.slane %v679, 0
      %v683 = vadd.f32 %v677, %v681
      %v684 = vadd.f32 %v678, %v681
      %685 = vst.msk [vmem:[%s218] sm:$0xff] %vm255, %v683
      %686 = vst.msk [vmem:[%s218 + $0x8] sm:$0xff] %vm255, %v684
      %p687 = scmp.lt.s32.totalorder %s16, 1
      %s688 = scalar_select %p687, %s16, 1
      %s689 = smul.addr %s688, 2
      %s690 = smul.addr %s689, 8
      %s691 = scalar_lea.vmem %s5, %s690
      // Predicated region
      $region41: #{stems_forward.16} parent=39 // pred_check
        %p692 = pneg %p144
      $region42: #{stems_forward.16} parent=39 // pred_check_branch
        %694 = sbr.rel (%p692) target = $region44
      $region43: #{stems_forward.16} parent=39 // pred_region
        _
      $region44: #{stems_forward.16} parent=39 // pred_fallthru
        _
    $region40: #{stems_forward.16} parent=5 // pred_fallthru
      _
    %p695 = scmp.le.s32.totalorder 2, %s11
    // Predicated region
    $region45: #{stems_forward.16} parent=5 // pred_check
      %p696 = pneg %p695
    $region46: #{stems_forward.16} parent=5 // pred_check_branch
      %698 = sbr.rel (%p696) target = $region48
    $region47: #{stems_forward.16} parent=5 // pred_region
      %s699 = ssub.s32 %s11, 2
      // Predicated region
      $region49: #{stems_forward.16} parent=47 // pred_check
        %p700 = pneg %p150
      $region50: #{stems_forward.16} parent=47 // pred_check_branch
        %702 = sbr.rel (%p700) target = $region52
      $region51: #{stems_forward.16} parent=47 // pred_region
        %p703 = scmp.lt.s32.totalorder %s17, 1
        %s704 = scalar_select %p703, %s17, 1
        %s705 = smul.addr %s704, 2
        %s706 = smul.addr %s705, 8
        %s707 = scalar_lea.vmem %s5, %s706
      $region52: #{stems_forward.16} parent=47 // pred_fallthru
        _
    $region48: #{stems_forward.16} parent=5 // pred_fallthru
      _
  $region6: #{stems_forward.16} parent=0 // loop_footer
    %s15 = sadd.s32 1, %s11
  $region7: #{stems_forward.16} parent=0 // loop_footer_branch
    %10 = sbr.rel target = $region3
  $region8: #{stems_forward.16} parent=0 // loop_exit
    _

// kernel: stems_forward.17
$region0: #{stems_forward.17}
  #allocation0 [shape = 'u32[]', space=smem, size = 0x4, offset = 0x4, fixed_abs, tag = 'smem constant byte address 0x4 - core index']
  #allocation1 [shape = 'u32[72,128]{1,0:T(1,128)}', space=vmem, size = 0x9000, scoped, tag = 'internal scratch']
  %s0 = inlined_call_operand.vmem [shape: f32[2,448], index: 0, kind: input, shape index: {}]
  %s1 = inlined_call_operand.vmem [shape: f32[448,2], index: 1, kind: input, shape index: {}]
  %s2 = inlined_call_operand.vmem [shape: f32[1,2], index: 2, kind: input, shape index: {}]
  %s3 = inlined_call_operand.hbm [shape: f32[2,2], index: 3, kind: output, shape index: {}]
  %s4 = sld [smem:[#allocation0]]
  $region22: #{stems_forward.17} parent=0
    _
  %s6 = ssub.s32 1, %s4
  %s7 = scalar_select 0, %s6, %s4
  $region1: #{stems_forward.17} parent=0
    #allocation2 [shape = 'u8[1024]{0}', space=vmem, size = 0x400, scoped, tag = 'output window, operand 0, single buffered']
    #allocation3 [shape = 's32[1]{0}', space=sflag, size = 0x4, scoped, tag = 'scoped memory for stems_forward.17']
    %8 = vsyncpa [#allocation3], 0
    // Predicated region
    $region2: #{stems_forward.17} parent=1 // pred_check
      _
    $region3: #{stems_forward.17} parent=1 // pred_check_branch
      %10 = sbr.rel (0) target = $region5
    $region4: #{stems_forward.17} parent=1 // pred_region
      _
    $region5: #{stems_forward.17} parent=1 // pred_fallthru
      _
    // Predicated region
    $region6: #{stems_forward.17} parent=1 // pred_check
      _
    $region7: #{stems_forward.17} parent=1 // pred_check_branch
      %12 = sbr.rel (0) target = $region9
    $region8: #{stems_forward.17} parent=1 // pred_region
      _
    $region9: #{stems_forward.17} parent=1 // pred_fallthru
      _
    // Predicated region
    $region10: #{stems_forward.17} parent=1 // pred_check
      _
    $region11: #{stems_forward.17} parent=1 // pred_check_branch
      %14 = sbr.rel (0) target = $region13
    $region12: #{stems_forward.17} parent=1 // pred_region
      _
    $region13: #{stems_forward.17} parent=1 // pred_fallthru
      _
    %v16 = vld [vmem:[%s0] sm:$0xff]
    %18 = vst [vmem:[#allocation1] ss:$4 sm:$0xff] %v16
    %v19 = vld.sshfl [vmem:[#allocation1] sm:$0xff pattern:$0x73625140]
    %v20 = vld.sshfl [vmem:[#allocation1 + $0x8] sm:$0xff pattern:$0x73625140]
    %v21 = vld.sshfl [vmem:[#allocation1 + $0x10] sm:$0xff pattern:$0x73625140]
    %v22 = vld.sshfl [vmem:[#allocation1 + $0x18] sm:$0xff pattern:$0x73625140]
    %v27 = vpack.c.bf16 %v19, %v19
    %v28 = vpack.c.bf16 %v20, %v20
    %v29 = vpack.c.bf16 %v21, %v21
    %v30 = vpack.c.bf16 %v22, %v22
    %v31 = vld [vmem:[%s1] sm:$0xff]
    %v32 = vld [vmem:[%s1 + $0x8] sm:$0xff]
    %v33 = vld [vmem:[%s1 + $0x10] sm:$0xff]
    %v34 = vld [vmem:[%s1 + $0x18] sm:$0xff]
    %v35 = vld [vmem:[%s1 + $0x20] sm:$0xff]
    %v36 = vld [vmem:[%s1 + $0x28] sm:$0xff]
    %v37 = vld [vmem:[%s1 + $0x30] sm:$0xff]
    %v38 = vld [vmem:[%s1 + $0x38] sm:$0xff]
    %v39 = vld [vmem:[%s1 + $0x40] sm:$0xff]
    %v40 = vld [vmem:[%s1 + $0x48] sm:$0xff]
    %v41 = vld [vmem:[%s1 + $0x50] sm:$0xff]
    %v42 = vld [vmem:[%s1 + $0x58] sm:$0xff]
    %v43 = vld [vmem:[%s1 + $0x60] sm:$0xff]
    %v44 = vld [vmem:[%s1 + $0x68] sm:$0xff]
    %v45 = vld [vmem:[%s1 + $0x70] sm:$0xff]
    %v46 = vld [vmem:[%s1 + $0x78] sm:$0xff]
    %v47 = vld [vmem:[%s1 + $0x80] sm:$0xff]
    %v48 = vld [vmem:[%s1 + $0x88] sm:$0xff]
    %v49 = vld [vmem:[%s1 + $0x90] sm:$0xff]
    %v50 = vld [vmem:[%s1 + $0x98] sm:$0xff]
    %v51 = vld [vmem:[%s1 + $0xa0] sm:$0xff]
    %v52 = vld [vmem:[%s1 + $0xa8] sm:$0xff]
    %v53 = vld [vmem:[%s1 + $0xb0] sm:$0xff]
    %v54 = vld [vmem:[%s1 + $0xb8] sm:$0xff]
    %v55 = vld [vmem:[%s1 + $0xc0] sm:$0xff]
    %v56 = vld [vmem:[%s1 + $0xc8] sm:$0xff]
    %v57 = vld [vmem:[%s1 + $0xd0] sm:$0xff]
    %v58 = vld [vmem:[%s1 + $0xd8] sm:$0xff]
    %v59 = vld [vmem:[%s1 + $0xe0] sm:$0xff]
    %v60 = vld [vmem:[%s1 + $0xe8] sm:$0xff]
    %v61 = vld [vmem:[%s1 + $0xf0] sm:$0xff]
    %v62 = vld [vmem:[%s1 + $0xf8] sm:$0xff]
    %v63 = vld [vmem:[%s1 + $0x100] sm:$0xff]
    %v64 = vld [vmem:[%s1 + $0x108] sm:$0xff]
    %v65 = vld [vmem:[%s1 + $0x110] sm:$0xff]
    %v66 = vld [vmem:[%s1 + $0x118] sm:$0xff]
    %v67 = vld [vmem:[%s1 + $0x120] sm:$0xff]
    %v68 = vld [vmem:[%s1 + $0x128] sm:$0xff]
    %v69 = vld [vmem:[%s1 + $0x130] sm:$0xff]
    %v70 = vld [vmem:[%s1 + $0x138] sm:$0xff]
    %v71 = vld [vmem:[%s1 + $0x140] sm:$0xff]
    %v72 = vld [vmem:[%s1 + $0x148] sm:$0xff]
    %v73 = vld [vmem:[%s1 + $0x150] sm:$0xff]
    %v74 = vld [vmem:[%s1 + $0x158] sm:$0xff]
    %v75 = vld [vmem:[%s1 + $0x160] sm:$0xff]
    %v76 = vld [vmem:[%s1 + $0x168] sm:$0xff]
    %v77 = vld [vmem:[%s1 + $0x170] sm:$0xff]
    %v78 = vld [vmem:[%s1 + $0x178] sm:$0xff]
    %v79 = vld [vmem:[%s1 + $0x180] sm:$0xff]
    %v80 = vld [vmem:[%s1 + $0x188] sm:$0xff]
    %v81 = vld [vmem:[%s1 + $0x190] sm:$0xff]
    %v82 = vld [vmem:[%s1 + $0x198] sm:$0xff]
    %v83 = vld [vmem:[%s1 + $0x1a0] sm:$0xff]
    %v84 = vld [vmem:[%s1 + $0x1a8] sm:$0xff]
    %v85 = vld [vmem:[%s1 + $0x1b0] sm:$0xff]
    %v86 = vld [vmem:[%s1 + $0x1b8] sm:$0xff]
    %v87 = vpack.c.bf16 %v32, %v31
    %v88 = vpack.c.bf16 %v34, %v33
    %v89 = vpack.c.bf16 %v36, %v35
    %v90 = vpack.c.bf16 %v38, %v37
    %v91 = vpack.c.bf16 %v40, %v39
    %v92 = vpack.c.bf16 %v42, %v41
    %v93 = vpack.c.bf16 %v44, %v43
    %v94 = vpack.c.bf16 %v46, %v45
    %v95 = vpack.c.bf16 %v48, %v47
    %v96 = vpack.c.bf16 %v50, %v49
    %v97 = vpack.c.bf16 %v52, %v51
    %v98 = vpack.c.bf16 %v54, %v53
    %v99 = vpack.c.bf16 %v56, %v55
    %v100 = vpack.c.bf16 %v58, %v57
    %v101 = vpack.c.bf16 %v60, %v59
    %v102 = vpack.c.bf16 %v62, %v61
    %v103 = vpack.c.bf16 %v64, %v63
    %v104 = vpack.c.bf16 %v66, %v65
    %v105 = vpack.c.bf16 %v68, %v67
    %v106 = vpack.c.bf16 %v70, %v69
    %v107 = vpack.c.bf16 %v72, %v71
    %v108 = vpack.c.bf16 %v74, %v73
    %v109 = vpack.c.bf16 %v76, %v75
    %v110 = vpack.c.bf16 %v78, %v77
    %v111 = vpack.c.bf16 %v80, %v79
    %v112 = vpack.c.bf16 %v82, %v81
    %v113 = vpack.c.bf16 %v84, %v83
    %v114 = vpack.c.bf16 %v86, %v85
    %v115 = vld [vmem:[%s2] sm:$0x1]
    %v117 = vperm.slane %v115, 0
    %vm119 = vcmask 523264
    %v121 = vsel %vm119, %v30, 0
    %123 = vmatpush.bf16.msra.mxu0 %v94
    %124 = vmatpush.bf16.msra.mxu0 %v93
    %125 = vmatpush.bf16.msra.mxu0 %v92
    %126 = vmatpush.bf16.msra.mxu0 %v91
    %127 = vmatpush.bf16.msra.mxu0 %v90
    %128 = vmatpush.bf16.msra.mxu0 %v89
    %129 = vmatpush.bf16.msra.mxu0 %v88
    %130 = vmatpush.bf16.msra.mxu0 %v87
    %131 = vmatmul.bf16.gmra.mxu0 %v27
    %v132 = vpop.f32.mrf.mxu0
    %v133 = vadd.f32 %v117, %v132
    %v134 = vpop.f32.mrf.mxu0
    %135 = vdwg.mxu0
    %136 = vmatpush.bf16.msra.mxu0 %v102
    %137 = vmatpush.bf16.msra.mxu0 %v101
    %138 = vmatpush.bf16.msra.mxu0 %v100
    %139 = vmatpush.bf16.msra.mxu0 %v99
    %140 = vmatpush.bf16.msra.mxu0 %v98
    %141 = vmatpush.bf16.msra.mxu0 %v97
    %142 = vmatpush.bf16.msra.mxu0 %v96
    %143 = vmatpush.bf16.msra.mxu0 %v95
    %144 = vmatmul.bf16.gmra.mxu0 %v28
    %v145 = vpop.f32.mrf.mxu0
    %v146 = vadd.f32 %v133, %v145
    %v147 = vpop.f32.mrf.mxu0
    %148 = vdwg.mxu0
    %149 = vmatpush.bf16.msra.mxu0 %v110
    %150 = vmatpush.bf16.msra.mxu0 %v109
    %151 = vmatpush.bf16.msra.mxu0 %v108
    %152 = vmatpush.bf16.msra.mxu0 %v107
    %153 = vmatpush.bf16.msra.mxu0 %v106
    %154 = vmatpush.bf16.msra.mxu0 %v105
    %155 = vmatpush.bf16.msra.mxu0 %v104
    %156 = vmatpush.bf16.msra.mxu0 %v103
    %157 = vmatmul.bf16.gmra.mxu0 %v29
    %v158 = vpop.f32.mrf.mxu0
    %v159 = vadd.f32 %v146, %v158
    %v160 = vpop.f32.mrf.mxu0
    %161 = vdwg.mxu0
    %162 = vmatpush.bf16.msra.mxu0 0
    %163 = vmatpush.bf16.msra.mxu0 0
    %164 = vmatpush.bf16.msra.mxu0 0
    %165 = vmatpush.bf16.msra.mxu0 0
    %166 = vmatpush.bf16.msra.mxu0 %v114
    %167 = vmatpush.bf16.msra.mxu0 %v113
    %168 = vmatpush.bf16.msra.mxu0 %v112
    %169 = vmatpush.bf16.msra.mxu0 %v111
    %170 = vmatmul.bf16.gmra.mxu0 %v121
    %v171 = vpop.f32.mrf.mxu0
    %v172 = vadd.f32 %v159, %v171
    %v173 = vpop.f32.mrf.mxu0
    %174 = vdwg.mxu0
    %vm175 = vcmask 9216
    %176 = vst.msk [vmem:[#allocation2] sm:$0x3] %vm175, %v172
    // Predicated region
    $region14: #{stems_forward.17} parent=1 // pred_check
      _
    $region15: #{stems_forward.17} parent=1 // pred_check_branch
      %178 = sbr.rel (0) target = $region17
    $region16: #{stems_forward.17} parent=1 // pred_region
      %180 = vsyncadd [#allocation3], 0
      %s182 = sshll.u32 [#allocation2], 4
      %s183 = int_to_ptr.vmem [resolvable:$true] %s182
      %s184 = sshll.u32 %s3, 4
      %s185 = int_to_ptr.hbm [resolvable:$true] %s184
      %187 = dma.vmem_to_hbm [thread:$0]  %s183, 32, %s185, [#allocation3]
    $region17: #{stems_forward.17} parent=1 // pred_fallthru
      _
    // Predicated region
    $region18: #{stems_forward.17} parent=1 // pred_check
      _
    $region19: #{stems_forward.17} parent=1 // pred_check_branch
      %189 = sbr.rel (0) target = $region21
    $region20: #{stems_forward.17} parent=1 // pred_region
      %191 = dma.done [#allocation3], 32
    $region21: #{stems_forward.17} parent=1 // pred_fallthru
      _
    %192 = vsyncpa [#allocation3], 1

</llo_original>
